<compile_context>
chip_gen: v7x
topology: tpu7x:2x2x1
jax: 0.10.0
libtpu: 0.0.40
codegen_flags: <defaults>
</compile_context>

<pallas_src>
import functools
import math
import numpy as np

import jax
import jax.numpy as jnp
from jax import lax
from jax.experimental import pallas as pl
from jax.experimental.pallas import tpu as pltpu


LANE = 128  # padding granule for node rows (N is padded to a multiple of this)


def _round_up(n, m):
    return ((n + m - 1) // m) * m


def _row_tile(n):
    # Large tiles amortize the ~0.35us per-grid-step overhead, but keep >= 2 row
    # tiles so both TensorCores on v7x get work even for a single padded block.
    for t in (256, 128, 64):
        if n % t == 0 and n // t >= 2:
            return t
    return min(n, 128)


def _key_tile(n):
    # Decouple the key-tile size from the padding granule; bigger TK amortizes
    # the per-step acc/l/m rescale and step overhead.
    for t in (512, 256, 128):
        if n % t == 0:
            return t
    return 128


def _layernorm(x, gamma, beta, eps=1e-5):
    mu = jnp.mean(x, axis=-1, keepdims=True)
    xc = x - mu
    var = jnp.mean(xc * xc, axis=-1, keepdims=True)
    return xc * lax.rsqrt(var + eps) * gamma + beta


# ----------------------------------------------------------------------------
# Kernel 1: x + degree_emb and fused QKV projection (one [TR,D]x[D,3D] matmul).
# Emits fp32 residual xp and lane-dense bf16 Q/K/V ([Np, D] each).
# ----------------------------------------------------------------------------
def qkv_proj_kernel(x_ref, deg_ref, wqkv_ref, bqkv_ref,
                    xp_ref, q_ref, k_ref, v_ref, *, hidden_dim):
    xp = x_ref[...] + deg_ref[...]
    xp_ref[...] = xp
    qkv = jnp.dot(xp.astype(wqkv_ref.dtype), wqkv_ref[...],
                  preferred_element_type=jnp.float32) + bqkv_ref[...]
    qkv = qkv.astype(q_ref.dtype)
    D = hidden_dim
    q_ref[...] = qkv[:, :D]
    k_ref[...] = qkv[:, D:2 * D]
    v_ref[...] = qkv[:, 2 * D:3 * D]


# ----------------------------------------------------------------------------
# Kernel 2: flash attention with additive per-head bias.
# Grid = (q_tiles, k_tiles); Q/K/V arrive lane-dense as [rows, D] bf16 and the
# head split is a static lane slice per head (hd columns). Online safe softmax
# (m initialized to a finite floor so fully -inf rows, e.g. padding, give 0).
# Bias streams in bf16 and is upcast when added to the fp32 scores.
# ----------------------------------------------------------------------------
def flash_attn_kernel(q_ref, k_ref, v_ref, bias_ref, o_ref,
                      m_sc, l_sc, acc_sc, *, n_heads, head_dim):
    ki = pl.program_id(1)

    @pl.when(ki == 0)
    def _():
        m_sc[...] = jnp.full_like(m_sc, -1e30)   # finite floor, not -inf
        l_sc[...] = jnp.zeros_like(l_sc)
        acc_sc[...] = jnp.zeros_like(acc_sc)

    q = q_ref[...]     # (TQ, D) bf16; 1/sqrt(head_dim) already folded into Wq/bq
    k = k_ref[...]     # (TK, D) bf16
    v = v_ref[...]     # (TK, D) bf16

    for h in range(n_heads):                       # static unroll over heads
        lo = h * head_dim
        qh = q[:, lo:lo + head_dim]                # (TQ, hd)
        kh = k[:, lo:lo + head_dim]                # (TK, hd)
        vh = v[:, lo:lo + head_dim]                # (TK, hd)

        # bf16 MXU operands, fp32 accumulation
        s = lax.dot_general(qh, kh, (((1,), (1,)), ((), ())),
                            preferred_element_type=jnp.float32)   # (TQ, TK)
        s = s + bias_ref[h].astype(jnp.float32)

        m_prev = m_sc[h]                                           # (TQ, 1)
        m_new = jnp.maximum(m_prev, jnp.max(s, axis=-1, keepdims=True))
        alpha = jnp.exp(m_prev - m_new)
        p = jnp.exp(s - m_new)
        l_sc[h] = alpha * l_sc[h] + jnp.sum(p, axis=-1, keepdims=True)
        acc_sc[h] = alpha * acc_sc[h] + jnp.dot(
            p.astype(v.dtype), vh, preferred_element_type=jnp.float32)
        m_sc[h] = m_new

    @pl.when(ki == pl.num_programs(1) - 1)
    def _():
        outs = []
        for h in range(n_heads):
            l = l_sc[h]
            l_safe = jnp.where(l == 0.0, 1.0, l)   # fully-masked rows -> 0
            outs.append(acc_sc[h] / l_safe)        # exact divide (once per q tile)
        # heads merged back onto the lane axis -> lane-dense [TQ, D] output store
        o_ref[...] = jnp.concatenate(outs, axis=-1).astype(o_ref.dtype)


# ----------------------------------------------------------------------------
# Kernel 3: O-projection + residual + LN1 + FFN + residual + LN2
# TODO(synk): for large hidden dims (D>=512) add an 'arbitrary' contraction grid
#             axis so Wo/W1/W2 are tiled instead of whole-resident (v7x VMEM).
# ----------------------------------------------------------------------------
def out_ffn_kernel(attn_ref, xp_ref, wo_ref, bo_ref, g1_ref, be1_ref,
                   w1_ref, bf1_ref, w2_ref, bf2_ref, g2_ref, be2_ref, out_ref):
    attn = (jnp.dot(attn_ref[...], wo_ref[...], preferred_element_type=jnp.float32)
            + bo_ref[...])
    x1 = _layernorm(xp_ref[...] + attn, g1_ref[...], be1_ref[...])
    h = jnp.maximum(
        jnp.dot(x1, w1_ref[...], preferred_element_type=jnp.float32) + bf1_ref[...],
        0.0)
    ff = jnp.dot(h, w2_ref[...], preferred_element_type=jnp.float32) + bf2_ref[...]
    out_ref[...] = _layernorm(x1 + ff, g2_ref[...], be2_ref[...])


# ----------------------------------------------------------------------------
# One GritTransformerLayer forward (dropout == 0 -> identity)
# ----------------------------------------------------------------------------
@functools.partial(jax.jit, static_argnames=('n_heads',))
def grit_layer(x, deg_emb, attn_bias, lp, *, n_heads):
    Np, D = x.shape
    H = n_heads
    hd = D // H
    F = lp['w1'].shape[1]
    tr = _row_tile(Np)     # row tile (QKV / attention queries / out-FFN)
    tk = _key_tile(Np)     # key tile
    assert Np % tr == 0 and Np % tk == 0

    # ---- (1) fused QKV projection, tiled over node rows -------------------
    xp, q, k, v = pl.pallas_call(
        functools.partial(qkv_proj_kernel, hidden_dim=D),
        out_shape=(jax.ShapeDtypeStruct((Np, D), jnp.float32),
                   jax.ShapeDtypeStruct((Np, D), jnp.bfloat16),
                   jax.ShapeDtypeStruct((Np, D), jnp.bfloat16),
                   jax.ShapeDtypeStruct((Np, D), jnp.bfloat16)),
        grid=(Np // tr,),
        in_specs=[pl.BlockSpec((tr, D), lambda i: (i, 0)),
                  pl.BlockSpec((tr, D), lambda i: (i, 0)),
                  pl.BlockSpec((D, 3 * D), lambda i: (0, 0)),
                  pl.BlockSpec((1, 3 * D), lambda i: (0, 0))],
        out_specs=(pl.BlockSpec((tr, D), lambda i: (i, 0)),) * 4,
        compiler_params=pltpu.CompilerParams(
            dimension_semantics=("parallel",)),
    )(x, deg_emb, lp['wqkv'], lp['bqkv'])

    # ---- (2) flash attention over (q_tile, k_tile) grid --------------------
    # No head-major HBM tensors and no XLA transposes: Q/K/V stay [Np, D].
    attn_cat = pl.pallas_call(
        functools.partial(flash_attn_kernel, n_heads=H, head_dim=hd),
        out_shape=jax.ShapeDtypeStruct((Np, D), jnp.float32),
        grid=(Np // tr, Np // tk),
        in_specs=[pl.BlockSpec((tr, D), lambda qi, ki: (qi, 0)),
                  pl.BlockSpec((tk, D), lambda qi, ki: (ki, 0)),
                  pl.BlockSpec((tk, D), lambda qi, ki: (ki, 0)),
                  pl.BlockSpec((H, tr, tk), lambda qi, ki: (0, qi, ki))],
        out_specs=pl.BlockSpec((tr, D), lambda qi, ki: (qi, 0)),
        scratch_shapes=[pltpu.VMEM((H, tr, 1), jnp.float32),
                        pltpu.VMEM((H, tr, 1), jnp.float32),
                        pltpu.VMEM((H, tr, hd), jnp.float32)],
        compiler_params=pltpu.CompilerParams(
            dimension_semantics=("parallel", "arbitrary")),
    )(q, k, v, attn_bias)

    # ---- (3) O-proj + residual/LN + FFN + residual/LN, tiled over rows ----
    out = pl.pallas_call(
        out_ffn_kernel,
        out_shape=jax.ShapeDtypeStruct((Np, D), jnp.float32),
        grid=(Np // tr,),
        in_specs=[pl.BlockSpec((tr, D), lambda i: (i, 0)),   # attn_cat
                  pl.BlockSpec((tr, D), lambda i: (i, 0)),   # residual x (+deg)
                  pl.BlockSpec((D, D), lambda i: (0, 0)),    # Wo
                  pl.BlockSpec((1, D), lambda i: (0, 0)),    # bo
                  pl.BlockSpec((1, D), lambda i: (0, 0)),    # ln1 gamma
                  pl.BlockSpec((1, D), lambda i: (0, 0)),    # ln1 beta
                  pl.BlockSpec((D, F), lambda i: (0, 0)),    # W1
                  pl.BlockSpec((1, F), lambda i: (0, 0)),    # b1
                  pl.BlockSpec((F, D), lambda i: (0, 0)),    # W2
                  pl.BlockSpec((1, D), lambda i: (0, 0)),    # b2
                  pl.BlockSpec((1, D), lambda i: (0, 0)),    # ln2 gamma
                  pl.BlockSpec((1, D), lambda i: (0, 0))],   # ln2 beta
        out_specs=pl.BlockSpec((tr, D), lambda i: (i, 0)),
        # Safe only because xp's in_spec and the out_spec use identical block
        # shape and index map (tile i read before tile i is written).
        input_output_aliases={1: 0},
        compiler_params=pltpu.CompilerParams(
            dimension_semantics=("parallel",)),
    )(attn_cat, xp, lp['wo'], lp['bo'], lp['ln1_g'], lp['ln1_b'],
      lp['w1'], lp['b1'], lp['w2'], lp['b2'], lp['ln2_g'], lp['ln2_b'])
    return out


# ----------------------------------------------------------------------------
# Parameter init (deterministic, matches module __init__ shapes)
# ----------------------------------------------------------------------------
def _dense(key, fin, fout):
    k1, k2 = jax.random.split(key)
    lim = 1.0 / np.sqrt(fin)
    w = jax.random.uniform(k1, (fin, fout), jnp.float32, -lim, lim)
    b = jax.random.uniform(k2, (1, fout), jnp.float32, -lim, lim)
    return w, b


def init_params(key, num_node_features, num_edge_types, hidden_dim,
                num_layers, num_heads, rpe_steps, max_degree):
    keys = jax.random.split(key, 6 + num_layers)
    params = {}
    params['node_emb'] = jax.random.normal(keys[0], (num_node_features, hidden_dim), jnp.float32)
    params['edge_type_emb'] = jax.random.normal(keys[1], (num_edge_types, num_heads), jnp.float32)
    params['degree_emb'] = jax.random.normal(keys[2], (max_degree + 1, hidden_dim), jnp.float32)

    mlp_in = rpe_steps + 1
    mlp_hidden = hidden_dim // 2 if hidden_dim >= 2 else hidden_dim
    rw1, rb1 = _dense(keys[3], mlp_in, mlp_hidden)
    rw2, rb2 = _dense(keys[4], mlp_hidden, num_heads)
    params['rpe_mlp'] = dict(w1=rw1, b1=rb1, w2=rw2, b2=rb2)

    layers = []
    ff_hidden = hidden_dim * 2  # expansion_factor = 2
    for l in range(num_layers):
        lk = jax.random.split(keys[5 + l], 6)
        wq, bq = _dense(lk[0], hidden_dim, hidden_dim)
        wk, bk = _dense(lk[1], hidden_dim, hidden_dim)
        wv, bv = _dense(lk[2], hidden_dim, hidden_dim)
        wo, bo = _dense(lk[3], hidden_dim, hidden_dim)
        w1, b1 = _dense(lk[4], hidden_dim, ff_hidden)
        w2, b2 = _dense(lk[5], ff_hidden, hidden_dim)
        layers.append(dict(
            wq=wq, bq=bq, wk=wk, bk=bk, wv=wv, bv=bv, wo=wo, bo=bo,
            ln1_g=jnp.ones((1, hidden_dim), jnp.float32),
            ln1_b=jnp.zeros((1, hidden_dim), jnp.float32),
            ln2_g=jnp.ones((1, hidden_dim), jnp.float32),
            ln2_b=jnp.zeros((1, hidden_dim), jnp.float32),
            w1=w1, b1=b1, w2=w2, b2=b2))
    params['layers'] = layers
    return params


def prepare_layer_params(lp, n_heads):
    """One-time packing: Wq|Wk|Wv -> bf16 [D,3D] with 1/sqrt(hd) folded into Wq/bq."""
    D = lp['wq'].shape[0]
    hd = D // n_heads
    scale = 1.0 / math.sqrt(hd)
    wqkv = jnp.concatenate([lp['wq'] * scale, lp['wk'], lp['wv']], axis=1)
    bqkv = jnp.concatenate([lp['bq'] * scale, lp['bk'], lp['bv']], axis=1)
    return dict(
        wqkv=wqkv.astype(jnp.bfloat16), bqkv=bqkv,
        wo=lp['wo'], bo=lp['bo'],
        ln1_g=lp['ln1_g'], ln1_b=lp['ln1_b'],
        ln2_g=lp['ln2_g'], ln2_b=lp['ln2_b'],
        w1=lp['w1'], b1=lp['b1'], w2=lp['w2'], b2=lp['b2'])


# ----------------------------------------------------------------------------
# Attention-bias construction (RRWP + edge-type bias). Mirrors the PyTorch
# Python-loop code; it is data-dependent host-side glue feeding the kernels.
# Padded rows/columns (beyond N) are -inf and masked by the safe softmax.
# Returned in bf16 to halve the per-layer bias HBM stream.
# TODO(synk): the per-graph dict/loop RRWP construction has no clean Pallas
#             equivalent; kept as host-side numpy glue feeding the kernel.
# ----------------------------------------------------------------------------
def construct_attention_bias(edge_index, edge_attr, batch, deg, params,
                             num_heads, rpe_steps, n_pad):
    ei = np.asarray(edge_index)
    ea = None if edge_attr is None else np.asarray(edge_attr)
    batch = np.asarray(batch)
    deg = np.asarray(deg)
    H, N = num_heads, deg.shape[0]
    ew = np.asarray(params['edge_type_emb'])
    w1 = np.asarray(params['rpe_mlp']['w1']); b1 = np.asarray(params['rpe_mlp']['b1'])
    w2 = np.asarray(params['rpe_mlp']['w2']); b2 = np.asarray(params['rpe_mlp']['b2'])

    attn_bias = np.zeros((H, N, N), dtype=np.float32)
    batch_size = int(batch.max()) + 1
    start_idx = 0
    for g in range(batch_size):
        idx = np.nonzero(batch == g)[0]
        n = idx.size
        if n == 0:
            continue
        local = {int(idx[j]): j for j in range(n)}
        T = np.zeros((n, n), dtype=np.float32)
        sub_mask = batch[ei[0]] == g
        sub_ei = ei[:, sub_mask]
        sub_ea = ea[sub_mask] if ea is not None else None
        for e, (src, dst) in enumerate(sub_ei.T.tolist()):
            if src not in local or dst not in local:
                continue
            u, v = local[src], local[dst]
            T[u, v] += 1.0 / max(1, int(deg[src]))
            if batch[dst] == g:
                T[v, u] += 1.0 / max(1, int(deg[dst]))
            if sub_ea is not None:
                et = int(sub_ea[e])
                vec = ew[et]
                attn_bias[:, start_idx + u, start_idx + v] += vec
                attn_bias[:, start_idx + v, start_idx + u] += vec
        K = rpe_steps
        powers = [np.eye(n, dtype=np.float32)]
        if K >= 1:
            powers.append(T)
        cur = T
        for _ in range(2, K + 1):
            cur = cur @ T
            powers.append(cur)
        walk = np.stack(powers, axis=-1)                          # (n, n, K+1)
        pf = walk.reshape(n * n, K + 1)
        pb = np.maximum(pf @ w1 + b1, 0.0) @ w2 + b2              # (n*n, H)
        pb = pb.reshape(n, n, H).transpose(2, 0, 1)
        attn_bias[:, start_idx:start_idx + n, start_idx:start_idx + n] += pb
        start_idx += n

    if batch_size > 1:
        counts = np.bincount(batch, minlength=batch_size)
        cum = np.concatenate([[0], np.cumsum(counts)])
        for i in range(batch_size):
            for j in range(batch_size):
                if i == j:
                    continue
                attn_bias[:, cum[i]:cum[i + 1], cum[j]:cum[j + 1]] = -np.inf
                attn_bias[:, cum[j]:cum[j + 1], cum[i]:cum[i + 1]] = -np.inf

    # Embed into a padded [H, n_pad, n_pad] tensor; padding is fully masked.
    full = np.full((H, n_pad, n_pad), -np.inf, dtype=np.float32)
    full[:, :N, :N] = attn_bias
    return jnp.asarray(full).astype(jnp.bfloat16)


def _pad_rows(a, n_pad):
    n = a.shape[0]
    if n == n_pad:
        return a
    pad = jnp.zeros((n_pad - n,) + a.shape[1:], a.dtype)
    return jnp.concatenate([a, pad], axis=0)


# ----------------------------------------------------------------------------
# Full GRIT forward
# ----------------------------------------------------------------------------
def grit_forward(params, x_idx, edge_index, edge_attr, batch, cfg):
    x = jnp.take(params['node_emb'], jnp.asarray(x_idx, dtype=jnp.int32), axis=0)
    N, D = x.shape
    Np = _round_up(max(N, LANE), LANE)

    # degrees (scatter-add on source indices, clamped — matches reference)
    deg_np = np.zeros((N,), dtype=np.int64)
    np.add.at(deg_np, np.asarray(edge_index)[0], 1)
    deg_np = np.clip(deg_np, 0, cfg['max_degree']).astype(np.int32)

    attn_bias = construct_attention_bias(edge_index, edge_attr, batch, deg_np,
                                         params, cfg['num_heads'], cfg['rpe_steps'],
                                         n_pad=Np)
    deg_emb = jnp.take(params['degree_emb'], jnp.asarray(deg_np), axis=0)  # [N, D]

    x = _pad_rows(x, Np)
    deg_emb = _pad_rows(deg_emb, Np)

    # One-time per-forward parameter packing (hoisted out of the layer loop).
    layer_params = [prepare_layer_params(lp, cfg['num_heads']) for lp in params['layers']]

    # TODO(synk): attn_bias/deg_emb are re-streamed every layer; a layer grid
    #             axis (weights indexed by layer) could reuse the bias tile.
    for lp in layer_params:
        x = grit_layer(x, deg_emb, attn_bias, lp, n_heads=cfg['num_heads'])

    x = x[:N]                                 # drop padded rows
    batch_j = jnp.asarray(batch, dtype=jnp.int32)
    B = int(np.asarray(batch).max()) + 1
    pooled = jnp.zeros((B, D), x.dtype).at[batch_j].add(x)   # global_add_pool
    return pooled


# ----------------------------------------------------------------------------
if __name__ == "__main__":
    cfg = dict(num_node_features=5, num_edge_types=3, hidden_dim=32,
               num_layers=2, num_heads=4, rpe_steps=4, max_degree=10)

    key = jax.random.PRNGKey(0)
    params = init_params(key, **cfg)

    # Two graphs of 4 nodes each (N = 8), categorical node features.
    x_idx = np.array([0, 1, 2, 3, 4, 0, 1, 2], dtype=np.int32)
    edge_index = np.array([[0, 1, 2, 3, 4, 5, 6, 4],
                           [1, 2, 3, 0, 5, 6, 7, 6]], dtype=np.int32)
    edge_attr = np.array([0, 1, 2, 0, 1, 2, 0, 1], dtype=np.int32)
    batch = np.array([0, 0, 0, 0, 1, 1, 1, 1], dtype=np.int32)

    out = grit_forward(params, x_idx, edge_index, edge_attr, batch, cfg)
    out = jax.block_until_ready(out)

    assert out.shape == (2, cfg['hidden_dim']), out.shape
    assert bool(jnp.all(jnp.isfinite(out)))
    print("KERNEL_OK")
</pallas_src>

<mosaic_0001>
module attributes {stable_mosaic.version = 11 : i64} {
  func.func @qkv_proj_kernel(%arg0: i32, %arg1: memref<64x32xf32, #tpu.memory_space<vmem>>, %arg2: memref<64x32xf32, #tpu.memory_space<vmem>>, %arg3: memref<32x96xbf16, #tpu.memory_space<vmem>>, %arg4: memref<1x96xf32, #tpu.memory_space<vmem>>, %arg5: memref<64x32xf32, #tpu.memory_space<vmem>>, %arg6: memref<64x32xbf16, #tpu.memory_space<vmem>>, %arg7: memref<64x32xbf16, #tpu.memory_space<vmem>>, %arg8: memref<64x32xbf16, #tpu.memory_space<vmem>>) attributes {dimension_semantics = [#tpu.dimension_semantics<parallel>], iteration_bounds = array<i64: 2>, scalar_prefetch = 0 : i64, scratch_operands = 0 : i64, tpu.core_type = #tpu.core_type<tc>, window_params = [{transform_indices = @transform_0, window_bounds = array<i64: 64, 32>}, {transform_indices = @transform_1, window_bounds = array<i64: 64, 32>}, {pipeline_mode = #tpu.pipeline_mode<synchronous>, transform_indices = @transform_2, window_bounds = array<i64: 32, 96>}, {pipeline_mode = #tpu.pipeline_mode<synchronous>, transform_indices = @transform_3, window_bounds = array<i64: 1, 96>}, {transform_indices = @transform_4, window_bounds = array<i64: 64, 32>}, {transform_indices = @transform_5, window_bounds = array<i64: 64, 32>}, {transform_indices = @transform_6, window_bounds = array<i64: 64, 32>}, {transform_indices = @transform_7, window_bounds = array<i64: 64, 32>}]} {
    %c0 = arith.constant 0 : index
    %c0_0 = arith.constant 0 : index
    %0 = vector.load %arg1[%c0, %c0_0] : memref<64x32xf32, #tpu.memory_space<vmem>>, vector<64x32xf32>
    %c0_1 = arith.constant 0 : index
    %c0_2 = arith.constant 0 : index
    %1 = vector.load %arg2[%c0_1, %c0_2] : memref<64x32xf32, #tpu.memory_space<vmem>>, vector<64x32xf32>
    %2 = arith.addf %0, %1 : vector<64x32xf32>
    %c0_3 = arith.constant 0 : index
    %c0_4 = arith.constant 0 : index
    %3 = vector.load %arg5[%c0_3, %c0_4] : memref<64x32xf32, #tpu.memory_space<vmem>>, vector<64x32xf32>
    tpu.vector_store %arg5[%c0_3, %c0_4], %2 {strides = array<i32>} : memref<64x32xf32, #tpu.memory_space<vmem>>, vector<64x32xf32>,
    %4 = arith.truncf %2 : vector<64x32xf32> to vector<64x32xbf16>
    %c0_5 = arith.constant 0 : index
    %c0_6 = arith.constant 0 : index
    %5 = vector.load %arg3[%c0_5, %c0_6] : memref<32x96xbf16, #tpu.memory_space<vmem>>, vector<32x96xbf16>
    %cst = arith.constant dense<0.000000e+00> : vector<64x96xf32>
    %6 = tpu.matmul %4, %5, %cst {dimension_numbers = #tpu.dot_dimension_numbers<[1], [0], [0], [1], [0, 0, 1, 1], [], []>} : vector<64x32xbf16>, vector<32x96xbf16>, vector<64x96xf32> -> vector<64x96xf32>
    %c0_7 = arith.constant 0 : index
    %c0_8 = arith.constant 0 : index
    %7 = vector.load %arg4[%c0_7, %c0_8] : memref<1x96xf32, #tpu.memory_space<vmem>>, vector<1x96xf32>
    %8 = vector.broadcast %7 : vector<1x96xf32> to vector<64x96xf32>
    %9 = arith.addf %6, %8 : vector<64x96xf32>
    %10 = arith.truncf %9 : vector<64x96xf32> to vector<64x96xbf16>
    %11 = vector.extract_strided_slice %10 {offsets = [0, 0], sizes = [64, 32], strides = [1, 1]} : vector<64x96xbf16> to vector<64x32xbf16>
    %c0_9 = arith.constant 0 : index
    %c0_10 = arith.constant 0 : index
    %12 = vector.load %arg6[%c0_9, %c0_10] : memref<64x32xbf16, #tpu.memory_space<vmem>>, vector<64x32xbf16>
    tpu.vector_store %arg6[%c0_9, %c0_10], %11 {strides = array<i32>} : memref<64x32xbf16, #tpu.memory_space<vmem>>, vector<64x32xbf16>,
    %13 = vector.extract_strided_slice %10 {offsets = [0, 32], sizes = [64, 32], strides = [1, 1]} : vector<64x96xbf16> to vector<64x32xbf16>
    %c0_11 = arith.constant 0 : index
    %c0_12 = arith.constant 0 : index
    %14 = vector.load %arg7[%c0_11, %c0_12] : memref<64x32xbf16, #tpu.memory_space<vmem>>, vector<64x32xbf16>
    tpu.vector_store %arg7[%c0_11, %c0_12], %13 {strides = array<i32>} : memref<64x32xbf16, #tpu.memory_space<vmem>>, vector<64x32xbf16>,
    %15 = vector.extract_strided_slice %10 {offsets = [0, 64], sizes = [64, 32], strides = [1, 1]} : vector<64x96xbf16> to vector<64x32xbf16>
    %c0_13 = arith.constant 0 : index
    %c0_14 = arith.constant 0 : index
    %16 = vector.load %arg8[%c0_13, %c0_14] : memref<64x32xbf16, #tpu.memory_space<vmem>>, vector<64x32xbf16>
    tpu.vector_store %arg8[%c0_13, %c0_14], %15 {strides = array<i32>} : memref<64x32xbf16, #tpu.memory_space<vmem>>, vector<64x32xbf16>,
    return
  }
  func.func @transform_0(%arg0: i32) -> (i32, i32) {
    %c0_i32 = arith.constant 0 : i32
    %c0_i32_0 = arith.constant 0 : i32
    return %arg0, %c0_i32 : i32, i32
  }
  func.func @transform_1(%arg0: i32) -> (i32, i32) {
    %c0_i32 = arith.constant 0 : i32
    %c0_i32_0 = arith.constant 0 : i32
    return %arg0, %c0_i32 : i32, i32
  }
  func.func @transform_2(%arg0: i32) -> (i32, i32) {
    %c0_i32 = arith.constant 0 : i32
    %c0_i32_0 = arith.constant 0 : i32
    %c0_i32_1 = arith.constant 0 : i32
    return %c0_i32, %c0_i32_0 : i32, i32
  }
  func.func @transform_3(%arg0: i32) -> (i32, i32) {
    %c0_i32 = arith.constant 0 : i32
    %c0_i32_0 = arith.constant 0 : i32
    %c0_i32_1 = arith.constant 0 : i32
    return %c0_i32, %c0_i32_0 : i32, i32
  }
  func.func @transform_4(%arg0: i32) -> (i32, i32) {
    %c0_i32 = arith.constant 0 : i32
    %c0_i32_0 = arith.constant 0 : i32
    return %arg0, %c0_i32 : i32, i32
  }
  func.func @transform_5(%arg0: i32) -> (i32, i32) {
    %c0_i32 = arith.constant 0 : i32
    %c0_i32_0 = arith.constant 0 : i32
    return %arg0, %c0_i32 : i32, i32
  }
  func.func @transform_6(%arg0: i32) -> (i32, i32) {
    %c0_i32 = arith.constant 0 : i32
    %c0_i32_0 = arith.constant 0 : i32
    return %arg0, %c0_i32 : i32, i32
  }
  func.func @transform_7(%arg0: i32) -> (i32, i32) {
    %c0_i32 = arith.constant 0 : i32
    %c0_i32_0 = arith.constant 0 : i32
    return %arg0, %c0_i32 : i32, i32
  }
}

module attributes {stable_mosaic.version = 11 : i64} {
  func.func @flash_attn_kernel(%arg0: i32, %arg1: i32, %arg2: memref<64x32xbf16, #tpu.memory_space<vmem>>, %arg3: memref<128x32xbf16, #tpu.memory_space<vmem>>, %arg4: memref<128x32xbf16, #tpu.memory_space<vmem>>, %arg5: memref<4x64x128xbf16, #tpu.memory_space<vmem>>, %arg6: memref<64x32xf32, #tpu.memory_space<vmem>>, %arg7: memref<4x64x1xf32, #tpu.memory_space<vmem>>, %arg8: memref<4x64x1xf32, #tpu.memory_space<vmem>>, %arg9: memref<4x64x8xf32, #tpu.memory_space<vmem>>) attributes {dimension_semantics = [#tpu.dimension_semantics<parallel>, #tpu.dimension_semantics<arbitrary>], iteration_bounds = array<i64: 2, 1>, scalar_prefetch = 0 : i64, scratch_operands = 3 : i64, tpu.core_type = #tpu.core_type<tc>, window_params = [{transform_indices = @transform_0, window_bounds = array<i64: 64, 32>}, {transform_indices = @transform_1, window_bounds = array<i64: 128, 32>}, {transform_indices = @transform_2, window_bounds = array<i64: 128, 32>}, {transform_indices = @transform_3, window_bounds = array<i64: 4, 64, 128>}, {transform_indices = @transform_4, window_bounds = array<i64: 64, 32>}]} {
    %c0_i32 = arith.constant 0 : i32
    %0 = arith.cmpi eq, %arg1, %c0_i32 : i32
    %1 = arith.extui %0 : i1 to i32
    %c0_i32_0 = arith.constant 0 : i32
    %2 = arith.cmpi ne, %1, %c0_i32_0 : i32
    scf.if %2 {
      %cst_104 = arith.constant -1.000000e+30 : f32
      %169 = vector.broadcast %cst_104 : f32 to vector<4x64x1xf32>
      %c0_105 = arith.constant 0 : index
      %c0_106 = arith.constant 0 : index
      %c0_107 = arith.constant 0 : index
      %170 = vector.load %arg7[%c0_105, %c0_106, %c0_107] : memref<4x64x1xf32, #tpu.memory_space<vmem>>, vector<4x64x1xf32>
      tpu.vector_store %arg7[%c0_105, %c0_106, %c0_107], %169 {strides = array<i32>} : memref<4x64x1xf32, #tpu.memory_space<vmem>>, vector<4x64x1xf32>,
      %cst_108 = arith.constant 0.000000e+00 : f32
      %171 = vector.broadcast %cst_108 : f32 to vector<4x64x1xf32>
      %c0_109 = arith.constant 0 : index
      %c0_110 = arith.constant 0 : index
      %c0_111 = arith.constant 0 : index
      %172 = vector.load %arg8[%c0_109, %c0_110, %c0_111] : memref<4x64x1xf32, #tpu.memory_space<vmem>>, vector<4x64x1xf32>
      tpu.vector_store %arg8[%c0_109, %c0_110, %c0_111], %171 {strides = array<i32>} : memref<4x64x1xf32, #tpu.memory_space<vmem>>, vector<4x64x1xf32>,
      %cst_112 = arith.constant 0.000000e+00 : f32
      %173 = vector.broadcast %cst_112 : f32 to vector<4x64x8xf32>
      %c0_113 = arith.constant 0 : index
      %c0_114 = arith.constant 0 : index
      %c0_115 = arith.constant 0 : index
      %174 = vector.load %arg9[%c0_113, %c0_114, %c0_115] : memref<4x64x8xf32, #tpu.memory_space<vmem>>, vector<4x64x8xf32>
      tpu.vector_store %arg9[%c0_113, %c0_114, %c0_115], %173 {strides = array<i32>} : memref<4x64x8xf32, #tpu.memory_space<vmem>>, vector<4x64x8xf32>,
    } else {
    }
    %c0 = arith.constant 0 : index
    %c0_1 = arith.constant 0 : index
    %3 = vector.load %arg2[%c0, %c0_1] : memref<64x32xbf16, #tpu.memory_space<vmem>>, vector<64x32xbf16>
    %c0_2 = arith.constant 0 : index
    %c0_3 = arith.constant 0 : index
    %4 = vector.load %arg3[%c0_2, %c0_3] : memref<128x32xbf16, #tpu.memory_space<vmem>>, vector<128x32xbf16>
    %c0_4 = arith.constant 0 : index
    %c0_5 = arith.constant 0 : index
    %5 = vector.load %arg4[%c0_4, %c0_5] : memref<128x32xbf16, #tpu.memory_space<vmem>>, vector<128x32xbf16>
    %6 = vector.extract_strided_slice %3 {offsets = [0, 0], sizes = [64, 8], strides = [1, 1]} : vector<64x32xbf16> to vector<64x8xbf16>
    %7 = vector.extract_strided_slice %4 {offsets = [0, 0], sizes = [128, 8], strides = [1, 1]} : vector<128x32xbf16> to vector<128x8xbf16>
    %8 = vector.extract_strided_slice %5 {offsets = [0, 0], sizes = [128, 8], strides = [1, 1]} : vector<128x32xbf16> to vector<128x8xbf16>
    %cst = arith.constant dense<0.000000e+00> : vector<64x128xf32>
    %9 = tpu.matmul %6, %7, %cst {dimension_numbers = #tpu.dot_dimension_numbers<[1], [1], [0], [0], [0, 0, 1, 0], [], []>} : vector<64x8xbf16>, vector<128x8xbf16>, vector<64x128xf32> -> vector<64x128xf32>
    %c0_6 = arith.constant 0 : index
    %c0_7 = arith.constant 0 : index
    %c0_8 = arith.constant 0 : index
    %10 = vector.load %arg5[%c0_6, %c0_7, %c0_8] : memref<4x64x128xbf16, #tpu.memory_space<vmem>>, vector<1x64x128xbf16>
    %11 = vector.shape_cast %10 : vector<1x64x128xbf16> to vector<64x128xbf16>
    %12 = arith.extf %11 : vector<64x128xbf16> to vector<64x128xf32>
    %13 = arith.addf %9, %12 : vector<64x128xf32>
    %c0_9 = arith.constant 0 : index
    %c0_10 = arith.constant 0 : index
    %c0_11 = arith.constant 0 : index
    %14 = vector.load %arg7[%c0_9, %c0_10, %c0_11] : memref<4x64x1xf32, #tpu.memory_space<vmem>>, vector<1x64x1xf32>
    %15 = vector.shape_cast %14 : vector<1x64x1xf32> to vector<64x1xf32>
    %cst_12 = arith.constant dense<0xFF800000> : vector<64xf32>
    %16 = vector.multi_reduction <maximumf>, %13, %cst_12 [1] : vector<64x128xf32> to vector<64xf32>
    %17 = vector.shape_cast %16 : vector<64xf32> to vector<64x1xf32>
    %18 = arith.maximumf %15, %17 : vector<64x1xf32>
    %19 = arith.subf %15, %18 : vector<64x1xf32>
    %20 = math.exp %19 : vector<64x1xf32>
    %21 = vector.broadcast %18 : vector<64x1xf32> to vector<64x128xf32>
    %22 = arith.subf %13, %21 : vector<64x128xf32>
    %23 = math.exp %22 : vector<64x128xf32>
    %c0_13 = arith.constant 0 : index
    %c0_14 = arith.constant 0 : index
    %c0_15 = arith.constant 0 : index
    %24 = vector.load %arg8[%c0_13, %c0_14, %c0_15] : memref<4x64x1xf32, #tpu.memory_space<vmem>>, vector<1x64x1xf32>
    %25 = vector.shape_cast %24 : vector<1x64x1xf32> to vector<64x1xf32>
    %26 = arith.mulf %20, %25 : vector<64x1xf32>
    %cst_16 = arith.constant dense<0.000000e+00> : vector<64xf32>
    %27 = vector.multi_reduction <add>, %23, %cst_16 [1] : vector<64x128xf32> to vector<64xf32>
    %28 = vector.shape_cast %27 : vector<64xf32> to vector<64x1xf32>
    %29 = arith.addf %26, %28 : vector<64x1xf32>
    %c0_17 = arith.constant 0 : index
    %c0_18 = arith.constant 0 : index
    %c0_19 = arith.constant 0 : index
    %30 = vector.load %arg8[%c0_17, %c0_18, %c0_19] : memref<4x64x1xf32, #tpu.memory_space<vmem>>, vector<1x64x1xf32>
    %31 = vector.shape_cast %30 : vector<1x64x1xf32> to vector<64x1xf32>
    %32 = vector.shape_cast %29 : vector<64x1xf32> to vector<1x64x1xf32>
    tpu.vector_store %arg8[%c0_17, %c0_18, %c0_19], %32 {strides = array<i32>} : memref<4x64x1xf32, #tpu.memory_space<vmem>>, vector<1x64x1xf32>,
    %c0_20 = arith.constant 0 : index
    %c0_21 = arith.constant 0 : index
    %c0_22 = arith.constant 0 : index
    %33 = vector.load %arg9[%c0_20, %c0_21, %c0_22] : memref<4x64x8xf32, #tpu.memory_space<vmem>>, vector<1x64x8xf32>
    %34 = vector.shape_cast %33 : vector<1x64x8xf32> to vector<64x8xf32>
    %35 = vector.broadcast %20 : vector<64x1xf32> to vector<64x8xf32>
    %36 = arith.mulf %35, %34 : vector<64x8xf32>
    %37 = arith.truncf %23 : vector<64x128xf32> to vector<64x128xbf16>
    %cst_23 = arith.constant dense<0.000000e+00> : vector<64x8xf32>
    %38 = tpu.matmul %37, %8, %cst_23 {dimension_numbers = #tpu.dot_dimension_numbers<[1], [0], [0], [1], [0, 0, 1, 1], [], []>} : vector<64x128xbf16>, vector<128x8xbf16>, vector<64x8xf32> -> vector<64x8xf32>
    %39 = arith.addf %36, %38 : vector<64x8xf32>
    %c0_24 = arith.constant 0 : index
    %c0_25 = arith.constant 0 : index
    %c0_26 = arith.constant 0 : index
    %40 = vector.load %arg9[%c0_24, %c0_25, %c0_26] : memref<4x64x8xf32, #tpu.memory_space<vmem>>, vector<1x64x8xf32>
    %41 = vector.shape_cast %40 : vector<1x64x8xf32> to vector<64x8xf32>
    %42 = vector.shape_cast %39 : vector<64x8xf32> to vector<1x64x8xf32>
    tpu.vector_store %arg9[%c0_24, %c0_25, %c0_26], %42 {strides = array<i32>} : memref<4x64x8xf32, #tpu.memory_space<vmem>>, vector<1x64x8xf32>,
    %c0_27 = arith.constant 0 : index
    %c0_28 = arith.constant 0 : index
    %c0_29 = arith.constant 0 : index
    %43 = vector.load %arg7[%c0_27, %c0_28, %c0_29] : memref<4x64x1xf32, #tpu.memory_space<vmem>>, vector<1x64x1xf32>
    %44 = vector.shape_cast %43 : vector<1x64x1xf32> to vector<64x1xf32>
    %45 = vector.shape_cast %18 : vector<64x1xf32> to vector<1x64x1xf32>
    tpu.vector_store %arg7[%c0_27, %c0_28, %c0_29], %45 {strides = array<i32>} : memref<4x64x1xf32, #tpu.memory_space<vmem>>, vector<1x64x1xf32>,
    %46 = vector.extract_strided_slice %3 {offsets = [0, 8], sizes = [64, 8], strides = [1, 1]} : vector<64x32xbf16> to vector<64x8xbf16>
    %47 = vector.extract_strided_slice %4 {offsets = [0, 8], sizes = [128, 8], strides = [1, 1]} : vector<128x32xbf16> to vector<128x8xbf16>
    %48 = vector.extract_strided_slice %5 {offsets = [0, 8], sizes = [128, 8], strides = [1, 1]} : vector<128x32xbf16> to vector<128x8xbf16>
    %cst_30 = arith.constant dense<0.000000e+00> : vector<64x128xf32>
    %49 = tpu.matmul %46, %47, %cst_30 {dimension_numbers = #tpu.dot_dimension_numbers<[1], [1], [0], [0], [0, 0, 1, 0], [], []>} : vector<64x8xbf16>, vector<128x8xbf16>, vector<64x128xf32> -> vector<64x128xf32>
    %c1 = arith.constant 1 : index
    %c0_31 = arith.constant 0 : index
    %c0_32 = arith.constant 0 : index
    %50 = vector.load %arg5[%c1, %c0_31, %c0_32] : memref<4x64x128xbf16, #tpu.memory_space<vmem>>, vector<1x64x128xbf16>
    %51 = vector.shape_cast %50 : vector<1x64x128xbf16> to vector<64x128xbf16>
    %52 = arith.extf %51 : vector<64x128xbf16> to vector<64x128xf32>
    %53 = arith.addf %49, %52 : vector<64x128xf32>
    %c1_33 = arith.constant 1 : index
    %c0_34 = arith.constant 0 : index
    %c0_35 = arith.constant 0 : index
    %54 = vector.load %arg7[%c1_33, %c0_34, %c0_35] : memref<4x64x1xf32, #tpu.memory_space<vmem>>, vector<1x64x1xf32>
    %55 = vector.shape_cast %54 : vector<1x64x1xf32> to vector<64x1xf32>
    %cst_36 = arith.constant dense<0xFF800000> : vector<64xf32>
    %56 = vector.multi_reduction <maximumf>, %53, %cst_36 [1] : vector<64x128xf32> to vector<64xf32>
    %57 = vector.shape_cast %56 : vector<64xf32> to vector<64x1xf32>
    %58 = arith.maximumf %55, %57 : vector<64x1xf32>
    %59 = arith.subf %55, %58 : vector<64x1xf32>
    %60 = math.exp %59 : vector<64x1xf32>
    %61 = vector.broadcast %58 : vector<64x1xf32> to vector<64x128xf32>
    %62 = arith.subf %53, %61 : vector<64x128xf32>
    %63 = math.exp %62 : vector<64x128xf32>
    %c1_37 = arith.constant 1 : index
    %c0_38 = arith.constant 0 : index
    %c0_39 = arith.constant 0 : index
    %64 = vector.load %arg8[%c1_37, %c0_38, %c0_39] : memref<4x64x1xf32, #tpu.memory_space<vmem>>, vector<1x64x1xf32>
    %65 = vector.shape_cast %64 : vector<1x64x1xf32> to vector<64x1xf32>
    %66 = arith.mulf %60, %65 : vector<64x1xf32>
    %cst_40 = arith.constant dense<0.000000e+00> : vector<64xf32>
    %67 = vector.multi_reduction <add>, %63, %cst_40 [1] : vector<64x128xf32> to vector<64xf32>
    %68 = vector.shape_cast %67 : vector<64xf32> to vector<64x1xf32>
    %69 = arith.addf %66, %68 : vector<64x1xf32>
    %c1_41 = arith.constant 1 : index
    %c0_42 = arith.constant 0 : index
    %c0_43 = arith.constant 0 : index
    %70 = vector.load %arg8[%c1_41, %c0_42, %c0_43] : memref<4x64x1xf32, #tpu.memory_space<vmem>>, vector<1x64x1xf32>
    %71 = vector.shape_cast %70 : vector<1x64x1xf32> to vector<64x1xf32>
    %72 = vector.shape_cast %69 : vector<64x1xf32> to vector<1x64x1xf32>
    tpu.vector_store %arg8[%c1_41, %c0_42, %c0_43], %72 {strides = array<i32>} : memref<4x64x1xf32, #tpu.memory_space<vmem>>, vector<1x64x1xf32>,
    %c1_44 = arith.constant 1 : index
    %c0_45 = arith.constant 0 : index
    %c0_46 = arith.constant 0 : index
    %73 = vector.load %arg9[%c1_44, %c0_45, %c0_46] : memref<4x64x8xf32, #tpu.memory_space<vmem>>, vector<1x64x8xf32>
    %74 = vector.shape_cast %73 : vector<1x64x8xf32> to vector<64x8xf32>
    %75 = vector.broadcast %60 : vector<64x1xf32> to vector<64x8xf32>
    %76 = arith.mulf %75, %74 : vector<64x8xf32>
    %77 = arith.truncf %63 : vector<64x128xf32> to vector<64x128xbf16>
    %cst_47 = arith.constant dense<0.000000e+00> : vector<64x8xf32>
    %78 = tpu.matmul %77, %48, %cst_47 {dimension_numbers = #tpu.dot_dimension_numbers<[1], [0], [0], [1], [0, 0, 1, 1], [], []>} : vector<64x128xbf16>, vector<128x8xbf16>, vector<64x8xf32> -> vector<64x8xf32>
    %79 = arith.addf %76, %78 : vector<64x8xf32>
    %c1_48 = arith.constant 1 : index
    %c0_49 = arith.constant 0 : index
    %c0_50 = arith.constant 0 : index
    %80 = vector.load %arg9[%c1_48, %c0_49, %c0_50] : memref<4x64x8xf32, #tpu.memory_space<vmem>>, vector<1x64x8xf32>
    %81 = vector.shape_cast %80 : vector<1x64x8xf32> to vector<64x8xf32>
    %82 = vector.shape_cast %79 : vector<64x8xf32> to vector<1x64x8xf32>
    tpu.vector_store %arg9[%c1_48, %c0_49, %c0_50], %82 {strides = array<i32>} : memref<4x64x8xf32, #tpu.memory_space<vmem>>, vector<1x64x8xf32>,
    %c1_51 = arith.constant 1 : index
    %c0_52 = arith.constant 0 : index
    %c0_53 = arith.constant 0 : index
    %83 = vector.load %arg7[%c1_51, %c0_52, %c0_53] : memref<4x64x1xf32, #tpu.memory_space<vmem>>, vector<1x64x1xf32>
    %84 = vector.shape_cast %83 : vector<1x64x1xf32> to vector<64x1xf32>
    %85 = vector.shape_cast %58 : vector<64x1xf32> to vector<1x64x1xf32>
    tpu.vector_store %arg7[%c1_51, %c0_52, %c0_53], %85 {strides = array<i32>} : memref<4x64x1xf32, #tpu.memory_space<vmem>>, vector<1x64x1xf32>,
    %86 = vector.extract_strided_slice %3 {offsets = [0, 16], sizes = [64, 8], strides = [1, 1]} : vector<64x32xbf16> to vector<64x8xbf16>
    %87 = vector.extract_strided_slice %4 {offsets = [0, 16], sizes = [128, 8], strides = [1, 1]} : vector<128x32xbf16> to vector<128x8xbf16>
    %88 = vector.extract_strided_slice %5 {offsets = [0, 16], sizes = [128, 8], strides = [1, 1]} : vector<128x32xbf16> to vector<128x8xbf16>
    %cst_54 = arith.constant dense<0.000000e+00> : vector<64x128xf32>
    %89 = tpu.matmul %86, %87, %cst_54 {dimension_numbers = #tpu.dot_dimension_numbers<[1], [1], [0], [0], [0, 0, 1, 0], [], []>} : vector<64x8xbf16>, vector<128x8xbf16>, vector<64x128xf32> -> vector<64x128xf32>
    %c2 = arith.constant 2 : index
    %c0_55 = arith.constant 0 : index
    %c0_56 = arith.constant 0 : index
    %90 = vector.load %arg5[%c2, %c0_55, %c0_56] : memref<4x64x128xbf16, #tpu.memory_space<vmem>>, vector<1x64x128xbf16>
    %91 = vector.shape_cast %90 : vector<1x64x128xbf16> to vector<64x128xbf16>
    %92 = arith.extf %91 : vector<64x128xbf16> to vector<64x128xf32>
    %93 = arith.addf %89, %92 : vector<64x128xf32>
    %c2_57 = arith.constant 2 : index
    %c0_58 = arith.constant 0 : index
    %c0_59 = arith.constant 0 : index
    %94 = vector.load %arg7[%c2_57, %c0_58, %c0_59] : memref<4x64x1xf32, #tpu.memory_space<vmem>>, vector<1x64x1xf32>
    %95 = vector.shape_cast %94 : vector<1x64x1xf32> to vector<64x1xf32>
    %cst_60 = arith.constant dense<0xFF800000> : vector<64xf32>
    %96 = vector.multi_reduction <maximumf>, %93, %cst_60 [1] : vector<64x128xf32> to vector<64xf32>
    %97 = vector.shape_cast %96 : vector<64xf32> to vector<64x1xf32>
    %98 = arith.maximumf %95, %97 : vector<64x1xf32>
    %99 = arith.subf %95, %98 : vector<64x1xf32>
    %100 = math.exp %99 : vector<64x1xf32>
    %101 = vector.broadcast %98 : vector<64x1xf32> to vector<64x128xf32>
    %102 = arith.subf %93, %101 : vector<64x128xf32>
    %103 = math.exp %102 : vector<64x128xf32>
    %c2_61 = arith.constant 2 : index
    %c0_62 = arith.constant 0 : index
    %c0_63 = arith.constant 0 : index
    %104 = vector.load %arg8[%c2_61, %c0_62, %c0_63] : memref<4x64x1xf32, #tpu.memory_space<vmem>>, vector<1x64x1xf32>
    %105 = vector.shape_cast %104 : vector<1x64x1xf32> to vector<64x1xf32>
    %106 = arith.mulf %100, %105 : vector<64x1xf32>
    %cst_64 = arith.constant dense<0.000000e+00> : vector<64xf32>
    %107 = vector.multi_reduction <add>, %103, %cst_64 [1] : vector<64x128xf32> to vector<64xf32>
    %108 = vector.shape_cast %107 : vector<64xf32> to vector<64x1xf32>
    %109 = arith.addf %106, %108 : vector<64x1xf32>
    %c2_65 = arith.constant 2 : index
    %c0_66 = arith.constant 0 : index
    %c0_67 = arith.constant 0 : index
    %110 = vector.load %arg8[%c2_65, %c0_66, %c0_67] : memref<4x64x1xf32, #tpu.memory_space<vmem>>, vector<1x64x1xf32>
    %111 = vector.shape_cast %110 : vector<1x64x1xf32> to vector<64x1xf32>
    %112 = vector.shape_cast %109 : vector<64x1xf32> to vector<1x64x1xf32>
    tpu.vector_store %arg8[%c2_65, %c0_66, %c0_67], %112 {strides = array<i32>} : memref<4x64x1xf32, #tpu.memory_space<vmem>>, vector<1x64x1xf32>,
    %c2_68 = arith.constant 2 : index
    %c0_69 = arith.constant 0 : index
    %c0_70 = arith.constant 0 : index
    %113 = vector.load %arg9[%c2_68, %c0_69, %c0_70] : memref<4x64x8xf32, #tpu.memory_space<vmem>>, vector<1x64x8xf32>
    %114 = vector.shape_cast %113 : vector<1x64x8xf32> to vector<64x8xf32>
    %115 = vector.broadcast %100 : vector<64x1xf32> to vector<64x8xf32>
    %116 = arith.mulf %115, %114 : vector<64x8xf32>
    %117 = arith.truncf %103 : vector<64x128xf32> to vector<64x128xbf16>
    %cst_71 = arith.constant dense<0.000000e+00> : vector<64x8xf32>
    %118 = tpu.matmul %117, %88, %cst_71 {dimension_numbers = #tpu.dot_dimension_numbers<[1], [0], [0], [1], [0, 0, 1, 1], [], []>} : vector<64x128xbf16>, vector<128x8xbf16>, vector<64x8xf32> -> vector<64x8xf32>
    %119 = arith.addf %116, %118 : vector<64x8xf32>
    %c2_72 = arith.constant 2 : index
    %c0_73 = arith.constant 0 : index
    %c0_74 = arith.constant 0 : index
    %120 = vector.load %arg9[%c2_72, %c0_73, %c0_74] : memref<4x64x8xf32, #tpu.memory_space<vmem>>, vector<1x64x8xf32>
    %121 = vector.shape_cast %120 : vector<1x64x8xf32> to vector<64x8xf32>
    %122 = vector.shape_cast %119 : vector<64x8xf32> to vector<1x64x8xf32>
    tpu.vector_store %arg9[%c2_72, %c0_73, %c0_74], %122 {strides = array<i32>} : memref<4x64x8xf32, #tpu.memory_space<vmem>>, vector<1x64x8xf32>,
    %c2_75 = arith.constant 2 : index
    %c0_76 = arith.constant 0 : index
    %c0_77 = arith.constant 0 : index
    %123 = vector.load %arg7[%c2_75, %c0_76, %c0_77] : memref<4x64x1xf32, #tpu.memory_space<vmem>>, vector<1x64x1xf32>
    %124 = vector.shape_cast %123 : vector<1x64x1xf32> to vector<64x1xf32>
    %125 = vector.shape_cast %98 : vector<64x1xf32> to vector<1x64x1xf32>
    tpu.vector_store %arg7[%c2_75, %c0_76, %c0_77], %125 {strides = array<i32>} : memref<4x64x1xf32, #tpu.memory_space<vmem>>, vector<1x64x1xf32>,
    %126 = vector.extract_strided_slice %3 {offsets = [0, 24], sizes = [64, 8], strides = [1, 1]} : vector<64x32xbf16> to vector<64x8xbf16>
    %127 = vector.extract_strided_slice %4 {offsets = [0, 24], sizes = [128, 8], strides = [1, 1]} : vector<128x32xbf16> to vector<128x8xbf16>
    %128 = vector.extract_strided_slice %5 {offsets = [0, 24], sizes = [128, 8], strides = [1, 1]} : vector<128x32xbf16> to vector<128x8xbf16>
    %cst_78 = arith.constant dense<0.000000e+00> : vector<64x128xf32>
    %129 = tpu.matmul %126, %127, %cst_78 {dimension_numbers = #tpu.dot_dimension_numbers<[1], [1], [0], [0], [0, 0, 1, 0], [], []>} : vector<64x8xbf16>, vector<128x8xbf16>, vector<64x128xf32> -> vector<64x128xf32>
    %c3 = arith.constant 3 : index
    %c0_79 = arith.constant 0 : index
    %c0_80 = arith.constant 0 : index
    %130 = vector.load %arg5[%c3, %c0_79, %c0_80] : memref<4x64x128xbf16, #tpu.memory_space<vmem>>, vector<1x64x128xbf16>
    %131 = vector.shape_cast %130 : vector<1x64x128xbf16> to vector<64x128xbf16>
    %132 = arith.extf %131 : vector<64x128xbf16> to vector<64x128xf32>
    %133 = arith.addf %129, %132 : vector<64x128xf32>
    %c3_81 = arith.constant 3 : index
    %c0_82 = arith.constant 0 : index
    %c0_83 = arith.constant 0 : index
    %134 = vector.load %arg7[%c3_81, %c0_82, %c0_83] : memref<4x64x1xf32, #tpu.memory_space<vmem>>, vector<1x64x1xf32>
    %135 = vector.shape_cast %134 : vector<1x64x1xf32> to vector<64x1xf32>
    %cst_84 = arith.constant dense<0xFF800000> : vector<64xf32>
    %136 = vector.multi_reduction <maximumf>, %133, %cst_84 [1] : vector<64x128xf32> to vector<64xf32>
    %137 = vector.shape_cast %136 : vector<64xf32> to vector<64x1xf32>
    %138 = arith.maximumf %135, %137 : vector<64x1xf32>
    %139 = arith.subf %135, %138 : vector<64x1xf32>
    %140 = math.exp %139 : vector<64x1xf32>
    %141 = vector.broadcast %138 : vector<64x1xf32> to vector<64x128xf32>
    %142 = arith.subf %133, %141 : vector<64x128xf32>
    %143 = math.exp %142 : vector<64x128xf32>
    %c3_85 = arith.constant 3 : index
    %c0_86 = arith.constant 0 : index
    %c0_87 = arith.constant 0 : index
    %144 = vector.load %arg8[%c3_85, %c0_86, %c0_87] : memref<4x64x1xf32, #tpu.memory_space<vmem>>, vector<1x64x1xf32>
    %145 = vector.shape_cast %144 : vector<1x64x1xf32> to vector<64x1xf32>
    %146 = arith.mulf %140, %145 : vector<64x1xf32>
    %cst_88 = arith.constant dense<0.000000e+00> : vector<64xf32>
    %147 = vector.multi_reduction <add>, %143, %cst_88 [1] : vector<64x128xf32> to vector<64xf32>
    %148 = vector.shape_cast %147 : vector<64xf32> to vector<64x1xf32>
    %149 = arith.addf %146, %148 : vector<64x1xf32>
    %c3_89 = arith.constant 3 : index
    %c0_90 = arith.constant 0 : index
    %c0_91 = arith.constant 0 : index
    %150 = vector.load %arg8[%c3_89, %c0_90, %c0_91] : memref<4x64x1xf32, #tpu.memory_space<vmem>>, vector<1x64x1xf32>
    %151 = vector.shape_cast %150 : vector<1x64x1xf32> to vector<64x1xf32>
    %152 = vector.shape_cast %149 : vector<64x1xf32> to vector<1x64x1xf32>
    tpu.vector_store %arg8[%c3_89, %c0_90, %c0_91], %152 {strides = array<i32>} : memref<4x64x1xf32, #tpu.memory_space<vmem>>, vector<1x64x1xf32>,
    %c3_92 = arith.constant 3 : index
    %c0_93 = arith.constant 0 : index
    %c0_94 = arith.constant 0 : index
    %153 = vector.load %arg9[%c3_92, %c0_93, %c0_94] : memref<4x64x8xf32, #tpu.memory_space<vmem>>, vector<1x64x8xf32>
    %154 = vector.shape_cast %153 : vector<1x64x8xf32> to vector<64x8xf32>
    %155 = vector.broadcast %140 : vector<64x1xf32> to vector<64x8xf32>
    %156 = arith.mulf %155, %154 : vector<64x8xf32>
    %157 = arith.truncf %143 : vector<64x128xf32> to vector<64x128xbf16>
    %cst_95 = arith.constant dense<0.000000e+00> : vector<64x8xf32>
    %158 = tpu.matmul %157, %128, %cst_95 {dimension_numbers = #tpu.dot_dimension_numbers<[1], [0], [0], [1], [0, 0, 1, 1], [], []>} : vector<64x128xbf16>, vector<128x8xbf16>, vector<64x8xf32> -> vector<64x8xf32>
    %159 = arith.addf %156, %158 : vector<64x8xf32>
    %c3_96 = arith.constant 3 : index
    %c0_97 = arith.constant 0 : index
    %c0_98 = arith.constant 0 : index
    %160 = vector.load %arg9[%c3_96, %c0_97, %c0_98] : memref<4x64x8xf32, #tpu.memory_space<vmem>>, vector<1x64x8xf32>
    %161 = vector.shape_cast %160 : vector<1x64x8xf32> to vector<64x8xf32>
    %162 = vector.shape_cast %159 : vector<64x8xf32> to vector<1x64x8xf32>
    tpu.vector_store %arg9[%c3_96, %c0_97, %c0_98], %162 {strides = array<i32>} : memref<4x64x8xf32, #tpu.memory_space<vmem>>, vector<1x64x8xf32>,
    %c3_99 = arith.constant 3 : index
    %c0_100 = arith.constant 0 : index
    %c0_101 = arith.constant 0 : index
    %163 = vector.load %arg7[%c3_99, %c0_100, %c0_101] : memref<4x64x1xf32, #tpu.memory_space<vmem>>, vector<1x64x1xf32>
    %164 = vector.shape_cast %163 : vector<1x64x1xf32> to vector<64x1xf32>
    %165 = vector.shape_cast %138 : vector<64x1xf32> to vector<1x64x1xf32>
    tpu.vector_store %arg7[%c3_99, %c0_100, %c0_101], %165 {strides = array<i32>} : memref<4x64x1xf32, #tpu.memory_space<vmem>>, vector<1x64x1xf32>,
    %c0_i32_102 = arith.constant 0 : i32
    %166 = arith.cmpi eq, %arg1, %c0_i32_102 : i32
    %167 = arith.extui %166 : i1 to i32
    %c0_i32_103 = arith.constant 0 : i32
    %168 = arith.cmpi ne, %167, %c0_i32_103 : i32
    scf.if %168 {
      %c0_104 = arith.constant 0 : index
      %c0_105 = arith.constant 0 : index
      %c0_106 = arith.constant 0 : index
      %169 = vector.load %arg8[%c0_104, %c0_105, %c0_106] : memref<4x64x1xf32, #tpu.memory_space<vmem>>, vector<1x64x1xf32>
      %170 = vector.shape_cast %169 : vector<1x64x1xf32> to vector<64x1xf32>
      %cst_107 = arith.constant 0.000000e+00 : f32
      %171 = vector.broadcast %cst_107 : f32 to vector<64x1xf32>
      %172 = arith.cmpf oeq, %170, %171 : vector<64x1xf32>
      %cst_108 = arith.constant 1.000000e+00 : f32
      %173 = vector.broadcast %cst_108 : f32 to vector<64x1xf32>
      %174 = arith.select %172, %173, %170 : vector<64x1xi1>, vector<64x1xf32>
      %c0_109 = arith.constant 0 : index
      %c0_110 = arith.constant 0 : index
      %c0_111 = arith.constant 0 : index
      %175 = vector.load %arg9[%c0_109, %c0_110, %c0_111] : memref<4x64x8xf32, #tpu.memory_space<vmem>>, vector<1x64x8xf32>
      %176 = vector.shape_cast %175 : vector<1x64x8xf32> to vector<64x8xf32>
      %177 = vector.broadcast %174 : vector<64x1xf32> to vector<64x8xf32>
      %178 = arith.divf %176, %177 : vector<64x8xf32>
      %c1_112 = arith.constant 1 : index
      %c0_113 = arith.constant 0 : index
      %c0_114 = arith.constant 0 : index
      %179 = vector.load %arg8[%c1_112, %c0_113, %c0_114] : memref<4x64x1xf32, #tpu.memory_space<vmem>>, vector<1x64x1xf32>
      %180 = vector.shape_cast %179 : vector<1x64x1xf32> to vector<64x1xf32>
      %cst_115 = arith.constant 0.000000e+00 : f32
      %181 = vector.broadcast %cst_115 : f32 to vector<64x1xf32>
      %182 = arith.cmpf oeq, %180, %181 : vector<64x1xf32>
      %cst_116 = arith.constant 1.000000e+00 : f32
      %183 = vector.broadcast %cst_116 : f32 to vector<64x1xf32>
      %184 = arith.select %182, %183, %180 : vector<64x1xi1>, vector<64x1xf32>
      %c1_117 = arith.constant 1 : index
      %c0_118 = arith.constant 0 : index
      %c0_119 = arith.constant 0 : index
      %185 = vector.load %arg9[%c1_117, %c0_118, %c0_119] : memref<4x64x8xf32, #tpu.memory_space<vmem>>, vector<1x64x8xf32>
      %186 = vector.shape_cast %185 : vector<1x64x8xf32> to vector<64x8xf32>
      %187 = vector.broadcast %184 : vector<64x1xf32> to vector<64x8xf32>
      %188 = arith.divf %186, %187 : vector<64x8xf32>
      %c2_120 = arith.constant 2 : index
      %c0_121 = arith.constant 0 : index
      %c0_122 = arith.constant 0 : index
      %189 = vector.load %arg8[%c2_120, %c0_121, %c0_122] : memref<4x64x1xf32, #tpu.memory_space<vmem>>, vector<1x64x1xf32>
      %190 = vector.shape_cast %189 : vector<1x64x1xf32> to vector<64x1xf32>
      %cst_123 = arith.constant 0.000000e+00 : f32
      %191 = vector.broadcast %cst_123 : f32 to vector<64x1xf32>
      %192 = arith.cmpf oeq, %190, %191 : vector<64x1xf32>
      %cst_124 = arith.constant 1.000000e+00 : f32
      %193 = vector.broadcast %cst_124 : f32 to vector<64x1xf32>
      %194 = arith.select %192, %193, %190 : vector<64x1xi1>, vector<64x1xf32>
      %c2_125 = arith.constant 2 : index
      %c0_126 = arith.constant 0 : index
      %c0_127 = arith.constant 0 : index
      %195 = vector.load %arg9[%c2_125, %c0_126, %c0_127] : memref<4x64x8xf32, #tpu.memory_space<vmem>>, vector<1x64x8xf32>
      %196 = vector.shape_cast %195 : vector<1x64x8xf32> to vector<64x8xf32>
      %197 = vector.broadcast %194 : vector<64x1xf32> to vector<64x8xf32>
      %198 = arith.divf %196, %197 : vector<64x8xf32>
      %c3_128 = arith.constant 3 : index
      %c0_129 = arith.constant 0 : index
      %c0_130 = arith.constant 0 : index
      %199 = vector.load %arg8[%c3_128, %c0_129, %c0_130] : memref<4x64x1xf32, #tpu.memory_space<vmem>>, vector<1x64x1xf32>
      %200 = vector.shape_cast %199 : vector<1x64x1xf32> to vector<64x1xf32>
      %cst_131 = arith.constant 0.000000e+00 : f32
      %201 = vector.broadcast %cst_131 : f32 to vector<64x1xf32>
      %202 = arith.cmpf oeq, %200, %201 : vector<64x1xf32>
      %cst_132 = arith.constant 1.000000e+00 : f32
      %203 = vector.broadcast %cst_132 : f32 to vector<64x1xf32>
      %204 = arith.select %202, %203, %200 : vector<64x1xi1>, vector<64x1xf32>
      %c3_133 = arith.constant 3 : index
      %c0_134 = arith.constant 0 : index
      %c0_135 = arith.constant 0 : index
      %205 = vector.load %arg9[%c3_133, %c0_134, %c0_135] : memref<4x64x8xf32, #tpu.memory_space<vmem>>, vector<1x64x8xf32>
      %206 = vector.shape_cast %205 : vector<1x64x8xf32> to vector<64x8xf32>
      %207 = vector.broadcast %204 : vector<64x1xf32> to vector<64x8xf32>
      %208 = arith.divf %206, %207 : vector<64x8xf32>
      %209 = tpu.concatenate %178, %188, %198, %208 in 1 : vector<64x8xf32>, vector<64x8xf32>, vector<64x8xf32>, vector<64x8xf32> -> vector<64x32xf32>
      %c0_136 = arith.constant 0 : index
      %c0_137 = arith.constant 0 : index
      %210 = vector.load %arg6[%c0_136, %c0_137] : memref<64x32xf32, #tpu.memory_space<vmem>>, vector<64x32xf32>
      tpu.vector_store %arg6[%c0_136, %c0_137], %209 {strides = array<i32>} : memref<64x32xf32, #tpu.memory_space<vmem>>, vector<64x32xf32>,
    } else {
    }
    return
  }
  func.func @transform_0(%arg0: i32, %arg1: i32) -> (i32, i32) {
    %c0_i32 = arith.constant 0 : i32
    %c0_i32_0 = arith.constant 0 : i32
    return %arg0, %c0_i32 : i32, i32
  }
  func.func @transform_1(%arg0: i32, %arg1: i32) -> (i32, i32) {
    %c0_i32 = arith.constant 0 : i32
    %c0_i32_0 = arith.constant 0 : i32
    return %arg1, %c0_i32 : i32, i32
  }
  func.func @transform_2(%arg0: i32, %arg1: i32) -> (i32, i32) {
    %c0_i32 = arith.constant 0 : i32
    %c0_i32_0 = arith.constant 0 : i32
    return %arg1, %c0_i32 : i32, i32
  }
  func.func @transform_3(%arg0: i32, %arg1: i32) -> (i32, i32, i32) {
    %c0_i32 = arith.constant 0 : i32
    %c0_i32_0 = arith.constant 0 : i32
    return %c0_i32, %arg0, %arg1 : i32, i32, i32
  }
  func.func @transform_4(%arg0: i32, %arg1: i32) -> (i32, i32) {
    %c0_i32 = arith.constant 0 : i32
    %c0_i32_0 = arith.constant 0 : i32
    return %arg0, %c0_i32 : i32, i32
  }
}

module attributes {stable_mosaic.version = 11 : i64} {
  func.func @out_ffn_kernel(%arg0: i32, %arg1: memref<64x32xf32, #tpu.memory_space<vmem>>, %arg2: memref<64x32xf32, #tpu.memory_space<vmem>>, %arg3: memref<32x32xf32, #tpu.memory_space<vmem>>, %arg4: memref<1x32xf32, #tpu.memory_space<vmem>>, %arg5: memref<1x32xf32, #tpu.memory_space<vmem>>, %arg6: memref<1x32xf32, #tpu.memory_space<vmem>>, %arg7: memref<32x64xf32, #tpu.memory_space<vmem>>, %arg8: memref<1x64xf32, #tpu.memory_space<vmem>>, %arg9: memref<64x32xf32, #tpu.memory_space<vmem>>, %arg10: memref<1x32xf32, #tpu.memory_space<vmem>>, %arg11: memref<1x32xf32, #tpu.memory_space<vmem>>, %arg12: memref<1x32xf32, #tpu.memory_space<vmem>>, %arg13: memref<64x32xf32, #tpu.memory_space<vmem>>) attributes {dimension_semantics = [#tpu.dimension_semantics<parallel>], iteration_bounds = array<i64: 2>, scalar_prefetch = 0 : i64, scratch_operands = 0 : i64, tpu.core_type = #tpu.core_type<tc>, window_params = [{transform_indices = @transform_0, window_bounds = array<i64: 64, 32>}, {transform_indices = @transform_1, window_bounds = array<i64: 64, 32>}, {pipeline_mode = #tpu.pipeline_mode<synchronous>, transform_indices = @transform_2, window_bounds = array<i64: 32, 32>}, {pipeline_mode = #tpu.pipeline_mode<synchronous>, transform_indices = @transform_3, window_bounds = array<i64: 1, 32>}, {pipeline_mode = #tpu.pipeline_mode<synchronous>, transform_indices = @transform_4, window_bounds = array<i64: 1, 32>}, {pipeline_mode = #tpu.pipeline_mode<synchronous>, transform_indices = @transform_5, window_bounds = array<i64: 1, 32>}, {pipeline_mode = #tpu.pipeline_mode<synchronous>, transform_indices = @transform_6, window_bounds = array<i64: 32, 64>}, {pipeline_mode = #tpu.pipeline_mode<synchronous>, transform_indices = @transform_7, window_bounds = array<i64: 1, 64>}, {pipeline_mode = #tpu.pipeline_mode<synchronous>, transform_indices = @transform_8, window_bounds = array<i64: 64, 32>}, {pipeline_mode = #tpu.pipeline_mode<synchronous>, transform_indices = @transform_9, window_bounds = array<i64: 1, 32>}, {pipeline_mode = #tpu.pipeline_mode<synchronous>, transform_indices = @transform_10, window_bounds = array<i64: 1, 32>}, {pipeline_mode = #tpu.pipeline_mode<synchronous>, transform_indices = @transform_11, window_bounds = array<i64: 1, 32>}, {transform_indices = @transform_12, window_bounds = array<i64: 64, 32>}]} {
    %c0 = arith.constant 0 : index
    %c0_0 = arith.constant 0 : index
    %0 = vector.load %arg1[%c0, %c0_0] : memref<64x32xf32, #tpu.memory_space<vmem>>, vector<64x32xf32>
    %c0_1 = arith.constant 0 : index
    %c0_2 = arith.constant 0 : index
    %1 = vector.load %arg3[%c0_1, %c0_2] : memref<32x32xf32, #tpu.memory_space<vmem>>, vector<32x32xf32>
    %cst = arith.constant dense<0.000000e+00> : vector<64x32xf32>
    %2 = tpu.matmul %0, %1, %cst {dimension_numbers = #tpu.dot_dimension_numbers<[1], [0], [0], [1], [0, 0, 1, 1], [], []>} : vector<64x32xf32>, vector<32x32xf32>, vector<64x32xf32> -> vector<64x32xf32>
    %c0_3 = arith.constant 0 : index
    %c0_4 = arith.constant 0 : index
    %3 = vector.load %arg4[%c0_3, %c0_4] : memref<1x32xf32, #tpu.memory_space<vmem>>, vector<1x32xf32>
    %4 = vector.broadcast %3 : vector<1x32xf32> to vector<64x32xf32>
    %5 = arith.addf %2, %4 : vector<64x32xf32>
    %c0_5 = arith.constant 0 : index
    %c0_6 = arith.constant 0 : index
    %6 = vector.load %arg2[%c0_5, %c0_6] : memref<64x32xf32, #tpu.memory_space<vmem>>, vector<64x32xf32>
    %7 = arith.addf %6, %5 : vector<64x32xf32>
    %c0_7 = arith.constant 0 : index
    %c0_8 = arith.constant 0 : index
    %8 = vector.load %arg5[%c0_7, %c0_8] : memref<1x32xf32, #tpu.memory_space<vmem>>, vector<1x32xf32>
    %c0_9 = arith.constant 0 : index
    %c0_10 = arith.constant 0 : index
    %9 = vector.load %arg6[%c0_9, %c0_10] : memref<1x32xf32, #tpu.memory_space<vmem>>, vector<1x32xf32>
    %cst_11 = arith.constant dense<0.000000e+00> : vector<64xf32>
    %10 = vector.multi_reduction <add>, %7, %cst_11 [1] : vector<64x32xf32> to vector<64xf32>
    %11 = vector.shape_cast %10 : vector<64xf32> to vector<64x1xf32>
    %cst_12 = arith.constant 3.200000e+01 : f32
    %12 = vector.broadcast %cst_12 : f32 to vector<64x1xf32>
    %13 = arith.divf %11, %12 : vector<64x1xf32>
    %14 = vector.broadcast %13 : vector<64x1xf32> to vector<64x32xf32>
    %15 = arith.subf %7, %14 : vector<64x32xf32>
    %16 = arith.mulf %15, %15 : vector<64x32xf32>
    %cst_13 = arith.constant dense<0.000000e+00> : vector<64xf32>
    %17 = vector.multi_reduction <add>, %16, %cst_13 [1] : vector<64x32xf32> to vector<64xf32>
    %18 = vector.shape_cast %17 : vector<64xf32> to vector<64x1xf32>
    %cst_14 = arith.constant 3.200000e+01 : f32
    %19 = vector.broadcast %cst_14 : f32 to vector<64x1xf32>
    %20 = arith.divf %18, %19 : vector<64x1xf32>
    %cst_15 = arith.constant 9.99999974E-6 : f32
    %21 = vector.broadcast %cst_15 : f32 to vector<64x1xf32>
    %22 = arith.addf %20, %21 : vector<64x1xf32>
    %23 = math.rsqrt %22 : vector<64x1xf32>
    %24 = vector.broadcast %23 : vector<64x1xf32> to vector<64x32xf32>
    %25 = arith.mulf %15, %24 : vector<64x32xf32>
    %26 = vector.broadcast %8 : vector<1x32xf32> to vector<64x32xf32>
    %27 = arith.mulf %25, %26 : vector<64x32xf32>
    %28 = vector.broadcast %9 : vector<1x32xf32> to vector<64x32xf32>
    %29 = arith.addf %27, %28 : vector<64x32xf32>
    %c0_16 = arith.constant 0 : index
    %c0_17 = arith.constant 0 : index
    %30 = vector.load %arg7[%c0_16, %c0_17] : memref<32x64xf32, #tpu.memory_space<vmem>>, vector<32x64xf32>
    %cst_18 = arith.constant dense<0.000000e+00> : vector<64x64xf32>
    %31 = tpu.matmul %29, %30, %cst_18 {dimension_numbers = #tpu.dot_dimension_numbers<[1], [0], [0], [1], [0, 0, 1, 1], [], []>} : vector<64x32xf32>, vector<32x64xf32>, vector<64x64xf32> -> vector<64x64xf32>
    %c0_19 = arith.constant 0 : index
    %c0_20 = arith.constant 0 : index
    %32 = vector.load %arg8[%c0_19, %c0_20] : memref<1x64xf32, #tpu.memory_space<vmem>>, vector<1x64xf32>
    %33 = vector.broadcast %32 : vector<1x64xf32> to vector<64x64xf32>
    %34 = arith.addf %31, %33 : vector<64x64xf32>
    %cst_21 = arith.constant 0.000000e+00 : f32
    %35 = vector.broadcast %cst_21 : f32 to vector<64x64xf32>
    %36 = arith.maximumf %34, %35 : vector<64x64xf32>
    %c0_22 = arith.constant 0 : index
    %c0_23 = arith.constant 0 : index
    %37 = vector.load %arg9[%c0_22, %c0_23] : memref<64x32xf32, #tpu.memory_space<vmem>>, vector<64x32xf32>
    %cst_24 = arith.constant dense<0.000000e+00> : vector<64x32xf32>
    %38 = tpu.matmul %36, %37, %cst_24 {dimension_numbers = #tpu.dot_dimension_numbers<[1], [0], [0], [1], [0, 0, 1, 1], [], []>} : vector<64x64xf32>, vector<64x32xf32>, vector<64x32xf32> -> vector<64x32xf32>
    %c0_25 = arith.constant 0 : index
    %c0_26 = arith.constant 0 : index
    %39 = vector.load %arg10[%c0_25, %c0_26] : memref<1x32xf32, #tpu.memory_space<vmem>>, vector<1x32xf32>
    %40 = vector.broadcast %39 : vector<1x32xf32> to vector<64x32xf32>
    %41 = arith.addf %38, %40 : vector<64x32xf32>
    %42 = arith.addf %29, %41 : vector<64x32xf32>
    %c0_27 = arith.constant 0 : index
    %c0_28 = arith.constant 0 : index
    %43 = vector.load %arg11[%c0_27, %c0_28] : memref<1x32xf32, #tpu.memory_space<vmem>>, vector<1x32xf32>
    %c0_29 = arith.constant 0 : index
    %c0_30 = arith.constant 0 : index
    %44 = vector.load %arg12[%c0_29, %c0_30] : memref<1x32xf32, #tpu.memory_space<vmem>>, vector<1x32xf32>
    %cst_31 = arith.constant dense<0.000000e+00> : vector<64xf32>
    %45 = vector.multi_reduction <add>, %42, %cst_31 [1] : vector<64x32xf32> to vector<64xf32>
    %46 = vector.shape_cast %45 : vector<64xf32> to vector<64x1xf32>
    %cst_32 = arith.constant 3.200000e+01 : f32
    %47 = vector.broadcast %cst_32 : f32 to vector<64x1xf32>
    %48 = arith.divf %46, %47 : vector<64x1xf32>
    %49 = vector.broadcast %48 : vector<64x1xf32> to vector<64x32xf32>
    %50 = arith.subf %42, %49 : vector<64x32xf32>
    %51 = arith.mulf %50, %50 : vector<64x32xf32>
    %cst_33 = arith.constant dense<0.000000e+00> : vector<64xf32>
    %52 = vector.multi_reduction <add>, %51, %cst_33 [1] : vector<64x32xf32> to vector<64xf32>
    %53 = vector.shape_cast %52 : vector<64xf32> to vector<64x1xf32>
    %cst_34 = arith.constant 3.200000e+01 : f32
    %54 = vector.broadcast %cst_34 : f32 to vector<64x1xf32>
    %55 = arith.divf %53, %54 : vector<64x1xf32>
    %cst_35 = arith.constant 9.99999974E-6 : f32
    %56 = vector.broadcast %cst_35 : f32 to vector<64x1xf32>
    %57 = arith.addf %55, %56 : vector<64x1xf32>
    %58 = math.rsqrt %57 : vector<64x1xf32>
    %59 = vector.broadcast %58 : vector<64x1xf32> to vector<64x32xf32>
    %60 = arith.mulf %50, %59 : vector<64x32xf32>
    %61 = vector.broadcast %43 : vector<1x32xf32> to vector<64x32xf32>
    %62 = arith.mulf %60, %61 : vector<64x32xf32>
    %63 = vector.broadcast %44 : vector<1x32xf32> to vector<64x32xf32>
    %64 = arith.addf %62, %63 : vector<64x32xf32>
    %c0_36 = arith.constant 0 : index
    %c0_37 = arith.constant 0 : index
    %65 = vector.load %arg13[%c0_36, %c0_37] : memref<64x32xf32, #tpu.memory_space<vmem>>, vector<64x32xf32>
    tpu.vector_store %arg13[%c0_36, %c0_37], %64 {strides = array<i32>} : memref<64x32xf32, #tpu.memory_space<vmem>>, vector<64x32xf32>,
    return
  }
  func.func @transform_0(%arg0: i32) -> (i32, i32) {
    %c0_i32 = arith.constant 0 : i32
    %c0_i32_0 = arith.constant 0 : i32
    return %arg0, %c0_i32 : i32, i32
  }
  func.func @transform_1(%arg0: i32) -> (i32, i32) {
    %c0_i32 = arith.constant 0 : i32
    %c0_i32_0 = arith.constant 0 : i32
    return %arg0, %c0_i32 : i32, i32
  }
  func.func @transform_2(%arg0: i32) -> (i32, i32) {
    %c0_i32 = arith.constant 0 : i32
    %c0_i32_0 = arith.constant 0 : i32
    %c0_i32_1 = arith.constant 0 : i32
    return %c0_i32, %c0_i32_0 : i32, i32
  }
  func.func @transform_3(%arg0: i32) -> (i32, i32) {
    %c0_i32 = arith.constant 0 : i32
    %c0_i32_0 = arith.constant 0 : i32
    %c0_i32_1 = arith.constant 0 : i32
    return %c0_i32, %c0_i32_0 : i32, i32
  }
  func.func @transform_4(%arg0: i32) -> (i32, i32) {
    %c0_i32 = arith.constant 0 : i32
    %c0_i32_0 = arith.constant 0 : i32
    %c0_i32_1 = arith.constant 0 : i32
    return %c0_i32, %c0_i32_0 : i32, i32
  }
  func.func @transform_5(%arg0: i32) -> (i32, i32) {
    %c0_i32 = arith.constant 0 : i32
    %c0_i32_0 = arith.constant 0 : i32
    %c0_i32_1 = arith.constant 0 : i32
    return %c0_i32, %c0_i32_0 : i32, i32
  }
  func.func @transform_6(%arg0: i32) -> (i32, i32) {
    %c0_i32 = arith.constant 0 : i32
    %c0_i32_0 = arith.constant 0 : i32
    %c0_i32_1 = arith.constant 0 : i32
    return %c0_i32, %c0_i32_0 : i32, i32
  }
  func.func @transform_7(%arg0: i32) -> (i32, i32) {
    %c0_i32 = arith.constant 0 : i32
    %c0_i32_0 = arith.constant 0 : i32
    %c0_i32_1 = arith.constant 0 : i32
    return %c0_i32, %c0_i32_0 : i32, i32
  }
  func.func @transform_8(%arg0: i32) -> (i32, i32) {
    %c0_i32 = arith.constant 0 : i32
    %c0_i32_0 = arith.constant 0 : i32
    %c0_i32_1 = arith.constant 0 : i32
    return %c0_i32, %c0_i32_0 : i32, i32
  }
  func.func @transform_9(%arg0: i32) -> (i32, i32) {
    %c0_i32 = arith.constant 0 : i32
    %c0_i32_0 = arith.constant 0 : i32
    %c0_i32_1 = arith.constant 0 : i32
    return %c0_i32, %c0_i32_0 : i32, i32
  }
  func.func @transform_10(%arg0: i32) -> (i32, i32) {
    %c0_i32 = arith.constant 0 : i32
    %c0_i32_0 = arith.constant 0 : i32
    %c0_i32_1 = arith.constant 0 : i32
    return %c0_i32, %c0_i32_0 : i32, i32
  }
  func.func @transform_11(%arg0: i32) -> (i32, i32) {
    %c0_i32 = arith.constant 0 : i32
    %c0_i32_0 = arith.constant 0 : i32
    %c0_i32_1 = arith.constant 0 : i32
    return %c0_i32, %c0_i32_0 : i32, i32
  }
  func.func @transform_12(%arg0: i32) -> (i32, i32) {
    %c0_i32 = arith.constant 0 : i32
    %c0_i32_0 = arith.constant 0 : i32
    return %arg0, %c0_i32 : i32, i32
  }
}

</mosaic_0001>

<llo_original>
// kernel: grit_layer.3
$region0: #{grit_layer.3}
  #allocation0 [shape = 'u32[]', space=smem, size = 0x4, offset = 0x4, fixed_abs, tag = 'smem constant byte address 0x4 - core index']
  #allocation1 [shape = 'u32[144,128]{1,0:T(1,128)}', space=vmem, size = 0x12000, scoped, tag = 'internal scratch']
  %s0 = inlined_call_operand.vmem [shape: f32[128,32], index: 0, kind: input, shape index: {}]
  %s1 = inlined_call_operand.vmem [shape: f32[128,32], index: 1, kind: input, shape index: {}]
  %s2 = inlined_call_operand.vmem [shape: bf16[32,96], index: 2, kind: input, shape index: {}]
  %s3 = inlined_call_operand.vmem [shape: f32[1,96], index: 3, kind: input, shape index: {}]
  %s4 = inlined_call_operand.vmem [shape: f32[128,32], index: 4, kind: output, shape index: {0}]
  %s5 = inlined_call_operand.vmem [shape: bf16[128,32], index: 5, kind: output, shape index: {1}]
  %s6 = inlined_call_operand.vmem [shape: bf16[128,32], index: 6, kind: output, shape index: {2}]
  %s7 = inlined_call_operand.vmem [shape: bf16[128,32], index: 7, kind: output, shape index: {3}]
  %8 = xla_tuple %s4, %s5, %s6, %s7
  %s9 = sld [smem:[#allocation0]]
  $region73: #{grit_layer.3} parent=0
    _
  %s11 = ssub.s32 1, %s9
  %s12 = scalar_select 0, %s11, %s9
  loop: start=0, step=1, limit=4
  $region2: #{grit_layer.3} parent=0 // loop_pre_header
    _
  $region3: #{grit_layer.3} parent=0 // loop_header
    %s14 = sphi 0, %s18
    %p15 = scmp.ge.s32.totalorder %s14, 4
    %s24 = sphi 0, %s26
    %s27 = sphi 0, %s24
    %s28 = sphi 0, %s27
    %s44 = sphi 0, %s28
    %s50 = sphi 0, %s52
    %s53 = sphi 0, %s50
    %s54 = sphi 0, %s53
    %s70 = sphi 0, %s54
    %s74 = sphi 0, %s74
    %s76 = sphi 0, %s74
    %s77 = sphi 0, %s76
    %s91 = sphi 0, %s77
    %s95 = sphi 0, %s95
    %s97 = sphi 0, %s95
    %s98 = sphi 0, %s97
    %s112 = sphi 0, %s98
    %s118 = sphi 0, %s120
    %s121 = sphi 0, %s118
    %s122 = sphi 0, %s121
    %s138 = sphi 0, %s122
    %s144 = sphi 0, %s146
    %s147 = sphi 0, %s144
    %s148 = sphi 0, %s147
    %s164 = sphi 0, %s148
    %s170 = sphi 0, %s172
    %s173 = sphi 0, %s170
    %s174 = sphi 0, %s173
    %s190 = sphi 0, %s174
    %s196 = sphi 0, %s198
    %s199 = sphi 0, %s196
    %s200 = sphi 0, %s199
    %s216 = sphi 0, %s200
  $region4: #{grit_layer.3} parent=0 // loop_header_branch
    %17 = sbr.rel (%p15) target = $region8
  $region5: #{grit_layer.3} parent=0 // loop_body
    %s19 = ssub.s32 %s14, 1
    %s20 = ssub.s32 %s14, 2
    %s21 = sadd.s32 %s14, 1
    %s22 = ssub.s32 %s14, %s21
    %p23 = scmp.eq.s32.totalorder %s22, 0
    %s25 = sadd.s32 %s24, 1
    %s26 = scalar_select %p23, %s24, %s25
    %p29 = pneg %p23
    %p30 = scmp.eq.s32.totalorder %s14, 1
    %p31 = por %p29, %p30
    %p32 = scmp.ne.s32.totalorder %s24, %s27
    %p33 = scmp.eq.s32.totalorder %s14, 0
    %p34 = por %p32, %p33
    %p35 = scmp.ne.s32.totalorder %s24, %s27
    %p36 = scmp.eq.s32.totalorder %s19, 1
    %p37 = por %p35, %p36
    %p38 = scmp.ne.s32.totalorder %s27, %s28
    %p39 = scmp.eq.s32.totalorder %s19, 0
    %p40 = por %p38, %p39
    %p41 = scmp.ne.s32.totalorder %s27, %s28
    %p42 = scmp.eq.s32.totalorder %s20, 1
    %p43 = por %p41, %p42
    %p45 = scmp.ne.s32.totalorder %s28, %s44
    %p46 = scmp.eq.s32.totalorder %s20, 0
    %p47 = por %p45, %p46
    %s48 = ssub.s32 %s14, %s21
    %p49 = scmp.eq.s32.totalorder %s48, 0
    %s51 = sadd.s32 %s50, 1
    %s52 = scalar_select %p49, %s50, %s51
    %p55 = pneg %p49
    %p56 = scmp.eq.s32.totalorder %s14, 1
    %p57 = por %p55, %p56
    %p58 = scmp.ne.s32.totalorder %s50, %s53
    %p59 = scmp.eq.s32.totalorder %s14, 0
    %p60 = por %p58, %p59
    %p61 = scmp.ne.s32.totalorder %s50, %s53
    %p62 = scmp.eq.s32.totalorder %s19, 1
    %p63 = por %p61, %p62
    %p64 = scmp.ne.s32.totalorder %s53, %s54
    %p65 = scmp.eq.s32.totalorder %s19, 0
    %p66 = por %p64, %p65
    %p67 = scmp.ne.s32.totalorder %s53, %s54
    %p68 = scmp.eq.s32.totalorder %s20, 1
    %p69 = por %p67, %p68
    %p71 = scmp.ne.s32.totalorder %s54, %s70
    %p72 = scmp.eq.s32.totalorder %s20, 0
    %p73 = por %p71, %p72
    %s75 = sadd.s32 %s74, 1
    %p78 = scmp.eq.s32.totalorder %s14, 1
    %p79 = scmp.ne.s32.totalorder %s74, %s76
    %p80 = scmp.eq.s32.totalorder %s14, 0
    %p81 = por %p79, %p80
    %p82 = scmp.ne.s32.totalorder %s74, %s76
    %p83 = scmp.eq.s32.totalorder %s19, 1
    %p84 = por %p82, %p83
    %p85 = scmp.ne.s32.totalorder %s76, %s77
    %p86 = scmp.eq.s32.totalorder %s19, 0
    %p87 = por %p85, %p86
    %p88 = scmp.ne.s32.totalorder %s76, %s77
    %p89 = scmp.eq.s32.totalorder %s20, 1
    %p90 = por %p88, %p89
    %p92 = scmp.ne.s32.totalorder %s77, %s91
    %p93 = scmp.eq.s32.totalorder %s20, 0
    %p94 = por %p92, %p93
    %s96 = sadd.s32 %s95, 1
    %p99 = scmp.eq.s32.totalorder %s14, 1
    %p100 = scmp.ne.s32.totalorder %s95, %s97
    %p101 = scmp.eq.s32.totalorder %s14, 0
    %p102 = por %p100, %p101
    %p103 = scmp.ne.s32.totalorder %s95, %s97
    %p104 = scmp.eq.s32.totalorder %s19, 1
    %p105 = por %p103, %p104
    %p106 = scmp.ne.s32.totalorder %s97, %s98
    %p107 = scmp.eq.s32.totalorder %s19, 0
    %p108 = por %p106, %p107
    %p109 = scmp.ne.s32.totalorder %s97, %s98
    %p110 = scmp.eq.s32.totalorder %s20, 1
    %p111 = por %p109, %p110
    %p113 = scmp.ne.s32.totalorder %s98, %s112
    %p114 = scmp.eq.s32.totalorder %s20, 0
    %p115 = por %p113, %p114
    %s116 = ssub.s32 %s14, %s21
    %p117 = scmp.eq.s32.totalorder %s116, 0
    %s119 = sadd.s32 %s118, 1
    %s120 = scalar_select %p117, %s118, %s119
    %p123 = pneg %p117
    %p124 = scmp.eq.s32.totalorder %s14, 1
    %p125 = por %p123, %p124
    %p126 = scmp.ne.s32.totalorder %s118, %s121
    %p127 = scmp.eq.s32.totalorder %s14, 0
    %p128 = por %p126, %p127
    %p129 = scmp.ne.s32.totalorder %s118, %s121
    %p130 = scmp.eq.s32.totalorder %s19, 1
    %p131 = por %p129, %p130
    %p132 = scmp.ne.s32.totalorder %s121, %s122
    %p133 = scmp.eq.s32.totalorder %s19, 0
    %p134 = por %p132, %p133
    %p135 = scmp.ne.s32.totalorder %s121, %s122
    %p136 = scmp.eq.s32.totalorder %s20, 1
    %p137 = por %p135, %p136
    %p139 = scmp.ne.s32.totalorder %s122, %s138
    %p140 = scmp.eq.s32.totalorder %s20, 0
    %p141 = por %p139, %p140
    %s142 = ssub.s32 %s14, %s21
    %p143 = scmp.eq.s32.totalorder %s142, 0
    %s145 = sadd.s32 %s144, 1
    %s146 = scalar_select %p143, %s144, %s145
    %p149 = pneg %p143
    %p150 = scmp.eq.s32.totalorder %s14, 1
    %p151 = por %p149, %p150
    %p152 = scmp.ne.s32.totalorder %s144, %s147
    %p153 = scmp.eq.s32.totalorder %s14, 0
    %p154 = por %p152, %p153
    %p155 = scmp.ne.s32.totalorder %s144, %s147
    %p156 = scmp.eq.s32.totalorder %s19, 1
    %p157 = por %p155, %p156
    %p158 = scmp.ne.s32.totalorder %s147, %s148
    %p159 = scmp.eq.s32.totalorder %s19, 0
    %p160 = por %p158, %p159
    %p161 = scmp.ne.s32.totalorder %s147, %s148
    %p162 = scmp.eq.s32.totalorder %s20, 1
    %p163 = por %p161, %p162
    %p165 = scmp.ne.s32.totalorder %s148, %s164
    %p166 = scmp.eq.s32.totalorder %s20, 0
    %p167 = por %p165, %p166
    %s168 = ssub.s32 %s14, %s21
    %p169 = scmp.eq.s32.totalorder %s168, 0
    %s171 = sadd.s32 %s170, 1
    %s172 = scalar_select %p169, %s170, %s171
    %p175 = pneg %p169
    %p176 = scmp.eq.s32.totalorder %s14, 1
    %p177 = por %p175, %p176
    %p178 = scmp.ne.s32.totalorder %s170, %s173
    %p179 = scmp.eq.s32.totalorder %s14, 0
    %p180 = por %p178, %p179
    %p181 = scmp.ne.s32.totalorder %s170, %s173
    %p182 = scmp.eq.s32.totalorder %s19, 1
    %p183 = por %p181, %p182
    %p184 = scmp.ne.s32.totalorder %s173, %s174
    %p185 = scmp.eq.s32.totalorder %s19, 0
    %p186 = por %p184, %p185
    %p187 = scmp.ne.s32.totalorder %s173, %s174
    %p188 = scmp.eq.s32.totalorder %s20, 1
    %p189 = por %p187, %p188
    %p191 = scmp.ne.s32.totalorder %s174, %s190
    %p192 = scmp.eq.s32.totalorder %s20, 0
    %p193 = por %p191, %p192
    %s194 = ssub.s32 %s14, %s21
    %p195 = scmp.eq.s32.totalorder %s194, 0
    %s197 = sadd.s32 %s196, 1
    %s198 = scalar_select %p195, %s196, %s197
    %p201 = pneg %p195
    %p202 = scmp.eq.s32.totalorder %s14, 1
    %p203 = por %p201, %p202
    %p204 = scmp.ne.s32.totalorder %s196, %s199
    %p205 = scmp.eq.s32.totalorder %s14, 0
    %p206 = por %p204, %p205
    %p207 = scmp.ne.s32.totalorder %s196, %s199
    %p208 = scmp.eq.s32.totalorder %s19, 1
    %p209 = por %p207, %p208
    %p210 = scmp.ne.s32.totalorder %s199, %s200
    %p211 = scmp.eq.s32.totalorder %s19, 0
    %p212 = por %p210, %p211
    %p213 = scmp.ne.s32.totalorder %s199, %s200
    %p214 = scmp.eq.s32.totalorder %s20, 1
    %p215 = por %p213, %p214
    %p217 = scmp.ne.s32.totalorder %s200, %s216
    %p218 = scmp.eq.s32.totalorder %s20, 0
    %p219 = por %p217, %p218
    %p220 = scmp.le.s32.totalorder 1, %s14
    %p221 = scmp.lt.s32.totalorder %s14, 3
    %p222 = pnand %p220, %p221
    %p223 = pneg %p222
    // Predicated region
    $region9: #{grit_layer.3} parent=5 // pred_check
      _
    $region10: #{grit_layer.3} parent=5 // pred_check_branch
      %225 = sbr.rel (%p222) target = $region12
    $region11: #{grit_layer.3} parent=5 // pred_region
      %s226 = ssub.s32 %s14, 1
      // Predicated region
      $region13: #{grit_layer.3} parent=11 // pred_check
        %p227 = pneg %p87
      $region14: #{grit_layer.3} parent=11 // pred_check_branch
        %229 = sbr.rel (%p227) target = $region16
      $region15: #{grit_layer.3} parent=11 // pred_region
        _
      $region16: #{grit_layer.3} parent=11 // pred_fallthru
        _
      // Predicated region
      $region17: #{grit_layer.3} parent=11 // pred_check
        %p230 = pneg %p108
      $region18: #{grit_layer.3} parent=11 // pred_check_branch
        %232 = sbr.rel (%p230) target = $region20
      $region19: #{grit_layer.3} parent=11 // pred_region
        _
      $region20: #{grit_layer.3} parent=11 // pred_fallthru
        _
    $region12: #{grit_layer.3} parent=5 // pred_fallthru
      _
    %p233 = scmp.lt.s32.totalorder %s14, 2
    // Predicated region
    $region21: #{grit_layer.3} parent=5 // pred_check
      %p234 = pneg %p233
    $region22: #{grit_layer.3} parent=5 // pred_check_branch
      %236 = sbr.rel (%p234) target = $region24
    $region23: #{grit_layer.3} parent=5 // pred_region
      // Predicated region
      $region25: #{grit_layer.3} parent=23 // pred_check
        %p237 = pneg %p34
      $region26: #{grit_layer.3} parent=23 // pred_check_branch
        %239 = sbr.rel (%p237) target = $region28
      $region27: #{grit_layer.3} parent=23 // pred_region
        %s240 = smul.u32 8, %s14
        %p241 = scmp.lt.s32.totalorder %s240, 15
        %s242 = scalar_select %p241, %s240, 15
        %s243 = smul.addr %s242, 8
        %s244 = scalar_lea.vmem %s0, %s243
        %s245 = smul.u32 8, %s14
      $region28: #{grit_layer.3} parent=23 // pred_fallthru
        _
      // Predicated region
      $region29: #{grit_layer.3} parent=23 // pred_check
        %p246 = pneg %p60
      $region30: #{grit_layer.3} parent=23 // pred_check_branch
        %248 = sbr.rel (%p246) target = $region32
      $region31: #{grit_layer.3} parent=23 // pred_region
        %s249 = smul.u32 8, %s14
        %p250 = scmp.lt.s32.totalorder %s249, 15
        %s251 = scalar_select %p250, %s249, 15
        %s252 = smul.addr %s251, 8
        %s253 = scalar_lea.vmem %s1, %s252
        %s254 = smul.u32 8, %s14
      $region32: #{grit_layer.3} parent=23 // pred_fallthru
        _
    $region24: #{grit_layer.3} parent=5 // pred_fallthru
      _
    %p255 = scmp.le.s32.totalorder 1, %s14
    %p256 = scmp.lt.s32.totalorder %s14, 3
    %p257 = pnand %p255, %p256
    %p258 = pneg %p257
    // Predicated region
    $region33: #{grit_layer.3} parent=5 // pred_check
      _
    $region34: #{grit_layer.3} parent=5 // pred_check_branch
      %260 = sbr.rel (%p257) target = $region36
    $region35: #{grit_layer.3} parent=5 // pred_region
      %s261 = ssub.s32 %s14, 1
      %s262 = smul.u32 8, %s19
      %p263 = scmp.lt.s32.totalorder %s262, 15
      %s264 = scalar_select %p263, %s262, 15
      %s265 = smul.addr %s264, 8
      %s266 = scalar_lea.vmem %s0, %s265
      %p267 = pneg %p40
      %p268 = pneg %p37
      %s269 = smul.u32 8, %s19
      %p270 = scmp.lt.s32.totalorder %s269, 15
      %s271 = scalar_select %p270, %s269, 15
      %s272 = smul.addr %s271, 8
      %s273 = scalar_lea.vmem %s1, %s272
      %p274 = pneg %p66
      %p275 = pneg %p63
      %p276 = pneg %p87
      %p277 = pneg %p84
      %p278 = pneg %p108
      %p279 = pneg %p105
      %p280 = pneg %p134
      %p281 = pneg %p131
      %s282 = smul.u32 8, %s19
      %p283 = scmp.lt.s32.totalorder %s282, 15
      %s284 = scalar_select %p283, %s282, 15
      %s285 = smul.addr %s284, 8
      %s286 = scalar_lea.vmem %s4, %s285
      %p287 = pneg %p160
      %p288 = pneg %p157
      %s289 = smul.u32 8, %s19
      %p290 = scmp.lt.s32.totalorder %s289, 15
      %s291 = scalar_select %p290, %s289, 15
      %s292 = smul.addr %s291, 4
      %s293 = scalar_lea.vmem %s5, %s292
      %p294 = pneg %p186
      %p295 = pneg %p183
      %s296 = smul.u32 8, %s19
      %p297 = scmp.lt.s32.totalorder %s296, 15
      %s298 = scalar_select %p297, %s296, 15
      %s299 = smul.addr %s298, 4
      %s300 = scalar_lea.vmem %s6, %s299
      %p301 = pneg %p212
      %p302 = pneg %p209
      %s303 = smul.u32 8, %s19
      %p304 = scmp.lt.s32.totalorder %s303, 15
      %s305 = scalar_select %p304, %s303, 15
      %s306 = smul.addr %s305, 4
      %s307 = scalar_lea.vmem %s7, %s306
      %s308 = smul.u32 8, %s19
      %p309 = scmp.lt.s32.totalorder %s308, 15
      %s310 = scalar_select %p309, %s308, 15
      %s311 = smul.addr %s310, 8
      %s312 = scalar_lea.vmem %s0, %s311
      %s313 = smul.u32 8, %s19
      %s314 = smul.u32 8, %s19
      %p315 = scmp.lt.s32.totalorder %s314, 15
      %s316 = scalar_select %p315, %s314, 15
      %s317 = smul.addr %s316, 8
      %s318 = scalar_lea.vmem %s1, %s317
      %s319 = smul.u32 8, %s19
      %s320 = smul.u32 8, %s19
      %p321 = scmp.lt.s32.totalorder %s320, 15
      %s322 = scalar_select %p321, %s320, 15
      %s323 = smul.addr %s322, 8
      %s324 = scalar_lea.vmem %s4, %s323
      %s325 = smul.u32 8, %s19
      %s326 = smul.u32 8, %s19
      %p327 = scmp.lt.s32.totalorder %s326, 15
      %s328 = scalar_select %p327, %s326, 15
      %s329 = smul.addr %s328, 4
      %s330 = scalar_lea.vmem %s5, %s329
      %s331 = smul.u32 8, %s19
      %s332 = smul.u32 8, %s19
      %p333 = scmp.lt.s32.totalorder %s332, 15
      %s334 = scalar_select %p333, %s332, 15
      %s335 = smul.addr %s334, 4
      %s336 = scalar_lea.vmem %s6, %s335
      %s337 = smul.u32 8, %s19
      %s338 = smul.u32 8, %s19
      %p339 = scmp.lt.s32.totalorder %s338, 15
      %s340 = scalar_select %p339, %s338, 15
      %s341 = smul.addr %s340, 4
      %s342 = scalar_lea.vmem %s7, %s341
      %s343 = smul.u32 8, %s19
      %v345 = vld [vmem:[%s312] sm:$0xff]
      %v346 = vld [vmem:[%s312 + $0x8] sm:$0xff]
      %v347 = vld [vmem:[%s312 + $0x10] sm:$0xff]
      %v348 = vld [vmem:[%s312 + $0x18] sm:$0xff]
      %v349 = vld [vmem:[%s312 + $0x20] sm:$0xff]
      %v350 = vld [vmem:[%s312 + $0x28] sm:$0xff]
      %v351 = vld [vmem:[%s312 + $0x30] sm:$0xff]
      %v352 = vld [vmem:[%s312 + $0x38] sm:$0xff]
      %v353 = vld [vmem:[%s318] sm:$0xff]
      %v354 = vld [vmem:[%s318 + $0x8] sm:$0xff]
      %v355 = vld [vmem:[%s318 + $0x10] sm:$0xff]
      %v356 = vld [vmem:[%s318 + $0x18] sm:$0xff]
      %v357 = vld [vmem:[%s318 + $0x20] sm:$0xff]
      %v358 = vld [vmem:[%s318 + $0x28] sm:$0xff]
      %v359 = vld [vmem:[%s318 + $0x30] sm:$0xff]
      %v360 = vld [vmem:[%s318 + $0x38] sm:$0xff]
      %v361 = vadd.f32 %v345, %v353
      %v362 = vadd.f32 %v346, %v354
      %v363 = vadd.f32 %v347, %v355
      %v364 = vadd.f32 %v348, %v356
      %v365 = vadd.f32 %v349, %v357
      %v366 = vadd.f32 %v350, %v358
      %v367 = vadd.f32 %v351, %v359
      %v368 = vadd.f32 %v352, %v360
      %vm369 = vcmask 261120
      %370 = vst.msk [vmem:[%s324] sm:$0xff] %vm369, %v361
      %371 = vst.msk [vmem:[%s324 + $0x8] sm:$0xff] %vm369, %v362
      %372 = vst.msk [vmem:[%s324 + $0x10] sm:$0xff] %vm369, %v363
      %373 = vst.msk [vmem:[%s324 + $0x18] sm:$0xff] %vm369, %v364
      %374 = vst.msk [vmem:[%s324 + $0x20] sm:$0xff] %vm369, %v365
      %375 = vst.msk [vmem:[%s324 + $0x28] sm:$0xff] %vm369, %v366
      %376 = vst.msk [vmem:[%s324 + $0x30] sm:$0xff] %vm369, %v367
      %377 = vst.msk [vmem:[%s324 + $0x38] sm:$0xff] %vm369, %v368
      %v378 = vpack.c.bf16 %v362, %v361
      %v379 = vpack.c.bf16 %v364, %v363
      %v380 = vpack.c.bf16 %v366, %v365
      %v381 = vpack.c.bf16 %v368, %v367
      %v382 = vld [vmem:[%s2] sm:$0xf]
      %v383 = vld [vmem:[%s2 + $0x4] sm:$0xf]
      %v384 = vld [vmem:[%s2 + $0x8] sm:$0xf]
      %v385 = vld [vmem:[%s2 + $0xc] sm:$0xf]
      %v386 = vld [vmem:[%s3] sm:$0x1]
      %v388 = vlaneseq
      %v389 = vshrl.u32 %v388, 7
      %v390 = vsub.s32 0, %v389
      %v391 = vrot.slane %v386, %v390
      %v397 = vunpack.c.l.b16 %v382
      %v398 = vunpack.c.l.b16 %v383
      %v399 = vunpack.c.l.b16 %v384
      %v400 = vunpack.c.l.b16 %v385
      %v401 = vpack.c.b16 %v398, %v397
      %v402 = vpack.c.b16 %v400, %v399
      %v406 = vsel %vm369, %v378, 0
      %v409 = vsel %vm369, %v379, 0
      %v412 = vsel %vm369, %v380, 0
      %v415 = vsel %vm369, %v381, 0
      %417 = vmatprep.subr.bf16.mxu0 0
      %418 = vmatpush1.bf16.msra.mxu0 %v401
      %419 = vmatprep.subr.bf16.mxu0 0
      %420 = vmatpush1.bf16.msra.mxu0 %v402
      %421 = vmatprep.subr.bf16.mxu0 0
      %422 = vmatpush1.bf16.msra.mxu0 0
      %423 = vmatprep.subr.bf16.mxu0 0
      %424 = vmatpush1.bf16.msra.mxu0 0
      %425 = vmatprep.subr.bf16.mxu0 0
      %426 = vmatpush1.bf16.msra.mxu0 0
      %427 = vmatprep.subr.bf16.mxu0 0
      %428 = vmatpush1.bf16.msra.mxu0 0
      %429 = vmatprep.subr.bf16.mxu0 0
      %430 = vmatpush1.bf16.msra.mxu0 0
      %431 = vmatprep.subr.bf16.mxu0 0
      %432 = vmatpush1.bf16.msra.mxu0 0
      %433 = vmatprep.subr.bf16.mxu0 0
      %434 = vmatpush1.bf16.msra.mxu0 0
      %435 = vmatprep.subr.bf16.mxu0 0
      %436 = vmatpush1.bf16.msra.mxu0 0
      %437 = vmatprep.subr.bf16.mxu0 0
      %438 = vmatpush1.bf16.msra.mxu0 0
      %439 = vmatprep.subr.bf16.mxu0 0
      %440 = vmatpush1.bf16.msra.mxu0 0
      %441 = vmatprep.subr.bf16.mxu0 0
      %442 = vmatpush1.bf16.msra.mxu0 0
      %443 = vmatprep.subr.bf16.mxu0 0
      %444 = vmatpush1.bf16.msra.mxu0 0
      %445 = vmatprep.subr.bf16.mxu0 0
      %446 = vmatpush1.bf16.msra.mxu0 0
      %447 = vmatprep.subr.bf16.mxu0 0
      %448 = vmatpush1.bf16.msra.mxu0 0
      %449 = vmatprep.mubr.bf16.mxu0 0
      %450 = vmatmul.mubr.bf16.gmra.mrb[0].mxu0 %v406
      %v451 = vpop.f32.mrb[0].mxu0
      %v452 = vadd.f32 %v391, %v451
      %v453 = vpop.f32.mrb[0].mxu0
      %v454 = vpop.f32.mrb[0].mxu0
      %v455 = vadd.f32 %v391, %v454
      %v456 = vpop.f32.mrb[0].mxu0
      %457 = vmatprep.mubr.bf16.mxu0 0
      %458 = vmatmul.mubr.bf16.gmra.mrb[0].mxu0 %v409
      %v459 = vpop.f32.mrb[0].mxu0
      %v460 = vadd.f32 %v391, %v459
      %v461 = vpop.f32.mrb[0].mxu0
      %v462 = vpop.f32.mrb[0].mxu0
      %v463 = vadd.f32 %v391, %v462
      %v464 = vpop.f32.mrb[0].mxu0
      %465 = vmatprep.mubr.bf16.mxu0 0
      %466 = vmatmul.mubr.bf16.gmra.mrb[0].mxu0 %v412
      %v467 = vpop.f32.mrb[0].mxu0
      %v468 = vadd.f32 %v391, %v467
      %v469 = vpop.f32.mrb[0].mxu0
      %v470 = vpop.f32.mrb[0].mxu0
      %v471 = vadd.f32 %v391, %v470
      %v472 = vpop.f32.mrb[0].mxu0
      %473 = vmatprep.mubr.bf16.mxu0 0
      %474 = vmatmul.mubr.bf16.gmra.mrb[0].mxu0 %v415
      %v475 = vpop.f32.mrb[0].mxu0
      %v476 = vadd.f32 %v391, %v475
      %v477 = vpop.f32.mrb[0].mxu0
      %v478 = vpop.f32.mrb[0].mxu0
      %v479 = vadd.f32 %v391, %v478
      %v480 = vpop.f32.mrb[0].mxu0
      %481 = vdwg.mxu0
      %v482 = vpack.c.bf16 %v455, %v452
      %v483 = vpack.c.bf16 %v463, %v460
      %v484 = vpack.c.bf16 %v471, %v468
      %v485 = vpack.c.bf16 %v479, %v476
      %v490 = vunpack.c.l.b16 %v482
      %v491 = vunpack.c.h.b16 %v482
      %v492 = vunpack.c.l.b16 %v483
      %v493 = vunpack.c.h.b16 %v483
      %v494 = vunpack.c.l.b16 %v484
      %v495 = vunpack.c.h.b16 %v484
      %v496 = vunpack.c.l.b16 %v485
      %v497 = vunpack.c.h.b16 %v485
      %v498 = vpack.c.b16 %v490, %v490
      %v499 = vpack.c.b16 %v491, %v491
      %v500 = vpack.c.b16 %v492, %v492
      %v501 = vpack.c.b16 %v493, %v493
      %v502 = vpack.c.b16 %v494, %v494
      %v503 = vpack.c.b16 %v495, %v495
      %v504 = vpack.c.b16 %v496, %v496
      %v505 = vpack.c.b16 %v497, %v497
      %vm514 = vcmask 257024
      %515 = vst.msk [vmem:[%s330] sm:$0xf] %vm514, %v498
      %516 = vst.msk [vmem:[%s330 + $0x4] sm:$0xf] %vm514, %v499
      %517 = vst.msk [vmem:[%s330 + $0x8] sm:$0xf] %vm514, %v500
      %518 = vst.msk [vmem:[%s330 + $0xc] sm:$0xf] %vm514, %v501
      %519 = vst.msk [vmem:[%s330 + $0x10] sm:$0xf] %vm514, %v502
      %520 = vst.msk [vmem:[%s330 + $0x14] sm:$0xf] %vm514, %v503
      %521 = vst.msk [vmem:[%s330 + $0x18] sm:$0xf] %vm514, %v504
      %522 = vst.msk [vmem:[%s330 + $0x1c] sm:$0xf] %vm514, %v505
      %523 = vrot.lane.b32.xlu0 %v498, 96
      %v524 = vpop.permute.xlu0 %523
      %525 = vrot.lane.b32.xlu0 %v499, 96
      %v526 = vpop.permute.xlu0 %525
      %527 = vrot.lane.b32.xlu0 %v500, 96
      %v528 = vpop.permute.xlu0 %527
      %529 = vrot.lane.b32.xlu0 %v501, 96
      %v530 = vpop.permute.xlu0 %529
      %531 = vrot.lane.b32.xlu0 %v502, 96
      %v532 = vpop.permute.xlu0 %531
      %533 = vrot.lane.b32.xlu0 %v503, 96
      %v534 = vpop.permute.xlu0 %533
      %535 = vrot.lane.b32.xlu0 %v504, 96
      %v536 = vpop.permute.xlu0 %535
      %537 = vrot.lane.b32.xlu0 %v505, 96
      %v538 = vpop.permute.xlu0 %537
      %547 = vst.msk [vmem:[%s336] sm:$0xf] %vm514, %v524
      %548 = vst.msk [vmem:[%s336 + $0x4] sm:$0xf] %vm514, %v526
      %549 = vst.msk [vmem:[%s336 + $0x8] sm:$0xf] %vm514, %v528
      %550 = vst.msk [vmem:[%s336 + $0xc] sm:$0xf] %vm514, %v530
      %551 = vst.msk [vmem:[%s336 + $0x10] sm:$0xf] %vm514, %v532
      %552 = vst.msk [vmem:[%s336 + $0x14] sm:$0xf] %vm514, %v534
      %553 = vst.msk [vmem:[%s336 + $0x18] sm:$0xf] %vm514, %v536
      %554 = vst.msk [vmem:[%s336 + $0x1c] sm:$0xf] %vm514, %v538
      %555 = vrot.lane.b32.xlu0 %v498, 64
      %v556 = vpop.permute.xlu0 %555
      %557 = vrot.lane.b32.xlu0 %v499, 64
      %v558 = vpop.permute.xlu0 %557
      %559 = vrot.lane.b32.xlu0 %v500, 64
      %v560 = vpop.permute.xlu0 %559
      %561 = vrot.lane.b32.xlu0 %v501, 64
      %v562 = vpop.permute.xlu0 %561
      %563 = vrot.lane.b32.xlu0 %v502, 64
      %v564 = vpop.permute.xlu0 %563
      %565 = vrot.lane.b32.xlu0 %v503, 64
      %v566 = vpop.permute.xlu0 %565
      %567 = vrot.lane.b32.xlu0 %v504, 64
      %v568 = vpop.permute.xlu0 %567
      %569 = vrot.lane.b32.xlu0 %v505, 64
      %v570 = vpop.permute.xlu0 %569
      %579 = vst.msk [vmem:[%s342] sm:$0xf] %vm514, %v556
      %580 = vst.msk [vmem:[%s342 + $0x4] sm:$0xf] %vm514, %v558
      %581 = vst.msk [vmem:[%s342 + $0x8] sm:$0xf] %vm514, %v560
      %582 = vst.msk [vmem:[%s342 + $0xc] sm:$0xf] %vm514, %v562
      %583 = vst.msk [vmem:[%s342 + $0x10] sm:$0xf] %vm514, %v564
      %584 = vst.msk [vmem:[%s342 + $0x14] sm:$0xf] %vm514, %v566
      %585 = vst.msk [vmem:[%s342 + $0x18] sm:$0xf] %vm514, %v568
      %586 = vst.msk [vmem:[%s342 + $0x1c] sm:$0xf] %vm514, %v570
      %s587 = smul.u32 8, %s19
      %p588 = scmp.lt.s32.totalorder %s587, 15
      %s589 = scalar_select %p588, %s587, 15
      %s590 = smul.addr %s589, 8
      %s591 = scalar_lea.vmem %s4, %s590
      %s592 = smul.u32 8, %s19
      %p593 = scmp.lt.s32.totalorder %s592, 15
      %s594 = scalar_select %p593, %s592, 15
      %s595 = smul.addr %s594, 4
      %s596 = scalar_lea.vmem %s5, %s595
      %s597 = smul.u32 8, %s19
      %p598 = scmp.lt.s32.totalorder %s597, 15
      %s599 = scalar_select %p598, %s597, 15
      %s600 = smul.addr %s599, 4
      %s601 = scalar_lea.vmem %s6, %s600
      %s602 = smul.u32 8, %s19
      %p603 = scmp.lt.s32.totalorder %s602, 15
      %s604 = scalar_select %p603, %s602, 15
      %s605 = smul.addr %s604, 4
      %s606 = scalar_lea.vmem %s7, %s605
      // Predicated region
      $region37: #{grit_layer.3} parent=35 // pred_check
        %p607 = pneg %p131
      $region38: #{grit_layer.3} parent=35 // pred_check_branch
        %609 = sbr.rel (%p607) target = $region40
      $region39: #{grit_layer.3} parent=35 // pred_region
        %s610 = smul.u32 8, %s19
      $region40: #{grit_layer.3} parent=35 // pred_fallthru
        _
      // Predicated region
      $region41: #{grit_layer.3} parent=35 // pred_check
        %p611 = pneg %p157
      $region42: #{grit_layer.3} parent=35 // pred_check_branch
        %613 = sbr.rel (%p611) target = $region44
      $region43: #{grit_layer.3} parent=35 // pred_region
        %s614 = smul.u32 8, %s19
      $region44: #{grit_layer.3} parent=35 // pred_fallthru
        _
      // Predicated region
      $region45: #{grit_layer.3} parent=35 // pred_check
        %p615 = pneg %p183
      $region46: #{grit_layer.3} parent=35 // pred_check_branch
        %617 = sbr.rel (%p615) target = $region48
      $region47: #{grit_layer.3} parent=35 // pred_region
        %s618 = smul.u32 8, %s19
      $region48: #{grit_layer.3} parent=35 // pred_fallthru
        _
      // Predicated region
      $region49: #{grit_layer.3} parent=35 // pred_check
        %p619 = pneg %p209
      $region50: #{grit_layer.3} parent=35 // pred_check_branch
        %621 = sbr.rel (%p619) target = $region52
      $region51: #{grit_layer.3} parent=35 // pred_region
        %s622 = smul.u32 8, %s19
      $region52: #{grit_layer.3} parent=35 // pred_fallthru
        _
    $region36: #{grit_layer.3} parent=5 // pred_fallthru
      _
    %p623 = scmp.le.s32.totalorder 2, %s14
    // Predicated region
    $region53: #{grit_layer.3} parent=5 // pred_check
      %p624 = pneg %p623
    $region54: #{grit_layer.3} parent=5 // pred_check_branch
      %626 = sbr.rel (%p624) target = $region56
    $region55: #{grit_layer.3} parent=5 // pred_region
      %s627 = ssub.s32 %s14, 2
      // Predicated region
      $region57: #{grit_layer.3} parent=55 // pred_check
        %p628 = pneg %p137
      $region58: #{grit_layer.3} parent=55 // pred_check_branch
        %630 = sbr.rel (%p628) target = $region60
      $region59: #{grit_layer.3} parent=55 // pred_region
        %s631 = smul.u32 8, %s20
        %p632 = scmp.lt.s32.totalorder %s631, 15
        %s633 = scalar_select %p632, %s631, 15
        %s634 = smul.addr %s633, 8
        %s635 = scalar_lea.vmem %s4, %s634
      $region60: #{grit_layer.3} parent=55 // pred_fallthru
        _
      // Predicated region
      $region61: #{grit_layer.3} parent=55 // pred_check
        %p636 = pneg %p163
      $region62: #{grit_layer.3} parent=55 // pred_check_branch
        %638 = sbr.rel (%p636) target = $region64
      $region63: #{grit_layer.3} parent=55 // pred_region
        %s639 = smul.u32 8, %s20
        %p640 = scmp.lt.s32.totalorder %s639, 15
        %s641 = scalar_select %p640, %s639, 15
        %s642 = smul.addr %s641, 4
        %s643 = scalar_lea.vmem %s5, %s642
      $region64: #{grit_layer.3} parent=55 // pred_fallthru
        _
      // Predicated region
      $region65: #{grit_layer.3} parent=55 // pred_check
        %p644 = pneg %p189
      $region66: #{grit_layer.3} parent=55 // pred_check_branch
        %646 = sbr.rel (%p644) target = $region68
      $region67: #{grit_layer.3} parent=55 // pred_region
        %s647 = smul.u32 8, %s20
        %p648 = scmp.lt.s32.totalorder %s647, 15
        %s649 = scalar_select %p648, %s647, 15
        %s650 = smul.addr %s649, 4
        %s651 = scalar_lea.vmem %s6, %s650
      $region68: #{grit_layer.3} parent=55 // pred_fallthru
        _
      // Predicated region
      $region69: #{grit_layer.3} parent=55 // pred_check
        %p652 = pneg %p215
      $region70: #{grit_layer.3} parent=55 // pred_check_branch
        %654 = sbr.rel (%p652) target = $region72
      $region71: #{grit_layer.3} parent=55 // pred_region
        %s655 = smul.u32 8, %s20
        %p656 = scmp.lt.s32.totalorder %s655, 15
        %s657 = scalar_select %p656, %s655, 15
        %s658 = smul.addr %s657, 4
        %s659 = scalar_lea.vmem %s7, %s658
      $region72: #{grit_layer.3} parent=55 // pred_fallthru
        _
    $region56: #{grit_layer.3} parent=5 // pred_fallthru
      _
  $region6: #{grit_layer.3} parent=0 // loop_footer
    %s18 = sadd.s32 1, %s14
  $region7: #{grit_layer.3} parent=0 // loop_footer_branch
    %13 = sbr.rel target = $region3
  $region8: #{grit_layer.3} parent=0 // loop_exit
    _

// kernel: grit_layer.5
$region0: #{grit_layer.5}
  #allocation0 [shape = 'u32[]', space=smem, size = 0x4, offset = 0x4, fixed_abs, tag = 'smem constant byte address 0x4 - core index']
  #allocation1 [shape = 'u32[144,128]{1,0:T(1,128)}', space=vmem, size = 0x12000, scoped, tag = 'internal scratch']
  %s0 = inlined_call_operand.vmem [shape: f32[128,32], index: 0, kind: input, shape index: {}]
  %s1 = inlined_call_operand.vmem [shape: f32[128,32], index: 1, kind: input, shape index: {}, may-alias: {1,12}]
  %s2 = inlined_call_operand.vmem [shape: f32[32,32], index: 2, kind: input, shape index: {}]
  %s3 = inlined_call_operand.vmem [shape: f32[1,32], index: 3, kind: input, shape index: {}]
  %s4 = inlined_call_operand.vmem [shape: f32[1,32], index: 4, kind: input, shape index: {}]
  %s5 = inlined_call_operand.vmem [shape: f32[1,32], index: 5, kind: input, shape index: {}]
  %s6 = inlined_call_operand.vmem [shape: f32[32,64], index: 6, kind: input, shape index: {}]
  %s7 = inlined_call_operand.vmem [shape: f32[1,64], index: 7, kind: input, shape index: {}]
  %s8 = inlined_call_operand.vmem [shape: f32[64,32], index: 8, kind: input, shape index: {}]
  %s9 = inlined_call_operand.vmem [shape: f32[1,32], index: 9, kind: input, shape index: {}]
  %s10 = inlined_call_operand.vmem [shape: f32[1,32], index: 10, kind: input, shape index: {}]
  %s11 = inlined_call_operand.vmem [shape: f32[1,32], index: 11, kind: input, shape index: {}]
  %s12 = inlined_call_operand.vmem [shape: f32[128,32], index: 12, kind: output, shape index: {}, may-alias: {1,12}]
  %s13 = sld [smem:[#allocation0]]
  $region81: #{grit_layer.5} parent=0
    _
  %s15 = ssub.s32 1, %s13
  %s16 = scalar_select 0, %s15, %s13
  loop: start=0, step=1, limit=4
  $region2: #{grit_layer.5} parent=0 // loop_pre_header
    _
  $region3: #{grit_layer.5} parent=0 // loop_header
    %s18 = sphi 0, %s22
    %p19 = scmp.ge.s32.totalorder %s18, 4
    %s28 = sphi 0, %s30
    %s31 = sphi 0, %s28
    %s32 = sphi 0, %s31
    %s48 = sphi 0, %s32
    %s54 = sphi 0, %s56
    %s57 = sphi 0, %s54
    %s58 = sphi 0, %s57
    %s74 = sphi 0, %s58
    %s78 = sphi 0, %s78
    %s80 = sphi 0, %s78
    %s81 = sphi 0, %s80
    %s95 = sphi 0, %s81
    %s99 = sphi 0, %s99
    %s101 = sphi 0, %s99
    %s102 = sphi 0, %s101
    %s116 = sphi 0, %s102
    %s120 = sphi 0, %s120
    %s122 = sphi 0, %s120
    %s123 = sphi 0, %s122
    %s137 = sphi 0, %s123
    %s141 = sphi 0, %s141
    %s143 = sphi 0, %s141
    %s144 = sphi 0, %s143
    %s158 = sphi 0, %s144
    %s162 = sphi 0, %s162
    %s164 = sphi 0, %s162
    %s165 = sphi 0, %s164
    %s179 = sphi 0, %s165
    %s183 = sphi 0, %s183
    %s185 = sphi 0, %s183
    %s186 = sphi 0, %s185
    %s200 = sphi 0, %s186
    %s204 = sphi 0, %s204
    %s206 = sphi 0, %s204
    %s207 = sphi 0, %s206
    %s221 = sphi 0, %s207
    %s225 = sphi 0, %s225
    %s227 = sphi 0, %s225
    %s228 = sphi 0, %s227
    %s242 = sphi 0, %s228
    %s246 = sphi 0, %s246
    %s248 = sphi 0, %s246
    %s249 = sphi 0, %s248
    %s263 = sphi 0, %s249
    %s267 = sphi 0, %s267
    %s269 = sphi 0, %s267
    %s270 = sphi 0, %s269
    %s284 = sphi 0, %s270
    %s290 = sphi 0, %s292
    %s293 = sphi 0, %s290
    %s294 = sphi 0, %s293
    %s310 = sphi 0, %s294
  $region4: #{grit_layer.5} parent=0 // loop_header_branch
    %21 = sbr.rel (%p19) target = $region8
  $region5: #{grit_layer.5} parent=0 // loop_body
    %s23 = ssub.s32 %s18, 1
    %s24 = ssub.s32 %s18, 2
    %s25 = sadd.s32 %s18, 1
    %s26 = ssub.s32 %s18, %s25
    %p27 = scmp.eq.s32.totalorder %s26, 0
    %s29 = sadd.s32 %s28, 1
    %s30 = scalar_select %p27, %s28, %s29
    %p33 = pneg %p27
    %p34 = scmp.eq.s32.totalorder %s18, 1
    %p35 = por %p33, %p34
    %p36 = scmp.ne.s32.totalorder %s28, %s31
    %p37 = scmp.eq.s32.totalorder %s18, 0
    %p38 = por %p36, %p37
    %p39 = scmp.ne.s32.totalorder %s28, %s31
    %p40 = scmp.eq.s32.totalorder %s23, 1
    %p41 = por %p39, %p40
    %p42 = scmp.ne.s32.totalorder %s31, %s32
    %p43 = scmp.eq.s32.totalorder %s23, 0
    %p44 = por %p42, %p43
    %p45 = scmp.ne.s32.totalorder %s31, %s32
    %p46 = scmp.eq.s32.totalorder %s24, 1
    %p47 = por %p45, %p46
    %p49 = scmp.ne.s32.totalorder %s32, %s48
    %p50 = scmp.eq.s32.totalorder %s24, 0
    %p51 = por %p49, %p50
    %s52 = ssub.s32 %s18, %s25
    %p53 = scmp.eq.s32.totalorder %s52, 0
    %s55 = sadd.s32 %s54, 1
    %s56 = scalar_select %p53, %s54, %s55
    %p59 = pneg %p53
    %p60 = scmp.eq.s32.totalorder %s18, 1
    %p61 = por %p59, %p60
    %p62 = scmp.ne.s32.totalorder %s54, %s57
    %p63 = scmp.eq.s32.totalorder %s18, 0
    %p64 = por %p62, %p63
    %p65 = scmp.ne.s32.totalorder %s54, %s57
    %p66 = scmp.eq.s32.totalorder %s23, 1
    %p67 = por %p65, %p66
    %p68 = scmp.ne.s32.totalorder %s57, %s58
    %p69 = scmp.eq.s32.totalorder %s23, 0
    %p70 = por %p68, %p69
    %p71 = scmp.ne.s32.totalorder %s57, %s58
    %p72 = scmp.eq.s32.totalorder %s24, 1
    %p73 = por %p71, %p72
    %p75 = scmp.ne.s32.totalorder %s58, %s74
    %p76 = scmp.eq.s32.totalorder %s24, 0
    %p77 = por %p75, %p76
    %s79 = sadd.s32 %s78, 1
    %p82 = scmp.eq.s32.totalorder %s18, 1
    %p83 = scmp.ne.s32.totalorder %s78, %s80
    %p84 = scmp.eq.s32.totalorder %s18, 0
    %p85 = por %p83, %p84
    %p86 = scmp.ne.s32.totalorder %s78, %s80
    %p87 = scmp.eq.s32.totalorder %s23, 1
    %p88 = por %p86, %p87
    %p89 = scmp.ne.s32.totalorder %s80, %s81
    %p90 = scmp.eq.s32.totalorder %s23, 0
    %p91 = por %p89, %p90
    %p92 = scmp.ne.s32.totalorder %s80, %s81
    %p93 = scmp.eq.s32.totalorder %s24, 1
    %p94 = por %p92, %p93
    %p96 = scmp.ne.s32.totalorder %s81, %s95
    %p97 = scmp.eq.s32.totalorder %s24, 0
    %p98 = por %p96, %p97
    %s100 = sadd.s32 %s99, 1
    %p103 = scmp.eq.s32.totalorder %s18, 1
    %p104 = scmp.ne.s32.totalorder %s99, %s101
    %p105 = scmp.eq.s32.totalorder %s18, 0
    %p106 = por %p104, %p105
    %p107 = scmp.ne.s32.totalorder %s99, %s101
    %p108 = scmp.eq.s32.totalorder %s23, 1
    %p109 = por %p107, %p108
    %p110 = scmp.ne.s32.totalorder %s101, %s102
    %p111 = scmp.eq.s32.totalorder %s23, 0
    %p112 = por %p110, %p111
    %p113 = scmp.ne.s32.totalorder %s101, %s102
    %p114 = scmp.eq.s32.totalorder %s24, 1
    %p115 = por %p113, %p114
    %p117 = scmp.ne.s32.totalorder %s102, %s116
    %p118 = scmp.eq.s32.totalorder %s24, 0
    %p119 = por %p117, %p118
    %s121 = sadd.s32 %s120, 1
    %p124 = scmp.eq.s32.totalorder %s18, 1
    %p125 = scmp.ne.s32.totalorder %s120, %s122
    %p126 = scmp.eq.s32.totalorder %s18, 0
    %p127 = por %p125, %p126
    %p128 = scmp.ne.s32.totalorder %s120, %s122
    %p129 = scmp.eq.s32.totalorder %s23, 1
    %p130 = por %p128, %p129
    %p131 = scmp.ne.s32.totalorder %s122, %s123
    %p132 = scmp.eq.s32.totalorder %s23, 0
    %p133 = por %p131, %p132
    %p134 = scmp.ne.s32.totalorder %s122, %s123
    %p135 = scmp.eq.s32.totalorder %s24, 1
    %p136 = por %p134, %p135
    %p138 = scmp.ne.s32.totalorder %s123, %s137
    %p139 = scmp.eq.s32.totalorder %s24, 0
    %p140 = por %p138, %p139
    %s142 = sadd.s32 %s141, 1
    %p145 = scmp.eq.s32.totalorder %s18, 1
    %p146 = scmp.ne.s32.totalorder %s141, %s143
    %p147 = scmp.eq.s32.totalorder %s18, 0
    %p148 = por %p146, %p147
    %p149 = scmp.ne.s32.totalorder %s141, %s143
    %p150 = scmp.eq.s32.totalorder %s23, 1
    %p151 = por %p149, %p150
    %p152 = scmp.ne.s32.totalorder %s143, %s144
    %p153 = scmp.eq.s32.totalorder %s23, 0
    %p154 = por %p152, %p153
    %p155 = scmp.ne.s32.totalorder %s143, %s144
    %p156 = scmp.eq.s32.totalorder %s24, 1
    %p157 = por %p155, %p156
    %p159 = scmp.ne.s32.totalorder %s144, %s158
    %p160 = scmp.eq.s32.totalorder %s24, 0
    %p161 = por %p159, %p160
    %s163 = sadd.s32 %s162, 1
    %p166 = scmp.eq.s32.totalorder %s18, 1
    %p167 = scmp.ne.s32.totalorder %s162, %s164
    %p168 = scmp.eq.s32.totalorder %s18, 0
    %p169 = por %p167, %p168
    %p170 = scmp.ne.s32.totalorder %s162, %s164
    %p171 = scmp.eq.s32.totalorder %s23, 1
    %p172 = por %p170, %p171
    %p173 = scmp.ne.s32.totalorder %s164, %s165
    %p174 = scmp.eq.s32.totalorder %s23, 0
    %p175 = por %p173, %p174
    %p176 = scmp.ne.s32.totalorder %s164, %s165
    %p177 = scmp.eq.s32.totalorder %s24, 1
    %p178 = por %p176, %p177
    %p180 = scmp.ne.s32.totalorder %s165, %s179
    %p181 = scmp.eq.s32.totalorder %s24, 0
    %p182 = por %p180, %p181
    %s184 = sadd.s32 %s183, 1
    %p187 = scmp.eq.s32.totalorder %s18, 1
    %p188 = scmp.ne.s32.totalorder %s183, %s185
    %p189 = scmp.eq.s32.totalorder %s18, 0
    %p190 = por %p188, %p189
    %p191 = scmp.ne.s32.totalorder %s183, %s185
    %p192 = scmp.eq.s32.totalorder %s23, 1
    %p193 = por %p191, %p192
    %p194 = scmp.ne.s32.totalorder %s185, %s186
    %p195 = scmp.eq.s32.totalorder %s23, 0
    %p196 = por %p194, %p195
    %p197 = scmp.ne.s32.totalorder %s185, %s186
    %p198 = scmp.eq.s32.totalorder %s24, 1
    %p199 = por %p197, %p198
    %p201 = scmp.ne.s32.totalorder %s186, %s200
    %p202 = scmp.eq.s32.totalorder %s24, 0
    %p203 = por %p201, %p202
    %s205 = sadd.s32 %s204, 1
    %p208 = scmp.eq.s32.totalorder %s18, 1
    %p209 = scmp.ne.s32.totalorder %s204, %s206
    %p210 = scmp.eq.s32.totalorder %s18, 0
    %p211 = por %p209, %p210
    %p212 = scmp.ne.s32.totalorder %s204, %s206
    %p213 = scmp.eq.s32.totalorder %s23, 1
    %p214 = por %p212, %p213
    %p215 = scmp.ne.s32.totalorder %s206, %s207
    %p216 = scmp.eq.s32.totalorder %s23, 0
    %p217 = por %p215, %p216
    %p218 = scmp.ne.s32.totalorder %s206, %s207
    %p219 = scmp.eq.s32.totalorder %s24, 1
    %p220 = por %p218, %p219
    %p222 = scmp.ne.s32.totalorder %s207, %s221
    %p223 = scmp.eq.s32.totalorder %s24, 0
    %p224 = por %p222, %p223
    %s226 = sadd.s32 %s225, 1
    %p229 = scmp.eq.s32.totalorder %s18, 1
    %p230 = scmp.ne.s32.totalorder %s225, %s227
    %p231 = scmp.eq.s32.totalorder %s18, 0
    %p232 = por %p230, %p231
    %p233 = scmp.ne.s32.totalorder %s225, %s227
    %p234 = scmp.eq.s32.totalorder %s23, 1
    %p235 = por %p233, %p234
    %p236 = scmp.ne.s32.totalorder %s227, %s228
    %p237 = scmp.eq.s32.totalorder %s23, 0
    %p238 = por %p236, %p237
    %p239 = scmp.ne.s32.totalorder %s227, %s228
    %p240 = scmp.eq.s32.totalorder %s24, 1
    %p241 = por %p239, %p240
    %p243 = scmp.ne.s32.totalorder %s228, %s242
    %p244 = scmp.eq.s32.totalorder %s24, 0
    %p245 = por %p243, %p244
    %s247 = sadd.s32 %s246, 1
    %p250 = scmp.eq.s32.totalorder %s18, 1
    %p251 = scmp.ne.s32.totalorder %s246, %s248
    %p252 = scmp.eq.s32.totalorder %s18, 0
    %p253 = por %p251, %p252
    %p254 = scmp.ne.s32.totalorder %s246, %s248
    %p255 = scmp.eq.s32.totalorder %s23, 1
    %p256 = por %p254, %p255
    %p257 = scmp.ne.s32.totalorder %s248, %s249
    %p258 = scmp.eq.s32.totalorder %s23, 0
    %p259 = por %p257, %p258
    %p260 = scmp.ne.s32.totalorder %s248, %s249
    %p261 = scmp.eq.s32.totalorder %s24, 1
    %p262 = por %p260, %p261
    %p264 = scmp.ne.s32.totalorder %s249, %s263
    %p265 = scmp.eq.s32.totalorder %s24, 0
    %p266 = por %p264, %p265
    %s268 = sadd.s32 %s267, 1
    %p271 = scmp.eq.s32.totalorder %s18, 1
    %p272 = scmp.ne.s32.totalorder %s267, %s269
    %p273 = scmp.eq.s32.totalorder %s18, 0
    %p274 = por %p272, %p273
    %p275 = scmp.ne.s32.totalorder %s267, %s269
    %p276 = scmp.eq.s32.totalorder %s23, 1
    %p277 = por %p275, %p276
    %p278 = scmp.ne.s32.totalorder %s269, %s270
    %p279 = scmp.eq.s32.totalorder %s23, 0
    %p280 = por %p278, %p279
    %p281 = scmp.ne.s32.totalorder %s269, %s270
    %p282 = scmp.eq.s32.totalorder %s24, 1
    %p283 = por %p281, %p282
    %p285 = scmp.ne.s32.totalorder %s270, %s284
    %p286 = scmp.eq.s32.totalorder %s24, 0
    %p287 = por %p285, %p286
    %s288 = ssub.s32 %s18, %s25
    %p289 = scmp.eq.s32.totalorder %s288, 0
    %s291 = sadd.s32 %s290, 1
    %s292 = scalar_select %p289, %s290, %s291
    %p295 = pneg %p289
    %p296 = scmp.eq.s32.totalorder %s18, 1
    %p297 = por %p295, %p296
    %p298 = scmp.ne.s32.totalorder %s290, %s293
    %p299 = scmp.eq.s32.totalorder %s18, 0
    %p300 = por %p298, %p299
    %p301 = scmp.ne.s32.totalorder %s290, %s293
    %p302 = scmp.eq.s32.totalorder %s23, 1
    %p303 = por %p301, %p302
    %p304 = scmp.ne.s32.totalorder %s293, %s294
    %p305 = scmp.eq.s32.totalorder %s23, 0
    %p306 = por %p304, %p305
    %p307 = scmp.ne.s32.totalorder %s293, %s294
    %p308 = scmp.eq.s32.totalorder %s24, 1
    %p309 = por %p307, %p308
    %p311 = scmp.ne.s32.totalorder %s294, %s310
    %p312 = scmp.eq.s32.totalorder %s24, 0
    %p313 = por %p311, %p312
    %p314 = scmp.le.s32.totalorder 1, %s18
    %p315 = scmp.lt.s32.totalorder %s18, 3
    %p316 = pnand %p314, %p315
    %p317 = pneg %p316
    // Predicated region
    $region9: #{grit_layer.5} parent=5 // pred_check
      _
    $region10: #{grit_layer.5} parent=5 // pred_check_branch
      %319 = sbr.rel (%p316) target = $region12
    $region11: #{grit_layer.5} parent=5 // pred_region
      %s320 = ssub.s32 %s18, 1
      // Predicated region
      $region13: #{grit_layer.5} parent=11 // pred_check
        %p321 = pneg %p91
      $region14: #{grit_layer.5} parent=11 // pred_check_branch
        %323 = sbr.rel (%p321) target = $region16
      $region15: #{grit_layer.5} parent=11 // pred_region
        _
      $region16: #{grit_layer.5} parent=11 // pred_fallthru
        _
      // Predicated region
      $region17: #{grit_layer.5} parent=11 // pred_check
        %p324 = pneg %p112
      $region18: #{grit_layer.5} parent=11 // pred_check_branch
        %326 = sbr.rel (%p324) target = $region20
      $region19: #{grit_layer.5} parent=11 // pred_region
        _
      $region20: #{grit_layer.5} parent=11 // pred_fallthru
        _
      // Predicated region
      $region21: #{grit_layer.5} parent=11 // pred_check
        %p327 = pneg %p133
      $region22: #{grit_layer.5} parent=11 // pred_check_branch
        %329 = sbr.rel (%p327) target = $region24
      $region23: #{grit_layer.5} parent=11 // pred_region
        _
      $region24: #{grit_layer.5} parent=11 // pred_fallthru
        _
      // Predicated region
      $region25: #{grit_layer.5} parent=11 // pred_check
        %p330 = pneg %p154
      $region26: #{grit_layer.5} parent=11 // pred_check_branch
        %332 = sbr.rel (%p330) target = $region28
      $region27: #{grit_layer.5} parent=11 // pred_region
        _
      $region28: #{grit_layer.5} parent=11 // pred_fallthru
        _
      // Predicated region
      $region29: #{grit_layer.5} parent=11 // pred_check
        %p333 = pneg %p175
      $region30: #{grit_layer.5} parent=11 // pred_check_branch
        %335 = sbr.rel (%p333) target = $region32
      $region31: #{grit_layer.5} parent=11 // pred_region
        _
      $region32: #{grit_layer.5} parent=11 // pred_fallthru
        _
      // Predicated region
      $region33: #{grit_layer.5} parent=11 // pred_check
        %p336 = pneg %p196
      $region34: #{grit_layer.5} parent=11 // pred_check_branch
        %338 = sbr.rel (%p336) target = $region36
      $region35: #{grit_layer.5} parent=11 // pred_region
        _
      $region36: #{grit_layer.5} parent=11 // pred_fallthru
        _
      // Predicated region
      $region37: #{grit_layer.5} parent=11 // pred_check
        %p339 = pneg %p217
      $region38: #{grit_layer.5} parent=11 // pred_check_branch
        %341 = sbr.rel (%p339) target = $region40
      $region39: #{grit_layer.5} parent=11 // pred_region
        _
      $region40: #{grit_layer.5} parent=11 // pred_fallthru
        _
      // Predicated region
      $region41: #{grit_layer.5} parent=11 // pred_check
        %p342 = pneg %p238
      $region42: #{grit_layer.5} parent=11 // pred_check_branch
        %344 = sbr.rel (%p342) target = $region44
      $region43: #{grit_layer.5} parent=11 // pred_region
        _
      $region44: #{grit_layer.5} parent=11 // pred_fallthru
        _
      // Predicated region
      $region45: #{grit_layer.5} parent=11 // pred_check
        %p345 = pneg %p259
      $region46: #{grit_layer.5} parent=11 // pred_check_branch
        %347 = sbr.rel (%p345) target = $region48
      $region47: #{grit_layer.5} parent=11 // pred_region
        _
      $region48: #{grit_layer.5} parent=11 // pred_fallthru
        _
      // Predicated region
      $region49: #{grit_layer.5} parent=11 // pred_check
        %p348 = pneg %p280
      $region50: #{grit_layer.5} parent=11 // pred_check_branch
        %350 = sbr.rel (%p348) target = $region52
      $region51: #{grit_layer.5} parent=11 // pred_region
        _
      $region52: #{grit_layer.5} parent=11 // pred_fallthru
        _
    $region12: #{grit_layer.5} parent=5 // pred_fallthru
      _
    %p351 = scmp.lt.s32.totalorder %s18, 2
    // Predicated region
    $region53: #{grit_layer.5} parent=5 // pred_check
      %p352 = pneg %p351
    $region54: #{grit_layer.5} parent=5 // pred_check_branch
      %354 = sbr.rel (%p352) target = $region56
    $region55: #{grit_layer.5} parent=5 // pred_region
      // Predicated region
      $region57: #{grit_layer.5} parent=55 // pred_check
        %p355 = pneg %p38
      $region58: #{grit_layer.5} parent=55 // pred_check_branch
        %357 = sbr.rel (%p355) target = $region60
      $region59: #{grit_layer.5} parent=55 // pred_region
        %s358 = smul.u32 8, %s18
        %p359 = scmp.lt.s32.totalorder %s358, 15
        %s360 = scalar_select %p359, %s358, 15
        %s361 = smul.addr %s360, 8
        %s362 = scalar_lea.vmem %s0, %s361
        %s363 = smul.u32 8, %s18
      $region60: #{grit_layer.5} parent=55 // pred_fallthru
        _
      // Predicated region
      $region61: #{grit_layer.5} parent=55 // pred_check
        %p364 = pneg %p64
      $region62: #{grit_layer.5} parent=55 // pred_check_branch
        %366 = sbr.rel (%p364) target = $region64
      $region63: #{grit_layer.5} parent=55 // pred_region
        %s367 = smul.u32 8, %s18
        %p368 = scmp.lt.s32.totalorder %s367, 15
        %s369 = scalar_select %p368, %s367, 15
        %s370 = smul.addr %s369, 8
        %s371 = scalar_lea.vmem %s1, %s370
        %s372 = smul.u32 8, %s18
      $region64: #{grit_layer.5} parent=55 // pred_fallthru
        _
    $region56: #{grit_layer.5} parent=5 // pred_fallthru
      _
    %p373 = scmp.le.s32.totalorder 1, %s18
    %p374 = scmp.lt.s32.totalorder %s18, 3
    %p375 = pnand %p373, %p374
    %p376 = pneg %p375
    // Predicated region
    $region65: #{grit_layer.5} parent=5 // pred_check
      _
    $region66: #{grit_layer.5} parent=5 // pred_check_branch
      %378 = sbr.rel (%p375) target = $region68
    $region67: #{grit_layer.5} parent=5 // pred_region
      %s379 = ssub.s32 %s18, 1
      %s380 = smul.u32 8, %s23
      %p381 = scmp.lt.s32.totalorder %s380, 15
      %s382 = scalar_select %p381, %s380, 15
      %s383 = smul.addr %s382, 8
      %s384 = scalar_lea.vmem %s0, %s383
      %p385 = pneg %p44
      %p386 = pneg %p41
      %s387 = smul.u32 8, %s23
      %p388 = scmp.lt.s32.totalorder %s387, 15
      %s389 = scalar_select %p388, %s387, 15
      %s390 = smul.addr %s389, 8
      %s391 = scalar_lea.vmem %s1, %s390
      %p392 = pneg %p70
      %p393 = pneg %p67
      %p394 = pneg %p91
      %p395 = pneg %p88
      %p396 = pneg %p112
      %p397 = pneg %p109
      %p398 = pneg %p133
      %p399 = pneg %p130
      %p400 = pneg %p154
      %p401 = pneg %p151
      %p402 = pneg %p175
      %p403 = pneg %p172
      %p404 = pneg %p196
      %p405 = pneg %p193
      %p406 = pneg %p217
      %p407 = pneg %p214
      %p408 = pneg %p238
      %p409 = pneg %p235
      %p410 = pneg %p259
      %p411 = pneg %p256
      %p412 = pneg %p280
      %p413 = pneg %p277
      %p414 = pneg %p306
      %p415 = pneg %p303
      %s416 = smul.u32 8, %s23
      %p417 = scmp.lt.s32.totalorder %s416, 15
      %s418 = scalar_select %p417, %s416, 15
      %s419 = smul.addr %s418, 8
      %s420 = scalar_lea.vmem %s12, %s419
      %s421 = smul.u32 8, %s23
      %p422 = scmp.lt.s32.totalorder %s421, 15
      %s423 = scalar_select %p422, %s421, 15
      %s424 = smul.addr %s423, 8
      %s425 = scalar_lea.vmem %s0, %s424
      %s426 = smul.u32 8, %s23
      %s427 = smul.u32 8, %s23
      %p428 = scmp.lt.s32.totalorder %s427, 15
      %s429 = scalar_select %p428, %s427, 15
      %s430 = smul.addr %s429, 8
      %s431 = scalar_lea.vmem %s1, %s430
      %s432 = smul.u32 8, %s23
      %s433 = smul.u32 8, %s23
      %p434 = scmp.lt.s32.totalorder %s433, 15
      %s435 = scalar_select %p434, %s433, 15
      %s436 = smul.addr %s435, 8
      %s437 = scalar_lea.vmem %s12, %s436
      %s438 = smul.u32 8, %s23
      %v439 = vld [vmem:[%s425] sm:$0xff]
      %v440 = vld [vmem:[%s425 + $0x8] sm:$0xff]
      %v441 = vld [vmem:[%s425 + $0x10] sm:$0xff]
      %v442 = vld [vmem:[%s425 + $0x18] sm:$0xff]
      %v443 = vld [vmem:[%s425 + $0x20] sm:$0xff]
      %v444 = vld [vmem:[%s425 + $0x28] sm:$0xff]
      %v445 = vld [vmem:[%s425 + $0x30] sm:$0xff]
      %v446 = vld [vmem:[%s425 + $0x38] sm:$0xff]
      %v447 = vld [vmem:[%s2] sm:$0xff]
      %v448 = vld [vmem:[%s2 + $0x8] sm:$0xff]
      %v449 = vld [vmem:[%s2 + $0x10] sm:$0xff]
      %v450 = vld [vmem:[%s2 + $0x18] sm:$0xff]
      %v451 = vld [vmem:[%s3] sm:$0x1]
      %v453 = vlaneseq
      %v454 = vshrl.u32 %v453, 7
      %v455 = vsub.s32 0, %v454
      %v456 = vrot.slane %v451, %v455
      %vm458 = vcmask 261120
      %v460 = vsel %vm458, %v439, 0
      %v463 = vsel %vm458, %v440, 0
      %v466 = vsel %vm458, %v441, 0
      %v469 = vsel %vm458, %v442, 0
      %v472 = vsel %vm458, %v443, 0
      %v475 = vsel %vm458, %v444, 0
      %v478 = vsel %vm458, %v445, 0
      %v481 = vsel %vm458, %v446, 0
      %483 = vmatprep.subr.mxu0 0.0
      %484 = vmatpush1.msra.mxu0 %v447
      %485 = vmatprep.subr.mxu0 0.0
      %486 = vmatpush1.msra.mxu0 %v448
      %487 = vmatprep.subr.mxu0 0.0
      %488 = vmatpush1.msra.mxu0 %v449
      %489 = vmatprep.subr.mxu0 0.0
      %490 = vmatpush1.msra.mxu0 %v450
      %491 = vmatprep.subr.mxu0 0.0
      %492 = vmatpush1.msra.mxu0 0.0
      %493 = vmatprep.subr.mxu0 0.0
      %494 = vmatpush1.msra.mxu0 0.0
      %495 = vmatprep.subr.mxu0 0.0
      %496 = vmatpush1.msra.mxu0 0.0
      %497 = vmatprep.subr.mxu0 0.0
      %498 = vmatpush1.msra.mxu0 0.0
      %499 = vmatprep.subr.mxu0 0.0
      %500 = vmatpush1.msra.mxu0 0.0
      %501 = vmatprep.subr.mxu0 0.0
      %502 = vmatpush1.msra.mxu0 0.0
      %503 = vmatprep.subr.mxu0 0.0
      %504 = vmatpush1.msra.mxu0 0.0
      %505 = vmatprep.subr.mxu0 0.0
      %506 = vmatpush1.msra.mxu0 0.0
      %507 = vmatprep.subr.mxu0 0.0
      %508 = vmatpush1.msra.mxu0 0.0
      %509 = vmatprep.subr.mxu0 0.0
      %510 = vmatpush1.msra.mxu0 0.0
      %511 = vmatprep.subr.mxu0 0.0
      %512 = vmatpush1.msra.mxu0 0.0
      %513 = vmatprep.subr.mxu0 0.0
      %514 = vmatpush1.msra.mxu0 0.0
      %515 = vmatprep.subr.mxu0 0.0
      %516 = vmatpush1.msra.mxu0 0.0
      %517 = vmatprep.subr.mxu0 0.0
      %518 = vmatpush1.msra.mxu0 0.0
      %519 = vmatprep.subr.mxu0 0.0
      %520 = vmatpush1.msra.mxu0 0.0
      %521 = vmatprep.subr.mxu0 0.0
      %522 = vmatpush1.msra.mxu0 0.0
      %523 = vmatprep.subr.mxu0 0.0
      %524 = vmatpush1.msra.mxu0 0.0
      %525 = vmatprep.subr.mxu0 0.0
      %526 = vmatpush1.msra.mxu0 0.0
      %527 = vmatprep.subr.mxu0 0.0
      %528 = vmatpush1.msra.mxu0 0.0
      %529 = vmatprep.subr.mxu0 0.0
      %530 = vmatpush1.msra.mxu0 0.0
      %531 = vmatprep.subr.mxu0 0.0
      %532 = vmatpush1.msra.mxu0 0.0
      %533 = vmatprep.subr.mxu0 0.0
      %534 = vmatpush1.msra.mxu0 0.0
      %535 = vmatprep.subr.mxu0 0.0
      %536 = vmatpush1.msra.mxu0 0.0
      %537 = vmatprep.subr.mxu0 0.0
      %538 = vmatpush1.msra.mxu0 0.0
      %539 = vmatprep.subr.mxu0 0.0
      %540 = vmatpush1.msra.mxu0 0.0
      %541 = vmatprep.subr.mxu0 0.0
      %542 = vmatpush1.msra.mxu0 0.0
      %543 = vmatprep.subr.mxu0 0.0
      %544 = vmatpush1.msra.mxu0 0.0
      %545 = vmatprep.subr.mxu0 0.0
      %546 = vmatpush1.msra.mxu0 0.0
      %547 = vmatprep.mubr.f32.mxu0 0.0
      %548 = vmatmul.mubr.f32.gmra.mrb[0].mxu0 %v460
      %v549 = vpop.f32.mrb[0].mxu0
      %v550 = vadd.f32 %v456, %v549
      %v551 = vpop.f32.mrb[0].mxu0
      %552 = vmatprep.mubr.f32.mxu0 0.0
      %553 = vmatmul.mubr.f32.gmra.mrb[0].mxu0 %v463
      %v554 = vpop.f32.mrb[0].mxu0
      %v555 = vadd.f32 %v456, %v554
      %v556 = vpop.f32.mrb[0].mxu0
      %557 = vmatprep.mubr.f32.mxu0 0.0
      %558 = vmatmul.mubr.f32.gmra.mrb[0].mxu0 %v466
      %v559 = vpop.f32.mrb[0].mxu0
      %v560 = vadd.f32 %v456, %v559
      %v561 = vpop.f32.mrb[0].mxu0
      %562 = vmatprep.mubr.f32.mxu0 0.0
      %563 = vmatmul.mubr.f32.gmra.mrb[0].mxu0 %v469
      %v564 = vpop.f32.mrb[0].mxu0
      %v565 = vadd.f32 %v456, %v564
      %v566 = vpop.f32.mrb[0].mxu0
      %567 = vmatprep.mubr.f32.mxu0 0.0
      %568 = vmatmul.mubr.f32.gmra.mrb[0].mxu0 %v472
      %v569 = vpop.f32.mrb[0].mxu0
      %v570 = vadd.f32 %v456, %v569
      %v571 = vpop.f32.mrb[0].mxu0
      %572 = vmatprep.mubr.f32.mxu0 0.0
      %573 = vmatmul.mubr.f32.gmra.mrb[0].mxu0 %v475
      %v574 = vpop.f32.mrb[0].mxu0
      %v575 = vadd.f32 %v456, %v574
      %v576 = vpop.f32.mrb[0].mxu0
      %577 = vmatprep.mubr.f32.mxu0 0.0
      %578 = vmatmul.mubr.f32.gmra.mrb[0].mxu0 %v478
      %v579 = vpop.f32.mrb[0].mxu0
      %v580 = vadd.f32 %v456, %v579
      %v581 = vpop.f32.mrb[0].mxu0
      %582 = vmatprep.mubr.f32.mxu0 0.0
      %583 = vmatmul.mubr.f32.gmra.mrb[0].mxu0 %v481
      %v584 = vpop.f32.mrb[0].mxu0
      %v585 = vadd.f32 %v456, %v584
      %v586 = vpop.f32.mrb[0].mxu0
      %587 = vdwg.mxu0
      %v588 = vld [vmem:[%s431] sm:$0xff]
      %v589 = vld [vmem:[%s431 + $0x8] sm:$0xff]
      %v590 = vld [vmem:[%s431 + $0x10] sm:$0xff]
      %v591 = vld [vmem:[%s431 + $0x18] sm:$0xff]
      %v592 = vld [vmem:[%s431 + $0x20] sm:$0xff]
      %v593 = vld [vmem:[%s431 + $0x28] sm:$0xff]
      %v594 = vld [vmem:[%s431 + $0x30] sm:$0xff]
      %v595 = vld [vmem:[%s431 + $0x38] sm:$0xff]
      %v596 = vadd.f32 %v588, %v550
      %v597 = vadd.f32 %v589, %v555
      %v598 = vadd.f32 %v590, %v560
      %v599 = vadd.f32 %v591, %v565
      %v600 = vadd.f32 %v592, %v570
      %v601 = vadd.f32 %v593, %v575
      %v602 = vadd.f32 %v594, %v580
      %v603 = vadd.f32 %v595, %v585
      %v604 = vld [vmem:[%s4] sm:$0x1]
      %v605 = vld [vmem:[%s5] sm:$0x1]
      %v606 = vsel %vm458, %v596, 0.0
      %607 = vadd.xlane.f32.xlu0 %v606
      %v608 = vpop.xlane.xlu0 %607
      %v609 = vsel %vm458, %v597, 0.0
      %610 = vadd.xlane.f32.xlu0 %v609
      %v611 = vpop.xlane.xlu0 %610
      %v612 = vsel %vm458, %v598, 0.0
      %613 = vadd.xlane.f32.xlu0 %v612
      %v614 = vpop.xlane.xlu0 %613
      %v615 = vsel %vm458, %v599, 0.0
      %616 = vadd.xlane.f32.xlu0 %v615
      %v617 = vpop.xlane.xlu0 %616
      %v618 = vsel %vm458, %v600, 0.0
      %619 = vadd.xlane.f32.xlu0 %v618
      %v620 = vpop.xlane.xlu0 %619
      %v621 = vsel %vm458, %v601, 0.0
      %622 = vadd.xlane.f32.xlu0 %v621
      %v623 = vpop.xlane.xlu0 %622
      %v624 = vsel %vm458, %v602, 0.0
      %625 = vadd.xlane.f32.xlu0 %v624
      %v626 = vpop.xlane.xlu0 %625
      %v627 = vsel %vm458, %v603, 0.0
      %628 = vadd.xlane.f32.xlu0 %v627
      %v629 = vpop.xlane.xlu0 %628
      %v630 = vrcp.pop 32.0
      %v631 = vmul.f32 %v608, %v630
      %v632 = vmul.f32 %v611, %v630
      %v633 = vmul.f32 %v614, %v630
      %v634 = vmul.f32 %v617, %v630
      %v635 = vmul.f32 %v620, %v630
      %v636 = vmul.f32 %v623, %v630
      %v637 = vmul.f32 %v626, %v630
      %v638 = vmul.f32 %v629, %v630
      %v639 = vsub.f32 %v596, %v631
      %v640 = vsub.f32 %v597, %v632
      %v641 = vsub.f32 %v598, %v633
      %v642 = vsub.f32 %v599, %v634
      %v643 = vsub.f32 %v600, %v635
      %v644 = vsub.f32 %v601, %v636
      %v645 = vsub.f32 %v602, %v637
      %v646 = vsub.f32 %v603, %v638
      %v647 = vmul.f32 %v639, %v639
      %v648 = vmul.f32 %v640, %v640
      %v649 = vmul.f32 %v641, %v641
      %v650 = vmul.f32 %v642, %v642
      %v651 = vmul.f32 %v643, %v643
      %v652 = vmul.f32 %v644, %v644
      %v653 = vmul.f32 %v645, %v645
      %v654 = vmul.f32 %v646, %v646
      %v655 = vsel %vm458, %v647, 0.0
      %656 = vadd.xlane.f32.xlu0 %v655
      %v657 = vpop.xlane.xlu0 %656
      %v658 = vsel %vm458, %v648, 0.0
      %659 = vadd.xlane.f32.xlu0 %v658
      %v660 = vpop.xlane.xlu0 %659
      %v661 = vsel %vm458, %v649, 0.0
      %662 = vadd.xlane.f32.xlu0 %v661
      %v663 = vpop.xlane.xlu0 %662
      %v664 = vsel %vm458, %v650, 0.0
      %665 = vadd.xlane.f32.xlu0 %v664
      %v666 = vpop.xlane.xlu0 %665
      %v667 = vsel %vm458, %v651, 0.0
      %668 = vadd.xlane.f32.xlu0 %v667
      %v669 = vpop.xlane.xlu0 %668
      %v670 = vsel %vm458, %v652, 0.0
      %671 = vadd.xlane.f32.xlu0 %v670
      %v672 = vpop.xlane.xlu0 %671
      %v673 = vsel %vm458, %v653, 0.0
      %674 = vadd.xlane.f32.xlu0 %v673
      %v675 = vpop.xlane.xlu0 %674
      %v676 = vsel %vm458, %v654, 0.0
      %677 = vadd.xlane.f32.xlu0 %v676
      %v678 = vpop.xlane.xlu0 %677
      %v679 = vmul.f32 %v657, %v630
      %v680 = vmul.f32 %v660, %v630
      %v681 = vmul.f32 %v663, %v630
      %v682 = vmul.f32 %v666, %v630
      %v683 = vmul.f32 %v669, %v630
      %v684 = vmul.f32 %v672, %v630
      %v685 = vmul.f32 %v675, %v630
      %v686 = vmul.f32 %v678, %v630
      %v687 = vadd.f32 %v679, 1e-05
      %v688 = vadd.f32 %v680, 1e-05
      %v689 = vadd.f32 %v681, 1e-05
      %v690 = vadd.f32 %v682, 1e-05
      %v691 = vadd.f32 %v683, 1e-05
      %v692 = vadd.f32 %v684, 1e-05
      %v693 = vadd.f32 %v685, 1e-05
      %v694 = vadd.f32 %v686, 1e-05
      %v695 = vrsqrt.pop %v687
      %v696 = vrsqrt.pop %v688
      %v697 = vrsqrt.pop %v689
      %v698 = vrsqrt.pop %v690
      %v699 = vrsqrt.pop %v691
      %v700 = vrsqrt.pop %v692
      %v701 = vrsqrt.pop %v693
      %v702 = vrsqrt.pop %v694
      %v703 = vmul.f32 %v639, %v695
      %v704 = vmul.f32 %v640, %v696
      %v705 = vmul.f32 %v641, %v697
      %v706 = vmul.f32 %v642, %v698
      %v707 = vmul.f32 %v643, %v699
      %v708 = vmul.f32 %v644, %v700
      %v709 = vmul.f32 %v645, %v701
      %v710 = vmul.f32 %v646, %v702
      %v712 = vlaneseq
      %v713 = vshrl.u32 %v712, 7
      %v714 = vsub.s32 0, %v713
      %v715 = vrot.slane %v604, %v714
      %v717 = vmul.f32 %v703, %v715
      %v718 = vmul.f32 %v704, %v715
      %v719 = vmul.f32 %v705, %v715
      %v720 = vmul.f32 %v706, %v715
      %v721 = vmul.f32 %v707, %v715
      %v722 = vmul.f32 %v708, %v715
      %v723 = vmul.f32 %v709, %v715
      %v724 = vmul.f32 %v710, %v715
      %v726 = vlaneseq
      %v727 = vshrl.u32 %v726, 7
      %v728 = vsub.s32 0, %v727
      %v729 = vrot.slane %v605, %v728
      %v731 = vadd.f32 %v717, %v729
      %v732 = vadd.f32 %v718, %v729
      %v733 = vadd.f32 %v719, %v729
      %v734 = vadd.f32 %v720, %v729
      %v735 = vadd.f32 %v721, %v729
      %v736 = vadd.f32 %v722, %v729
      %v737 = vadd.f32 %v723, %v729
      %v738 = vadd.f32 %v724, %v729
      %v739 = vld [vmem:[%s6] sm:$0xff]
      %v740 = vld [vmem:[%s6 + $0x8] sm:$0xff]
      %v741 = vld [vmem:[%s6 + $0x10] sm:$0xff]
      %v742 = vld [vmem:[%s6 + $0x18] sm:$0xff]
      %v743 = vld [vmem:[%s7] sm:$0x1]
      %v745 = vlaneseq
      %v746 = vshrl.u32 %v745, 7
      %v747 = vsub.s32 0, %v746
      %v748 = vrot.slane %v743, %v747
      %v751 = vsel %vm458, %v731, 0
      %v754 = vsel %vm458, %v732, 0
      %v757 = vsel %vm458, %v733, 0
      %v760 = vsel %vm458, %v734, 0
      %v763 = vsel %vm458, %v735, 0
      %v766 = vsel %vm458, %v736, 0
      %v769 = vsel %vm458, %v737, 0
      %v772 = vsel %vm458, %v738, 0
      %774 = vmatprep.subr.mxu0 0.0
      %775 = vmatpush1.msra.mxu0 %v739
      %776 = vmatprep.subr.mxu0 0.0
      %777 = vmatpush1.msra.mxu0 %v740
      %778 = vmatprep.subr.mxu0 0.0
      %779 = vmatpush1.msra.mxu0 %v741
      %780 = vmatprep.subr.mxu0 0.0
      %781 = vmatpush1.msra.mxu0 %v742
      %782 = vmatprep.subr.mxu0 0.0
      %783 = vmatpush1.msra.mxu0 0.0
      %784 = vmatprep.subr.mxu0 0.0
      %785 = vmatpush1.msra.mxu0 0.0
      %786 = vmatprep.subr.mxu0 0.0
      %787 = vmatpush1.msra.mxu0 0.0
      %788 = vmatprep.subr.mxu0 0.0
      %789 = vmatpush1.msra.mxu0 0.0
      %790 = vmatprep.subr.mxu0 0.0
      %791 = vmatpush1.msra.mxu0 0.0
      %792 = vmatprep.subr.mxu0 0.0
      %793 = vmatpush1.msra.mxu0 0.0
      %794 = vmatprep.subr.mxu0 0.0
      %795 = vmatpush1.msra.mxu0 0.0
      %796 = vmatprep.subr.mxu0 0.0
      %797 = vmatpush1.msra.mxu0 0.0
      %798 = vmatprep.subr.mxu0 0.0
      %799 = vmatpush1.msra.mxu0 0.0
      %800 = vmatprep.subr.mxu0 0.0
      %801 = vmatpush1.msra.mxu0 0.0
      %802 = vmatprep.subr.mxu0 0.0
      %803 = vmatpush1.msra.mxu0 0.0
      %804 = vmatprep.subr.mxu0 0.0
      %805 = vmatpush1.msra.mxu0 0.0
      %806 = vmatprep.subr.mxu0 0.0
      %807 = vmatpush1.msra.mxu0 0.0
      %808 = vmatprep.subr.mxu0 0.0
      %809 = vmatpush1.msra.mxu0 0.0
      %810 = vmatprep.subr.mxu0 0.0
      %811 = vmatpush1.msra.mxu0 0.0
      %812 = vmatprep.subr.mxu0 0.0
      %813 = vmatpush1.msra.mxu0 0.0
      %814 = vmatprep.subr.mxu0 0.0
      %815 = vmatpush1.msra.mxu0 0.0
      %816 = vmatprep.subr.mxu0 0.0
      %817 = vmatpush1.msra.mxu0 0.0
      %818 = vmatprep.subr.mxu0 0.0
      %819 = vmatpush1.msra.mxu0 0.0
      %820 = vmatprep.subr.mxu0 0.0
      %821 = vmatpush1.msra.mxu0 0.0
      %822 = vmatprep.subr.mxu0 0.0
      %823 = vmatpush1.msra.mxu0 0.0
      %824 = vmatprep.subr.mxu0 0.0
      %825 = vmatpush1.msra.mxu0 0.0
      %826 = vmatprep.subr.mxu0 0.0
      %827 = vmatpush1.msra.mxu0 0.0
      %828 = vmatprep.subr.mxu0 0.0
      %829 = vmatpush1.msra.mxu0 0.0
      %830 = vmatprep.subr.mxu0 0.0
      %831 = vmatpush1.msra.mxu0 0.0
      %832 = vmatprep.subr.mxu0 0.0
      %833 = vmatpush1.msra.mxu0 0.0
      %834 = vmatprep.subr.mxu0 0.0
      %835 = vmatpush1.msra.mxu0 0.0
      %836 = vmatprep.subr.mxu0 0.0
      %837 = vmatpush1.msra.mxu0 0.0
      %838 = vmatprep.mubr.f32.mxu0 0.0
      %839 = vmatmul.mubr.f32.gmra.mrb[0].mxu0 %v751
      %v840 = vpop.f32.mrb[0].mxu0
      %v841 = vadd.f32 %v748, %v840
      %v842 = vpop.f32.mrb[0].mxu0
      %843 = vmatprep.mubr.f32.mxu0 0.0
      %844 = vmatmul.mubr.f32.gmra.mrb[0].mxu0 %v754
      %v845 = vpop.f32.mrb[0].mxu0
      %v846 = vadd.f32 %v748, %v845
      %v847 = vpop.f32.mrb[0].mxu0
      %848 = vmatprep.mubr.f32.mxu0 0.0
      %849 = vmatmul.mubr.f32.gmra.mrb[0].mxu0 %v757
      %v850 = vpop.f32.mrb[0].mxu0
      %v851 = vadd.f32 %v748, %v850
      %v852 = vpop.f32.mrb[0].mxu0
      %853 = vmatprep.mubr.f32.mxu0 0.0
      %854 = vmatmul.mubr.f32.gmra.mrb[0].mxu0 %v760
      %v855 = vpop.f32.mrb[0].mxu0
      %v856 = vadd.f32 %v748, %v855
      %v857 = vpop.f32.mrb[0].mxu0
      %858 = vmatprep.mubr.f32.mxu0 0.0
      %859 = vmatmul.mubr.f32.gmra.mrb[0].mxu0 %v763
      %v860 = vpop.f32.mrb[0].mxu0
      %v861 = vadd.f32 %v748, %v860
      %v862 = vpop.f32.mrb[0].mxu0
      %863 = vmatprep.mubr.f32.mxu0 0.0
      %864 = vmatmul.mubr.f32.gmra.mrb[0].mxu0 %v766
      %v865 = vpop.f32.mrb[0].mxu0
      %v866 = vadd.f32 %v748, %v865
      %v867 = vpop.f32.mrb[0].mxu0
      %868 = vmatprep.mubr.f32.mxu0 0.0
      %869 = vmatmul.mubr.f32.gmra.mrb[0].mxu0 %v769
      %v870 = vpop.f32.mrb[0].mxu0
      %v871 = vadd.f32 %v748, %v870
      %v872 = vpop.f32.mrb[0].mxu0
      %873 = vmatprep.mubr.f32.mxu0 0.0
      %874 = vmatmul.mubr.f32.gmra.mrb[0].mxu0 %v772
      %v875 = vpop.f32.mrb[0].mxu0
      %v876 = vadd.f32 %v748, %v875
      %v877 = vpop.f32.mrb[0].mxu0
      %878 = vdwg.mxu0
      %v879 = vmax.f32 %v841, 0.0
      %v880 = vmax.f32 %v846, 0.0
      %v881 = vmax.f32 %v851, 0.0
      %v882 = vmax.f32 %v856, 0.0
      %v883 = vmax.f32 %v861, 0.0
      %v884 = vmax.f32 %v866, 0.0
      %v885 = vmax.f32 %v871, 0.0
      %v886 = vmax.f32 %v876, 0.0
      %v887 = vld [vmem:[%s8] sm:$0xff]
      %v888 = vld [vmem:[%s8 + $0x8] sm:$0xff]
      %v889 = vld [vmem:[%s8 + $0x10] sm:$0xff]
      %v890 = vld [vmem:[%s8 + $0x18] sm:$0xff]
      %v891 = vld [vmem:[%s8 + $0x20] sm:$0xff]
      %v892 = vld [vmem:[%s8 + $0x28] sm:$0xff]
      %v893 = vld [vmem:[%s8 + $0x30] sm:$0xff]
      %v894 = vld [vmem:[%s8 + $0x38] sm:$0xff]
      %v895 = vld [vmem:[%s9] sm:$0x1]
      %v897 = vlaneseq
      %v898 = vshrl.u32 %v897, 7
      %v899 = vsub.s32 0, %v898
      %v900 = vrot.slane %v895, %v899
      %vm902 = vcmask 523264
      %v904 = vsel %vm902, %v879, 0
      %v907 = vsel %vm902, %v880, 0
      %v910 = vsel %vm902, %v881, 0
      %v913 = vsel %vm902, %v882, 0
      %v916 = vsel %vm902, %v883, 0
      %v919 = vsel %vm902, %v884, 0
      %v922 = vsel %vm902, %v885, 0
      %v925 = vsel %vm902, %v886, 0
      %927 = vmatprep.subr.mxu0 0.0
      %928 = vmatpush1.msra.mxu0 %v887
      %929 = vmatprep.subr.mxu0 0.0
      %930 = vmatpush1.msra.mxu0 %v888
      %931 = vmatprep.subr.mxu0 0.0
      %932 = vmatpush1.msra.mxu0 %v889
      %933 = vmatprep.subr.mxu0 0.0
      %934 = vmatpush1.msra.mxu0 %v890
      %935 = vmatprep.subr.mxu0 0.0
      %936 = vmatpush1.msra.mxu0 %v891
      %937 = vmatprep.subr.mxu0 0.0
      %938 = vmatpush1.msra.mxu0 %v892
      %939 = vmatprep.subr.mxu0 0.0
      %940 = vmatpush1.msra.mxu0 %v893
      %941 = vmatprep.subr.mxu0 0.0
      %942 = vmatpush1.msra.mxu0 %v894
      %943 = vmatprep.subr.mxu0 0.0
      %944 = vmatpush1.msra.mxu0 0.0
      %945 = vmatprep.subr.mxu0 0.0
      %946 = vmatpush1.msra.mxu0 0.0
      %947 = vmatprep.subr.mxu0 0.0
      %948 = vmatpush1.msra.mxu0 0.0
      %949 = vmatprep.subr.mxu0 0.0
      %950 = vmatpush1.msra.mxu0 0.0
      %951 = vmatprep.subr.mxu0 0.0
      %952 = vmatpush1.msra.mxu0 0.0
      %953 = vmatprep.subr.mxu0 0.0
      %954 = vmatpush1.msra.mxu0 0.0
      %955 = vmatprep.subr.mxu0 0.0
      %956 = vmatpush1.msra.mxu0 0.0
      %957 = vmatprep.subr.mxu0 0.0
      %958 = vmatpush1.msra.mxu0 0.0
      %959 = vmatprep.subr.mxu0 0.0
      %960 = vmatpush1.msra.mxu0 0.0
      %961 = vmatprep.subr.mxu0 0.0
      %962 = vmatpush1.msra.mxu0 0.0
      %963 = vmatprep.subr.mxu0 0.0
      %964 = vmatpush1.msra.mxu0 0.0
      %965 = vmatprep.subr.mxu0 0.0
      %966 = vmatpush1.msra.mxu0 0.0
      %967 = vmatprep.subr.mxu0 0.0
      %968 = vmatpush1.msra.mxu0 0.0
      %969 = vmatprep.subr.mxu0 0.0
      %970 = vmatpush1.msra.mxu0 0.0
      %971 = vmatprep.subr.mxu0 0.0
      %972 = vmatpush1.msra.mxu0 0.0
      %973 = vmatprep.subr.mxu0 0.0
      %974 = vmatpush1.msra.mxu0 0.0
      %975 = vmatprep.subr.mxu0 0.0
      %976 = vmatpush1.msra.mxu0 0.0
      %977 = vmatprep.subr.mxu0 0.0
      %978 = vmatpush1.msra.mxu0 0.0
      %979 = vmatprep.subr.mxu0 0.0
      %980 = vmatpush1.msra.mxu0 0.0
      %981 = vmatprep.subr.mxu0 0.0
      %982 = vmatpush1.msra.mxu0 0.0
      %983 = vmatprep.subr.mxu0 0.0
      %984 = vmatpush1.msra.mxu0 0.0
      %985 = vmatprep.subr.mxu0 0.0
      %986 = vmatpush1.msra.mxu0 0.0
      %987 = vmatprep.subr.mxu0 0.0
      %988 = vmatpush1.msra.mxu0 0.0
      %989 = vmatprep.subr.mxu0 0.0
      %990 = vmatpush1.msra.mxu0 0.0
      %991 = vmatprep.mubr.f32.mxu0 0.0
      %992 = vmatmul.mubr.f32.gmra.mrb[0].mxu0 %v904
      %v993 = vpop.f32.mrb[0].mxu0
      %v994 = vadd.f32 %v900, %v993
      %v995 = vpop.f32.mrb[0].mxu0
      %996 = vmatprep.mubr.f32.mxu0 0.0
      %997 = vmatmul.mubr.f32.gmra.mrb[0].mxu0 %v907
      %v998 = vpop.f32.mrb[0].mxu0
      %v999 = vadd.f32 %v900, %v998
      %v1000 = vpop.f32.mrb[0].mxu0
      %1001 = vmatprep.mubr.f32.mxu0 0.0
      %1002 = vmatmul.mubr.f32.gmra.mrb[0].mxu0 %v910
      %v1003 = vpop.f32.mrb[0].mxu0
      %v1004 = vadd.f32 %v900, %v1003
      %v1005 = vpop.f32.mrb[0].mxu0
      %1006 = vmatprep.mubr.f32.mxu0 0.0
      %1007 = vmatmul.mubr.f32.gmra.mrb[0].mxu0 %v913
      %v1008 = vpop.f32.mrb[0].mxu0
      %v1009 = vadd.f32 %v900, %v1008
      %v1010 = vpop.f32.mrb[0].mxu0
      %1011 = vmatprep.mubr.f32.mxu0 0.0
      %1012 = vmatmul.mubr.f32.gmra.mrb[0].mxu0 %v916
      %v1013 = vpop.f32.mrb[0].mxu0
      %v1014 = vadd.f32 %v900, %v1013
      %v1015 = vpop.f32.mrb[0].mxu0
      %1016 = vmatprep.mubr.f32.mxu0 0.0
      %1017 = vmatmul.mubr.f32.gmra.mrb[0].mxu0 %v919
      %v1018 = vpop.f32.mrb[0].mxu0
      %v1019 = vadd.f32 %v900, %v1018
      %v1020 = vpop.f32.mrb[0].mxu0
      %1021 = vmatprep.mubr.f32.mxu0 0.0
      %1022 = vmatmul.mubr.f32.gmra.mrb[0].mxu0 %v922
      %v1023 = vpop.f32.mrb[0].mxu0
      %v1024 = vadd.f32 %v900, %v1023
      %v1025 = vpop.f32.mrb[0].mxu0
      %1026 = vmatprep.mubr.f32.mxu0 0.0
      %1027 = vmatmul.mubr.f32.gmra.mrb[0].mxu0 %v925
      %v1028 = vpop.f32.mrb[0].mxu0
      %v1029 = vadd.f32 %v900, %v1028
      %v1030 = vpop.f32.mrb[0].mxu0
      %1031 = vdwg.mxu0
      %v1032 = vadd.f32 %v731, %v994
      %v1033 = vadd.f32 %v732, %v999
      %v1034 = vadd.f32 %v733, %v1004
      %v1035 = vadd.f32 %v734, %v1009
      %v1036 = vadd.f32 %v735, %v1014
      %v1037 = vadd.f32 %v736, %v1019
      %v1038 = vadd.f32 %v737, %v1024
      %v1039 = vadd.f32 %v738, %v1029
      %v1040 = vld [vmem:[%s10] sm:$0x1]
      %v1041 = vld [vmem:[%s11] sm:$0x1]
      %v1042 = vsel %vm458, %v1032, 0.0
      %1043 = vadd.xlane.f32.xlu0 %v1042
      %v1044 = vpop.xlane.xlu0 %1043
      %v1045 = vsel %vm458, %v1033, 0.0
      %1046 = vadd.xlane.f32.xlu0 %v1045
      %v1047 = vpop.xlane.xlu0 %1046
      %v1048 = vsel %vm458, %v1034, 0.0
      %1049 = vadd.xlane.f32.xlu0 %v1048
      %v1050 = vpop.xlane.xlu0 %1049
      %v1051 = vsel %vm458, %v1035, 0.0
      %1052 = vadd.xlane.f32.xlu0 %v1051
      %v1053 = vpop.xlane.xlu0 %1052
      %v1054 = vsel %vm458, %v1036, 0.0
      %1055 = vadd.xlane.f32.xlu0 %v1054
      %v1056 = vpop.xlane.xlu0 %1055
      %v1057 = vsel %vm458, %v1037, 0.0
      %1058 = vadd.xlane.f32.xlu0 %v1057
      %v1059 = vpop.xlane.xlu0 %1058
      %v1060 = vsel %vm458, %v1038, 0.0
      %1061 = vadd.xlane.f32.xlu0 %v1060
      %v1062 = vpop.xlane.xlu0 %1061
      %v1063 = vsel %vm458, %v1039, 0.0
      %1064 = vadd.xlane.f32.xlu0 %v1063
      %v1065 = vpop.xlane.xlu0 %1064
      %v1066 = vmul.f32 %v1044, %v630
      %v1067 = vmul.f32 %v1047, %v630
      %v1068 = vmul.f32 %v1050, %v630
      %v1069 = vmul.f32 %v1053, %v630
      %v1070 = vmul.f32 %v1056, %v630
      %v1071 = vmul.f32 %v1059, %v630
      %v1072 = vmul.f32 %v1062, %v630
      %v1073 = vmul.f32 %v1065, %v630
      %v1074 = vsub.f32 %v1032, %v1066
      %v1075 = vsub.f32 %v1033, %v1067
      %v1076 = vsub.f32 %v1034, %v1068
      %v1077 = vsub.f32 %v1035, %v1069
      %v1078 = vsub.f32 %v1036, %v1070
      %v1079 = vsub.f32 %v1037, %v1071
      %v1080 = vsub.f32 %v1038, %v1072
      %v1081 = vsub.f32 %v1039, %v1073
      %v1082 = vmul.f32 %v1074, %v1074
      %v1083 = vmul.f32 %v1075, %v1075
      %v1084 = vmul.f32 %v1076, %v1076
      %v1085 = vmul.f32 %v1077, %v1077
      %v1086 = vmul.f32 %v1078, %v1078
      %v1087 = vmul.f32 %v1079, %v1079
      %v1088 = vmul.f32 %v1080, %v1080
      %v1089 = vmul.f32 %v1081, %v1081
      %v1090 = vsel %vm458, %v1082, 0.0
      %1091 = vadd.xlane.f32.xlu0 %v1090
      %v1092 = vpop.xlane.xlu0 %1091
      %v1093 = vsel %vm458, %v1083, 0.0
      %1094 = vadd.xlane.f32.xlu0 %v1093
      %v1095 = vpop.xlane.xlu0 %1094
      %v1096 = vsel %vm458, %v1084, 0.0
      %1097 = vadd.xlane.f32.xlu0 %v1096
      %v1098 = vpop.xlane.xlu0 %1097
      %v1099 = vsel %vm458, %v1085, 0.0
      %1100 = vadd.xlane.f32.xlu0 %v1099
      %v1101 = vpop.xlane.xlu0 %1100
      %v1102 = vsel %vm458, %v1086, 0.0
      %1103 = vadd.xlane.f32.xlu0 %v1102
      %v1104 = vpop.xlane.xlu0 %1103
      %v1105 = vsel %vm458, %v1087, 0.0
      %1106 = vadd.xlane.f32.xlu0 %v1105
      %v1107 = vpop.xlane.xlu0 %1106
      %v1108 = vsel %vm458, %v1088, 0.0
      %1109 = vadd.xlane.f32.xlu0 %v1108
      %v1110 = vpop.xlane.xlu0 %1109
      %v1111 = vsel %vm458, %v1089, 0.0
      %1112 = vadd.xlane.f32.xlu0 %v1111
      %v1113 = vpop.xlane.xlu0 %1112
      %v1114 = vmul.f32 %v1092, %v630
      %v1115 = vmul.f32 %v1095, %v630
      %v1116 = vmul.f32 %v1098, %v630
      %v1117 = vmul.f32 %v1101, %v630
      %v1118 = vmul.f32 %v1104, %v630
      %v1119 = vmul.f32 %v1107, %v630
      %v1120 = vmul.f32 %v1110, %v630
      %v1121 = vmul.f32 %v1113, %v630
      %v1122 = vadd.f32 %v1114, 1e-05
      %v1123 = vadd.f32 %v1115, 1e-05
      %v1124 = vadd.f32 %v1116, 1e-05
      %v1125 = vadd.f32 %v1117, 1e-05
      %v1126 = vadd.f32 %v1118, 1e-05
      %v1127 = vadd.f32 %v1119, 1e-05
      %v1128 = vadd.f32 %v1120, 1e-05
      %v1129 = vadd.f32 %v1121, 1e-05
      %v1130 = vrsqrt.pop %v1122
      %v1131 = vrsqrt.pop %v1123
      %v1132 = vrsqrt.pop %v1124
      %v1133 = vrsqrt.pop %v1125
      %v1134 = vrsqrt.pop %v1126
      %v1135 = vrsqrt.pop %v1127
      %v1136 = vrsqrt.pop %v1128
      %v1137 = vrsqrt.pop %v1129
      %v1138 = vmul.f32 %v1074, %v1130
      %v1139 = vmul.f32 %v1075, %v1131
      %v1140 = vmul.f32 %v1076, %v1132
      %v1141 = vmul.f32 %v1077, %v1133
      %v1142 = vmul.f32 %v1078, %v1134
      %v1143 = vmul.f32 %v1079, %v1135
      %v1144 = vmul.f32 %v1080, %v1136
      %v1145 = vmul.f32 %v1081, %v1137
      %v1147 = vlaneseq
      %v1148 = vshrl.u32 %v1147, 7
      %v1149 = vsub.s32 0, %v1148
      %v1150 = vrot.slane %v1040, %v1149
      %v1152 = vmul.f32 %v1138, %v1150
      %v1153 = vmul.f32 %v1139, %v1150
      %v1154 = vmul.f32 %v1140, %v1150
      %v1155 = vmul.f32 %v1141, %v1150
      %v1156 = vmul.f32 %v1142, %v1150
      %v1157 = vmul.f32 %v1143, %v1150
      %v1158 = vmul.f32 %v1144, %v1150
      %v1159 = vmul.f32 %v1145, %v1150
      %v1161 = vlaneseq
      %v1162 = vshrl.u32 %v1161, 7
      %v1163 = vsub.s32 0, %v1162
      %v1164 = vrot.slane %v1041, %v1163
      %v1166 = vadd.f32 %v1152, %v1164
      %v1167 = vadd.f32 %v1153, %v1164
      %v1168 = vadd.f32 %v1154, %v1164
      %v1169 = vadd.f32 %v1155, %v1164
      %v1170 = vadd.f32 %v1156, %v1164
      %v1171 = vadd.f32 %v1157, %v1164
      %v1172 = vadd.f32 %v1158, %v1164
      %v1173 = vadd.f32 %v1159, %v1164
      %1174 = vst.msk [vmem:[%s437] sm:$0xff] %vm458, %v1166
      %1175 = vst.msk [vmem:[%s437 + $0x8] sm:$0xff] %vm458, %v1167
      %1176 = vst.msk [vmem:[%s437 + $0x10] sm:$0xff] %vm458, %v1168
      %1177 = vst.msk [vmem:[%s437 + $0x18] sm:$0xff] %vm458, %v1169
      %1178 = vst.msk [vmem:[%s437 + $0x20] sm:$0xff] %vm458, %v1170
      %1179 = vst.msk [vmem:[%s437 + $0x28] sm:$0xff] %vm458, %v1171
      %1180 = vst.msk [vmem:[%s437 + $0x30] sm:$0xff] %vm458, %v1172
      %1181 = vst.msk [vmem:[%s437 + $0x38] sm:$0xff] %vm458, %v1173
      %s1182 = smul.u32 8, %s23
      %p1183 = scmp.lt.s32.totalorder %s1182, 15
      %s1184 = scalar_select %p1183, %s1182, 15
      %s1185 = smul.addr %s1184, 8
      %s1186 = scalar_lea.vmem %s12, %s1185
      // Predicated region
      $region69: #{grit_layer.5} parent=67 // pred_check
        %p1187 = pneg %p303
      $region70: #{grit_layer.5} parent=67 // pred_check_branch
        %1189 = sbr.rel (%p1187) target = $region72
      $region71: #{grit_layer.5} parent=67 // pred_region
        %s1190 = smul.u32 8, %s23
      $region72: #{grit_layer.5} parent=67 // pred_fallthru
        _
    $region68: #{grit_layer.5} parent=5 // pred_fallthru
      _
    %p1191 = scmp.le.s32.totalorder 2, %s18
    // Predicated region
    $region73: #{grit_layer.5} parent=5 // pred_check
      %p1192 = pneg %p1191
    $region74: #{grit_layer.5} parent=5 // pred_check_branch
      %1194 = sbr.rel (%p1192) target = $region76
    $region75: #{grit_layer.5} parent=5 // pred_region
      %s1195 = ssub.s32 %s18, 2
      // Predicated region
      $region77: #{grit_layer.5} parent=75 // pred_check
        %p1196 = pneg %p309
      $region78: #{grit_layer.5} parent=75 // pred_check_branch
        %1198 = sbr.rel (%p1196) target = $region80
      $region79: #{grit_layer.5} parent=75 // pred_region
        %s1199 = smul.u32 8, %s24
        %p1200 = scmp.lt.s32.totalorder %s1199, 15
        %s1201 = scalar_select %p1200, %s1199, 15
        %s1202 = smul.addr %s1201, 8
        %s1203 = scalar_lea.vmem %s12, %s1202
      $region80: #{grit_layer.5} parent=75 // pred_fallthru
        _
    $region76: #{grit_layer.5} parent=5 // pred_fallthru
      _
  $region6: #{grit_layer.5} parent=0 // loop_footer
    %s22 = sadd.s32 1, %s18
  $region7: #{grit_layer.5} parent=0 // loop_footer_branch
    %17 = sbr.rel target = $region3
  $region8: #{grit_layer.5} parent=0 // loop_exit
    _

// kernel: grit_layer.4
$region0: #{grit_layer.4}
  #allocation0 [shape = 'u32[]', space=smem, size = 0x4, offset = 0x4, fixed_abs, tag = 'smem constant byte address 0x4 - core index']
  #allocation1 [shape = 'u32[144,128]{1,0:T(1,128)}', space=vmem, size = 0x12000, scoped, tag = 'internal scratch']
  #allocation2 [shape = 'f32[4,64,1]{2,1,0:T(8,128)}', space=vmem, size = 0x20000, scoped, tag = 'scratch operand']
  #allocation3 [shape = 'f32[4,64,1]{2,1,0:T(8,128)}', space=vmem, size = 0x20000, scoped, tag = 'scratch operand']
  #allocation4 [shape = 'f32[4,64,8]{2,1,0:T(8,128)}', space=vmem, size = 0x20000, scoped, tag = 'scratch operand']
  %s0 = inlined_call_operand.vmem [shape: bf16[128,32], index: 0, kind: input, shape index: {}]
  %s1 = inlined_call_operand.vmem [shape: bf16[128,32], index: 1, kind: input, shape index: {}]
  %s2 = inlined_call_operand.vmem [shape: bf16[128,32], index: 2, kind: input, shape index: {}]
  %s3 = inlined_call_operand.vmem [shape: bf16[4,128,128], index: 3, kind: input, shape index: {}]
  %s4 = inlined_call_operand.vmem [shape: f32[128,32], index: 4, kind: output, shape index: {}]
  %s5 = sld [smem:[#allocation0]]
  $region98: #{grit_layer.4} parent=0
    _
  %s7 = ssub.s32 1, %s5
  %s8 = scalar_select 0, %s7, %s5
  $region1: #{grit_layer.4} parent=0
    #allocation5 [shape = 'u8[131072]{0}', space=vmem, size = 0x20000, scoped, tag = 'input window, operand 3']
    loop: start=0, step=1, limit=4
    $region2: #{grit_layer.4} parent=1 // loop_pre_header
      _
    $region3: #{grit_layer.4} parent=1 // loop_header
      %s10 = sphi 0, %s14
      %p11 = scmp.ge.s32.totalorder %s10, 4
      %s17 = sphi 0, %s29
      %s18 = sphi 0, %s25
      %s19 = sphi 0, %s17
      %s20 = sphi 0, %s18
      %s21 = sphi 0, %s19
      %s22 = sphi 0, %s20
      %s32 = sphi 0, %s34
      %s35 = sphi 0, %s32
      %s36 = sphi 0, %s35
      %s52 = sphi 0, %s36
      %s58 = sphi 0, %s60
      %s61 = sphi 0, %s58
      %s62 = sphi 0, %s61
      %s78 = sphi 0, %s62
      %s84 = sphi 0, %s86
      %s87 = sphi 0, %s84
      %s88 = sphi 0, %s87
      %s104 = sphi 0, %s88
      %s112 = sphi 0, %s114
      %s115 = sphi 0, %s112
      %s116 = sphi 0, %s115
      %s132 = sphi 0, %s116
      %s138 = sphi 0, %s140
      %s141 = sphi 0, %s138
      %s142 = sphi 0, %s141
      %s158 = sphi 0, %s142
    $region4: #{grit_layer.4} parent=1 // loop_header_branch
      %13 = sbr.rel (%p11) target = $region8
    $region5: #{grit_layer.4} parent=1 // loop_body
      %s15 = ssub.s32 %s10, 1
      %s16 = ssub.s32 %s10, 2
      %s23 = sadd.s32 1, %s18
      %p24 = scmp.ge.s32.totalorder %s23, 1
      %s25 = scalar_select %p24, 0, %s23
      %s26 = sadd.s32 1, %s17
      %s27 = scalar_select %p24, %s26, %s17
      %p28 = scmp.ge.s32.totalorder %s27, 2
      %s29 = scalar_select %p28, 0, %s27
      %s30 = ssub.s32 %s17, %s29
      %p31 = scmp.eq.s32.totalorder %s30, 0
      %s33 = sadd.s32 %s32, 1
      %s34 = scalar_select %p31, %s32, %s33
      %p37 = pneg %p31
      %p38 = scmp.eq.s32.totalorder %s10, 1
      %p39 = por %p37, %p38
      %p40 = scmp.ne.s32.totalorder %s32, %s35
      %p41 = scmp.eq.s32.totalorder %s10, 0
      %p42 = por %p40, %p41
      %p43 = scmp.ne.s32.totalorder %s32, %s35
      %p44 = scmp.eq.s32.totalorder %s15, 1
      %p45 = por %p43, %p44
      %p46 = scmp.ne.s32.totalorder %s35, %s36
      %p47 = scmp.eq.s32.totalorder %s15, 0
      %p48 = por %p46, %p47
      %p49 = scmp.ne.s32.totalorder %s35, %s36
      %p50 = scmp.eq.s32.totalorder %s16, 1
      %p51 = por %p49, %p50
      %p53 = scmp.ne.s32.totalorder %s36, %s52
      %p54 = scmp.eq.s32.totalorder %s16, 0
      %p55 = por %p53, %p54
      %s56 = ssub.s32 %s18, %s25
      %p57 = scmp.eq.s32.totalorder %s56, 0
      %s59 = sadd.s32 %s58, 1
      %s60 = scalar_select %p57, %s58, %s59
      %p63 = pneg %p57
      %p64 = scmp.eq.s32.totalorder %s10, 1
      %p65 = por %p63, %p64
      %p66 = scmp.ne.s32.totalorder %s58, %s61
      %p67 = scmp.eq.s32.totalorder %s10, 0
      %p68 = por %p66, %p67
      %p69 = scmp.ne.s32.totalorder %s58, %s61
      %p70 = scmp.eq.s32.totalorder %s15, 1
      %p71 = por %p69, %p70
      %p72 = scmp.ne.s32.totalorder %s61, %s62
      %p73 = scmp.eq.s32.totalorder %s15, 0
      %p74 = por %p72, %p73
      %p75 = scmp.ne.s32.totalorder %s61, %s62
      %p76 = scmp.eq.s32.totalorder %s16, 1
      %p77 = por %p75, %p76
      %p79 = scmp.ne.s32.totalorder %s62, %s78
      %p80 = scmp.eq.s32.totalorder %s16, 0
      %p81 = por %p79, %p80
      %s82 = ssub.s32 %s18, %s25
      %p83 = scmp.eq.s32.totalorder %s82, 0
      %s85 = sadd.s32 %s84, 1
      %s86 = scalar_select %p83, %s84, %s85
      %p89 = pneg %p83
      %p90 = scmp.eq.s32.totalorder %s10, 1
      %p91 = por %p89, %p90
      %p92 = scmp.ne.s32.totalorder %s84, %s87
      %p93 = scmp.eq.s32.totalorder %s10, 0
      %p94 = por %p92, %p93
      %p95 = scmp.ne.s32.totalorder %s84, %s87
      %p96 = scmp.eq.s32.totalorder %s15, 1
      %p97 = por %p95, %p96
      %p98 = scmp.ne.s32.totalorder %s87, %s88
      %p99 = scmp.eq.s32.totalorder %s15, 0
      %p100 = por %p98, %p99
      %p101 = scmp.ne.s32.totalorder %s87, %s88
      %p102 = scmp.eq.s32.totalorder %s16, 1
      %p103 = por %p101, %p102
      %p105 = scmp.ne.s32.totalorder %s88, %s104
      %p106 = scmp.eq.s32.totalorder %s16, 0
      %p107 = por %p105, %p106
      %s108 = ssub.s32 %s17, %s29
      %s109 = ssub.s32 %s18, %s25
      %s110 = sor.u32 %s108, %s109
      %p111 = scmp.eq.s32.totalorder %s110, 0
      %s113 = sadd.s32 %s112, 1
      %s114 = scalar_select %p111, %s112, %s113
      %p117 = pneg %p111
      %p118 = scmp.eq.s32.totalorder %s10, 1
      %p119 = por %p117, %p118
      %p120 = scmp.ne.s32.totalorder %s112, %s115
      %p121 = scmp.eq.s32.totalorder %s10, 0
      %p122 = por %p120, %p121
      %p123 = scmp.ne.s32.totalorder %s112, %s115
      %p124 = scmp.eq.s32.totalorder %s15, 1
      %p125 = por %p123, %p124
      %p126 = scmp.ne.s32.totalorder %s115, %s116
      %p127 = scmp.eq.s32.totalorder %s15, 0
      %p128 = por %p126, %p127
      %p129 = scmp.ne.s32.totalorder %s115, %s116
      %p130 = scmp.eq.s32.totalorder %s16, 1
      %p131 = por %p129, %p130
      %p133 = scmp.ne.s32.totalorder %s116, %s132
      %p134 = scmp.eq.s32.totalorder %s16, 0
      %p135 = por %p133, %p134
      %s136 = ssub.s32 %s17, %s29
      %p137 = scmp.eq.s32.totalorder %s136, 0
      %s139 = sadd.s32 %s138, 1
      %s140 = scalar_select %p137, %s138, %s139
      %p143 = pneg %p137
      %p144 = scmp.eq.s32.totalorder %s10, 1
      %p145 = por %p143, %p144
      %p146 = scmp.ne.s32.totalorder %s138, %s141
      %p147 = scmp.eq.s32.totalorder %s10, 0
      %p148 = por %p146, %p147
      %p149 = scmp.ne.s32.totalorder %s138, %s141
      %p150 = scmp.eq.s32.totalorder %s15, 1
      %p151 = por %p149, %p150
      %p152 = scmp.ne.s32.totalorder %s141, %s142
      %p153 = scmp.eq.s32.totalorder %s15, 0
      %p154 = por %p152, %p153
      %p155 = scmp.ne.s32.totalorder %s141, %s142
      %p156 = scmp.eq.s32.totalorder %s16, 1
      %p157 = por %p155, %p156
      %p159 = scmp.ne.s32.totalorder %s142, %s158
      %p160 = scmp.eq.s32.totalorder %s16, 0
      %p161 = por %p159, %p160
      %p162 = scmp.le.s32.totalorder 1, %s10
      %p163 = scmp.lt.s32.totalorder %s10, 3
      %p164 = pnand %p162, %p163
      %p165 = pneg %p164
      // Predicated region
      $region9: #{grit_layer.4} parent=5 // pred_check
        _
      $region10: #{grit_layer.4} parent=5 // pred_check_branch
        %167 = sbr.rel (%p164) target = $region12
      $region11: #{grit_layer.4} parent=5 // pred_region
        %s168 = ssub.s32 %s10, 1
        // Predicated region
        $region13: #{grit_layer.4} parent=11 // pred_check
          %p169 = pneg %p74
        $region14: #{grit_layer.4} parent=11 // pred_check_branch
          %171 = sbr.rel (%p169) target = $region16
        $region15: #{grit_layer.4} parent=11 // pred_region
          %s172 = smul.u32 16, %s20
          %p173 = scmp.lt.s32.totalorder %s172, 15
          %s174 = scalar_select %p173, %s172, 15
          %s175 = smul.addr %s174, 4
          %s176 = scalar_lea.vmem %s1, %s175
          %s177 = smul.u32 16, %s20
        $region16: #{grit_layer.4} parent=11 // pred_fallthru
          _
        // Predicated region
        $region17: #{grit_layer.4} parent=11 // pred_check
          %p178 = pneg %p100
        $region18: #{grit_layer.4} parent=11 // pred_check_branch
          %180 = sbr.rel (%p178) target = $region20
        $region19: #{grit_layer.4} parent=11 // pred_region
          %s181 = smul.u32 16, %s20
          %p182 = scmp.lt.s32.totalorder %s181, 15
          %s183 = scalar_select %p182, %s181, 15
          %s184 = smul.addr %s183, 4
          %s185 = scalar_lea.vmem %s2, %s184
          %s186 = smul.u32 16, %s20
        $region20: #{grit_layer.4} parent=11 // pred_fallthru
          _
      $region12: #{grit_layer.4} parent=5 // pred_fallthru
        _
      %p187 = scmp.lt.s32.totalorder %s10, 2
      // Predicated region
      $region21: #{grit_layer.4} parent=5 // pred_check
        %p188 = pneg %p187
      $region22: #{grit_layer.4} parent=5 // pred_check_branch
        %190 = sbr.rel (%p188) target = $region24
      $region23: #{grit_layer.4} parent=5 // pred_region
        // Predicated region
        $region25: #{grit_layer.4} parent=23 // pred_check
          %p191 = pneg %p42
        $region26: #{grit_layer.4} parent=23 // pred_check_branch
          %193 = sbr.rel (%p191) target = $region28
        $region27: #{grit_layer.4} parent=23 // pred_region
          %s194 = smul.u32 8, %s17
          %p195 = scmp.lt.s32.totalorder %s194, 15
          %s196 = scalar_select %p195, %s194, 15
          %s197 = smul.addr %s196, 4
          %s198 = scalar_lea.vmem %s0, %s197
          %s199 = smul.u32 8, %s17
        $region28: #{grit_layer.4} parent=23 // pred_fallthru
          _
        // Predicated region
        $region29: #{grit_layer.4} parent=23 // pred_check
          %p200 = pneg %p122
        $region30: #{grit_layer.4} parent=23 // pred_check_branch
          %202 = sbr.rel (%p200) target = $region32
        $region31: #{grit_layer.4} parent=23 // pred_region
          %s203 = sand.u32 %s112, 1
          %s204 = sand.u32 %s112, 1
          %s205 = smul.addr %s204, 128
          %s206 = scalar_lea.vmem [#allocation5], %s205
          %s207 = smul.u32 8, %s17
          %s208 = sadd.s32 %s18, %s207
          %s209 = smul.addr %s208, 4
          %s210 = scalar_lea.vmem %s3, %s209
          // Predicated region
          $region33: #{grit_layer.4} parent=31 // pred_check
            _
          $region34: #{grit_layer.4} parent=31 // pred_check_branch
            %212 = sbr.rel (0) target = $region36
          $region35: #{grit_layer.4} parent=31 // pred_region
            // Predicated region
            $region37: #{grit_layer.4} parent=35 // pred_check
              _
            $region38: #{grit_layer.4} parent=35 // pred_check_branch
              %214 = sbr.rel target = $region40
            $region39: #{grit_layer.4} parent=35 // pred_region
              // Predicated region
              $region52: #{grit_layer.4} parent=39 // pred_check
                _
              $region53: #{grit_layer.4} parent=39 // pred_check_branch
                %291 = sbr.rel (0) target = $region55
              $region54: #{grit_layer.4} parent=39 // pred_region
                loop: start=0, step=1, limit=1
                $region56: #{grit_layer.4} parent=54 // loop_pre_header
                  _
                $region57: #{grit_layer.4} parent=54 // loop_header
                  %s293 = sphi 0, %s297
                  %p294 = scmp.ge.s32.totalorder %s293, 1
                  %s298 = sphi %s210, %s210
                  %s299 = sphi %s206, %s206
                $region58: #{grit_layer.4} parent=54 // loop_header_branch
                  %296 = sbr.rel (%p294) target = $region62
                $region59: #{grit_layer.4} parent=54 // loop_body
                  _
                $region60: #{grit_layer.4} parent=54 // loop_footer
                  %s297 = sadd.s32 1, %s293
                $region61: #{grit_layer.4} parent=54 // loop_footer_branch
                  %292 = sbr.rel target = $region57
                $region62: #{grit_layer.4} parent=54 // loop_exit
                  _
                loop: start=0, step=1, limit=1
                $region63: #{grit_layer.4} parent=54 // loop_pre_header
                  _
                $region64: #{grit_layer.4} parent=54 // loop_header
                  %s302 = sphi 0, %s306
                  %p303 = scmp.ge.s32.totalorder %s302, 1
                  %s307 = sphi %s210, %s210
                  %s308 = sphi %s206, %s206
                $region65: #{grit_layer.4} parent=54 // loop_header_branch
                  %305 = sbr.rel (%p303) target = $region69
                $region66: #{grit_layer.4} parent=54 // loop_body
                  %v309 = vld [vmem:[%s307] sm:$0xf]
                  %310 = vst [vmem:[%s308] sm:$0xf] %v309
                  %v311 = vld [vmem:[%s307 + $0x4] sm:$0xf]
                  %312 = vst [vmem:[%s308 + $0x4] sm:$0xf] %v311
                  %v313 = vld [vmem:[%s307 + $0x8] sm:$0xf]
                  %314 = vst [vmem:[%s308 + $0x8] sm:$0xf] %v313
                  %v315 = vld [vmem:[%s307 + $0xc] sm:$0xf]
                  %316 = vst [vmem:[%s308 + $0xc] sm:$0xf] %v315
                  %v317 = vld [vmem:[%s307 + $0x10] sm:$0xf]
                  %318 = vst [vmem:[%s308 + $0x10] sm:$0xf] %v317
                  %v319 = vld [vmem:[%s307 + $0x14] sm:$0xf]
                  %320 = vst [vmem:[%s308 + $0x14] sm:$0xf] %v319
                  %v321 = vld [vmem:[%s307 + $0x18] sm:$0xf]
                  %322 = vst [vmem:[%s308 + $0x18] sm:$0xf] %v321
                  %v323 = vld [vmem:[%s307 + $0x1c] sm:$0xf]
                  %324 = vst [vmem:[%s308 + $0x1c] sm:$0xf] %v323
                  %v325 = vld [vmem:[%s307 + $0x40] sm:$0xf]
                  %326 = vst [vmem:[%s308 + $0x20] sm:$0xf] %v325
                  %v327 = vld [vmem:[%s307 + $0x44] sm:$0xf]
                  %328 = vst [vmem:[%s308 + $0x24] sm:$0xf] %v327
                  %v329 = vld [vmem:[%s307 + $0x48] sm:$0xf]
                  %330 = vst [vmem:[%s308 + $0x28] sm:$0xf] %v329
                  %v331 = vld [vmem:[%s307 + $0x4c] sm:$0xf]
                  %332 = vst [vmem:[%s308 + $0x2c] sm:$0xf] %v331
                  %v333 = vld [vmem:[%s307 + $0x50] sm:$0xf]
                  %334 = vst [vmem:[%s308 + $0x30] sm:$0xf] %v333
                  %v335 = vld [vmem:[%s307 + $0x54] sm:$0xf]
                  %336 = vst [vmem:[%s308 + $0x34] sm:$0xf] %v335
                  %v337 = vld [vmem:[%s307 + $0x58] sm:$0xf]
                  %338 = vst [vmem:[%s308 + $0x38] sm:$0xf] %v337
                  %v339 = vld [vmem:[%s307 + $0x5c] sm:$0xf]
                  %340 = vst [vmem:[%s308 + $0x3c] sm:$0xf] %v339
                  %v341 = vld [vmem:[%s307 + $0x80] sm:$0xf]
                  %342 = vst [vmem:[%s308 + $0x40] sm:$0xf] %v341
                  %v343 = vld [vmem:[%s307 + $0x84] sm:$0xf]
                  %344 = vst [vmem:[%s308 + $0x44] sm:$0xf] %v343
                  %v345 = vld [vmem:[%s307 + $0x88] sm:$0xf]
                  %346 = vst [vmem:[%s308 + $0x48] sm:$0xf] %v345
                  %v347 = vld [vmem:[%s307 + $0x8c] sm:$0xf]
                  %348 = vst [vmem:[%s308 + $0x4c] sm:$0xf] %v347
                  %v349 = vld [vmem:[%s307 + $0x90] sm:$0xf]
                  %350 = vst [vmem:[%s308 + $0x50] sm:$0xf] %v349
                  %v351 = vld [vmem:[%s307 + $0x94] sm:$0xf]
                  %352 = vst [vmem:[%s308 + $0x54] sm:$0xf] %v351
                  %v353 = vld [vmem:[%s307 + $0x98] sm:$0xf]
                  %354 = vst [vmem:[%s308 + $0x58] sm:$0xf] %v353
                  %v355 = vld [vmem:[%s307 + $0x9c] sm:$0xf]
                  %356 = vst [vmem:[%s308 + $0x5c] sm:$0xf] %v355
                  %v357 = vld [vmem:[%s307 + $0xc0] sm:$0xf]
                  %358 = vst [vmem:[%s308 + $0x60] sm:$0xf] %v357
                  %v359 = vld [vmem:[%s307 + $0xc4] sm:$0xf]
                  %360 = vst [vmem:[%s308 + $0x64] sm:$0xf] %v359
                  %v361 = vld [vmem:[%s307 + $0xc8] sm:$0xf]
                  %362 = vst [vmem:[%s308 + $0x68] sm:$0xf] %v361
                  %v363 = vld [vmem:[%s307 + $0xcc] sm:$0xf]
                  %364 = vst [vmem:[%s308 + $0x6c] sm:$0xf] %v363
                  %v365 = vld [vmem:[%s307 + $0xd0] sm:$0xf]
                  %366 = vst [vmem:[%s308 + $0x70] sm:$0xf] %v365
                  %v367 = vld [vmem:[%s307 + $0xd4] sm:$0xf]
                  %368 = vst [vmem:[%s308 + $0x74] sm:$0xf] %v367
                  %v369 = vld [vmem:[%s307 + $0xd8] sm:$0xf]
                  %370 = vst [vmem:[%s308 + $0x78] sm:$0xf] %v369
                  %v371 = vld [vmem:[%s307 + $0xdc] sm:$0xf]
                  %372 = vst [vmem:[%s308 + $0x7c] sm:$0xf] %v371
                $region67: #{grit_layer.4} parent=54 // loop_footer
                  %s306 = sadd.s32 1, %s302
                $region68: #{grit_layer.4} parent=54 // loop_footer_branch
                  %301 = sbr.rel target = $region64
                $region69: #{grit_layer.4} parent=54 // loop_exit
                  _
              $region55: #{grit_layer.4} parent=39 // pred_fallthru
                _
            $region40: #{grit_layer.4} parent=35 // pred_fallthru
              _
            // Predicated region
            $region41: #{grit_layer.4} parent=35 // pred_check
              _
            $region42: #{grit_layer.4} parent=35 // pred_check_branch
              %216 = sbr.rel (0) target = $region44
            $region43: #{grit_layer.4} parent=35 // pred_region
              loop: start=0, step=1, limit=1
              $region45: #{grit_layer.4} parent=43 // loop_pre_header
                _
              $region46: #{grit_layer.4} parent=43 // loop_header
                %s219 = sphi 0, %s223
                %p220 = scmp.ge.s32.totalorder %s219, 1
                %s224 = sphi %s210, %s210
                %s225 = sphi %s206, %s206
              $region47: #{grit_layer.4} parent=43 // loop_header_branch
                %222 = sbr.rel (%p220) target = $region51
              $region48: #{grit_layer.4} parent=43 // loop_body
                %v226 = vld [vmem:[%s224] sm:$0xf]
                %227 = vst [vmem:[%s225] sm:$0xf] %v226
                %v228 = vld [vmem:[%s224 + $0x4] sm:$0xf]
                %229 = vst [vmem:[%s225 + $0x4] sm:$0xf] %v228
                %v230 = vld [vmem:[%s224 + $0x8] sm:$0xf]
                %231 = vst [vmem:[%s225 + $0x8] sm:$0xf] %v230
                %v232 = vld [vmem:[%s224 + $0xc] sm:$0xf]
                %233 = vst [vmem:[%s225 + $0xc] sm:$0xf] %v232
                %v234 = vld [vmem:[%s224 + $0x10] sm:$0xf]
                %235 = vst [vmem:[%s225 + $0x10] sm:$0xf] %v234
                %v236 = vld [vmem:[%s224 + $0x14] sm:$0xf]
                %237 = vst [vmem:[%s225 + $0x14] sm:$0xf] %v236
                %v238 = vld [vmem:[%s224 + $0x18] sm:$0xf]
                %239 = vst [vmem:[%s225 + $0x18] sm:$0xf] %v238
                %v240 = vld [vmem:[%s224 + $0x1c] sm:$0xf]
                %241 = vst [vmem:[%s225 + $0x1c] sm:$0xf] %v240
                %v242 = vld [vmem:[%s224 + $0x40] sm:$0xf]
                %243 = vst [vmem:[%s225 + $0x20] sm:$0xf] %v242
                %v244 = vld [vmem:[%s224 + $0x44] sm:$0xf]
                %245 = vst [vmem:[%s225 + $0x24] sm:$0xf] %v244
                %v246 = vld [vmem:[%s224 + $0x48] sm:$0xf]
                %247 = vst [vmem:[%s225 + $0x28] sm:$0xf] %v246
                %v248 = vld [vmem:[%s224 + $0x4c] sm:$0xf]
                %249 = vst [vmem:[%s225 + $0x2c] sm:$0xf] %v248
                %v250 = vld [vmem:[%s224 + $0x50] sm:$0xf]
                %251 = vst [vmem:[%s225 + $0x30] sm:$0xf] %v250
                %v252 = vld [vmem:[%s224 + $0x54] sm:$0xf]
                %253 = vst [vmem:[%s225 + $0x34] sm:$0xf] %v252
                %v254 = vld [vmem:[%s224 + $0x58] sm:$0xf]
                %255 = vst [vmem:[%s225 + $0x38] sm:$0xf] %v254
                %v256 = vld [vmem:[%s224 + $0x5c] sm:$0xf]
                %257 = vst [vmem:[%s225 + $0x3c] sm:$0xf] %v256
                %v258 = vld [vmem:[%s224 + $0x80] sm:$0xf]
                %259 = vst [vmem:[%s225 + $0x40] sm:$0xf] %v258
                %v260 = vld [vmem:[%s224 + $0x84] sm:$0xf]
                %261 = vst [vmem:[%s225 + $0x44] sm:$0xf] %v260
                %v262 = vld [vmem:[%s224 + $0x88] sm:$0xf]
                %263 = vst [vmem:[%s225 + $0x48] sm:$0xf] %v262
                %v264 = vld [vmem:[%s224 + $0x8c] sm:$0xf]
                %265 = vst [vmem:[%s225 + $0x4c] sm:$0xf] %v264
                %v266 = vld [vmem:[%s224 + $0x90] sm:$0xf]
                %267 = vst [vmem:[%s225 + $0x50] sm:$0xf] %v266
                %v268 = vld [vmem:[%s224 + $0x94] sm:$0xf]
                %269 = vst [vmem:[%s225 + $0x54] sm:$0xf] %v268
                %v270 = vld [vmem:[%s224 + $0x98] sm:$0xf]
                %271 = vst [vmem:[%s225 + $0x58] sm:$0xf] %v270
                %v272 = vld [vmem:[%s224 + $0x9c] sm:$0xf]
                %273 = vst [vmem:[%s225 + $0x5c] sm:$0xf] %v272
                %v274 = vld [vmem:[%s224 + $0xc0] sm:$0xf]
                %275 = vst [vmem:[%s225 + $0x60] sm:$0xf] %v274
                %v276 = vld [vmem:[%s224 + $0xc4] sm:$0xf]
                %277 = vst [vmem:[%s225 + $0x64] sm:$0xf] %v276
                %v278 = vld [vmem:[%s224 + $0xc8] sm:$0xf]
                %279 = vst [vmem:[%s225 + $0x68] sm:$0xf] %v278
                %v280 = vld [vmem:[%s224 + $0xcc] sm:$0xf]
                %281 = vst [vmem:[%s225 + $0x6c] sm:$0xf] %v280
                %v282 = vld [vmem:[%s224 + $0xd0] sm:$0xf]
                %283 = vst [vmem:[%s225 + $0x70] sm:$0xf] %v282
                %v284 = vld [vmem:[%s224 + $0xd4] sm:$0xf]
                %285 = vst [vmem:[%s225 + $0x74] sm:$0xf] %v284
                %v286 = vld [vmem:[%s224 + $0xd8] sm:$0xf]
                %287 = vst [vmem:[%s225 + $0x78] sm:$0xf] %v286
                %v288 = vld [vmem:[%s224 + $0xdc] sm:$0xf]
                %289 = vst [vmem:[%s225 + $0x7c] sm:$0xf] %v288
              $region49: #{grit_layer.4} parent=43 // loop_footer
                %s223 = sadd.s32 1, %s219
              $region50: #{grit_layer.4} parent=43 // loop_footer_branch
                %218 = sbr.rel target = $region46
              $region51: #{grit_layer.4} parent=43 // loop_exit
                _
            $region44: #{grit_layer.4} parent=35 // pred_fallthru
              _
          $region36: #{grit_layer.4} parent=31 // pred_fallthru
            _
          %373 = vnop
        $region32: #{grit_layer.4} parent=23 // pred_fallthru
          _
      $region24: #{grit_layer.4} parent=5 // pred_fallthru
        _
      %p374 = scmp.le.s32.totalorder 1, %s10
      %p375 = scmp.lt.s32.totalorder %s10, 3
      %p376 = pnand %p374, %p375
      %p377 = pneg %p376
      // Predicated region
      $region70: #{grit_layer.4} parent=5 // pred_check
        _
      $region71: #{grit_layer.4} parent=5 // pred_check_branch
        %379 = sbr.rel (%p376) target = $region73
      $region72: #{grit_layer.4} parent=5 // pred_region
        %s380 = ssub.s32 %s10, 1
        %s381 = sand.u32 %s115, 1
        %s382 = sand.u32 %s115, 1
        %s383 = smul.addr %s382, 128
        %s384 = scalar_lea.vmem [#allocation5], %s383
        // Predicated region
        $region74: #{grit_layer.4} parent=72 // pred_check
          %p385 = pneg %p128
        $region75: #{grit_layer.4} parent=72 // pred_check_branch
          %387 = sbr.rel (%p385) target = $region77
        $region76: #{grit_layer.4} parent=72 // pred_region
          _
        $region77: #{grit_layer.4} parent=72 // pred_fallthru
          _
        %s388 = smul.u32 8, %s19
        %p389 = scmp.lt.s32.totalorder %s388, 15
        %s390 = scalar_select %p389, %s388, 15
        %s391 = smul.addr %s390, 4
        %s392 = scalar_lea.vmem %s0, %s391
        %p393 = pneg %p48
        %p394 = pneg %p45
        %s395 = smul.u32 16, %s20
        %p396 = scmp.lt.s32.totalorder %s395, 15
        %s397 = scalar_select %p396, %s395, 15
        %s398 = smul.addr %s397, 4
        %s399 = scalar_lea.vmem %s1, %s398
        %p400 = pneg %p74
        %p401 = pneg %p71
        %s402 = smul.u32 16, %s20
        %p403 = scmp.lt.s32.totalorder %s402, 15
        %s404 = scalar_select %p403, %s402, 15
        %s405 = smul.addr %s404, 4
        %s406 = scalar_lea.vmem %s2, %s405
        %p407 = pneg %p100
        %p408 = pneg %p97
        %s409 = sand.u32 %s115, 1
        %s410 = sand.u32 %s115, 1
        %s411 = smul.addr %s410, 128
        %s412 = scalar_lea.vmem [#allocation5], %s411
        %p413 = pneg %p128
        %p414 = pneg %p125
        %p415 = pneg %p154
        %p416 = pneg %p151
        %s417 = smul.u32 8, %s19
        %p418 = scmp.lt.s32.totalorder %s417, 15
        %s419 = scalar_select %p418, %s417, 15
        %s420 = smul.addr %s419, 8
        %s421 = scalar_lea.vmem %s4, %s420
        %s422 = smul.u32 8, %s19
        %p423 = scmp.lt.s32.totalorder %s422, 15
        %s424 = scalar_select %p423, %s422, 15
        %s425 = smul.addr %s424, 4
        %s426 = scalar_lea.vmem %s0, %s425
        %s427 = smul.u32 8, %s19
        %s428 = smul.u32 16, %s20
        %p429 = scmp.lt.s32.totalorder %s428, 15
        %s430 = scalar_select %p429, %s428, 15
        %s431 = smul.addr %s430, 4
        %s432 = scalar_lea.vmem %s1, %s431
        %s433 = smul.u32 16, %s20
        %s434 = smul.u32 16, %s20
        %p435 = scmp.lt.s32.totalorder %s434, 15
        %s436 = scalar_select %p435, %s434, 15
        %s437 = smul.addr %s436, 4
        %s438 = scalar_lea.vmem %s2, %s437
        %s439 = smul.u32 16, %s20
        %s440 = smul.u32 8, %s19
        %s441 = smul.u32 8, %s19
        %p442 = scmp.lt.s32.totalorder %s441, 15
        %s443 = scalar_select %p442, %s441, 15
        %s444 = smul.addr %s443, 8
        %s445 = scalar_lea.vmem %s4, %s444
        %s446 = smul.u32 8, %s19
        %p448 = scmp.eq.s32.totalorder %s20, 0
        // Predicated region
        $region78: #{grit_layer.4} parent=72 // pred_check
          %p449 = pneg %p448
        $region79: #{grit_layer.4} parent=72 // pred_check_branch
          %451 = sbr.rel (%p449) target = $region81
        $region80: #{grit_layer.4} parent=72 // pred_region
          %vm452 = vcmask 7168
          %453 = vst.msk [vmem:[#allocation2] sm:$0xff] %vm452, -1e+30
          %454 = vst.msk [vmem:[#allocation2 + $0x8] sm:$0xff] %vm452, -1e+30
          %455 = vst.msk [vmem:[#allocation2 + $0x10] sm:$0xff] %vm452, -1e+30
          %456 = vst.msk [vmem:[#allocation2 + $0x18] sm:$0xff] %vm452, -1e+30
          %457 = vst.msk [vmem:[#allocation2 + $0x20] sm:$0xff] %vm452, -1e+30
          %458 = vst.msk [vmem:[#allocation2 + $0x28] sm:$0xff] %vm452, -1e+30
          %459 = vst.msk [vmem:[#allocation2 + $0x30] sm:$0xff] %vm452, -1e+30
          %460 = vst.msk [vmem:[#allocation2 + $0x38] sm:$0xff] %vm452, -1e+30
          %461 = vst.msk [vmem:[#allocation2 + $0x40] sm:$0xff] %vm452, -1e+30
          %462 = vst.msk [vmem:[#allocation2 + $0x48] sm:$0xff] %vm452, -1e+30
          %463 = vst.msk [vmem:[#allocation2 + $0x50] sm:$0xff] %vm452, -1e+30
          %464 = vst.msk [vmem:[#allocation2 + $0x58] sm:$0xff] %vm452, -1e+30
          %465 = vst.msk [vmem:[#allocation2 + $0x60] sm:$0xff] %vm452, -1e+30
          %466 = vst.msk [vmem:[#allocation2 + $0x68] sm:$0xff] %vm452, -1e+30
          %467 = vst.msk [vmem:[#allocation2 + $0x70] sm:$0xff] %vm452, -1e+30
          %468 = vst.msk [vmem:[#allocation2 + $0x78] sm:$0xff] %vm452, -1e+30
          %469 = vst.msk [vmem:[#allocation2 + $0x80] sm:$0xff] %vm452, -1e+30
          %470 = vst.msk [vmem:[#allocation2 + $0x88] sm:$0xff] %vm452, -1e+30
          %471 = vst.msk [vmem:[#allocation2 + $0x90] sm:$0xff] %vm452, -1e+30
          %472 = vst.msk [vmem:[#allocation2 + $0x98] sm:$0xff] %vm452, -1e+30
          %473 = vst.msk [vmem:[#allocation2 + $0xa0] sm:$0xff] %vm452, -1e+30
          %474 = vst.msk [vmem:[#allocation2 + $0xa8] sm:$0xff] %vm452, -1e+30
          %475 = vst.msk [vmem:[#allocation2 + $0xb0] sm:$0xff] %vm452, -1e+30
          %476 = vst.msk [vmem:[#allocation2 + $0xb8] sm:$0xff] %vm452, -1e+30
          %477 = vst.msk [vmem:[#allocation2 + $0xc0] sm:$0xff] %vm452, -1e+30
          %478 = vst.msk [vmem:[#allocation2 + $0xc8] sm:$0xff] %vm452, -1e+30
          %479 = vst.msk [vmem:[#allocation2 + $0xd0] sm:$0xff] %vm452, -1e+30
          %480 = vst.msk [vmem:[#allocation2 + $0xd8] sm:$0xff] %vm452, -1e+30
          %481 = vst.msk [vmem:[#allocation2 + $0xe0] sm:$0xff] %vm452, -1e+30
          %482 = vst.msk [vmem:[#allocation2 + $0xe8] sm:$0xff] %vm452, -1e+30
          %483 = vst.msk [vmem:[#allocation2 + $0xf0] sm:$0xff] %vm452, -1e+30
          %484 = vst.msk [vmem:[#allocation2 + $0xf8] sm:$0xff] %vm452, -1e+30
          %485 = vst.msk [vmem:[#allocation3] sm:$0xff] %vm452, 0.0
          %486 = vst.msk [vmem:[#allocation3 + $0x8] sm:$0xff] %vm452, 0.0
          %487 = vst.msk [vmem:[#allocation3 + $0x10] sm:$0xff] %vm452, 0.0
          %488 = vst.msk [vmem:[#allocation3 + $0x18] sm:$0xff] %vm452, 0.0
          %489 = vst.msk [vmem:[#allocation3 + $0x20] sm:$0xff] %vm452, 0.0
          %490 = vst.msk [vmem:[#allocation3 + $0x28] sm:$0xff] %vm452, 0.0
          %491 = vst.msk [vmem:[#allocation3 + $0x30] sm:$0xff] %vm452, 0.0
          %492 = vst.msk [vmem:[#allocation3 + $0x38] sm:$0xff] %vm452, 0.0
          %493 = vst.msk [vmem:[#allocation3 + $0x40] sm:$0xff] %vm452, 0.0
          %494 = vst.msk [vmem:[#allocation3 + $0x48] sm:$0xff] %vm452, 0.0
          %495 = vst.msk [vmem:[#allocation3 + $0x50] sm:$0xff] %vm452, 0.0
          %496 = vst.msk [vmem:[#allocation3 + $0x58] sm:$0xff] %vm452, 0.0
          %497 = vst.msk [vmem:[#allocation3 + $0x60] sm:$0xff] %vm452, 0.0
          %498 = vst.msk [vmem:[#allocation3 + $0x68] sm:$0xff] %vm452, 0.0
          %499 = vst.msk [vmem:[#allocation3 + $0x70] sm:$0xff] %vm452, 0.0
          %500 = vst.msk [vmem:[#allocation3 + $0x78] sm:$0xff] %vm452, 0.0
          %501 = vst.msk [vmem:[#allocation3 + $0x80] sm:$0xff] %vm452, 0.0
          %502 = vst.msk [vmem:[#allocation3 + $0x88] sm:$0xff] %vm452, 0.0
          %503 = vst.msk [vmem:[#allocation3 + $0x90] sm:$0xff] %vm452, 0.0
          %504 = vst.msk [vmem:[#allocation3 + $0x98] sm:$0xff] %vm452, 0.0
          %505 = vst.msk [vmem:[#allocation3 + $0xa0] sm:$0xff] %vm452, 0.0
          %506 = vst.msk [vmem:[#allocation3 + $0xa8] sm:$0xff] %vm452, 0.0
          %507 = vst.msk [vmem:[#allocation3 + $0xb0] sm:$0xff] %vm452, 0.0
          %508 = vst.msk [vmem:[#allocation3 + $0xb8] sm:$0xff] %vm452, 0.0
          %509 = vst.msk [vmem:[#allocation3 + $0xc0] sm:$0xff] %vm452, 0.0
          %510 = vst.msk [vmem:[#allocation3 + $0xc8] sm:$0xff] %vm452, 0.0
          %511 = vst.msk [vmem:[#allocation3 + $0xd0] sm:$0xff] %vm452, 0.0
          %512 = vst.msk [vmem:[#allocation3 + $0xd8] sm:$0xff] %vm452, 0.0
          %513 = vst.msk [vmem:[#allocation3 + $0xe0] sm:$0xff] %vm452, 0.0
          %514 = vst.msk [vmem:[#allocation3 + $0xe8] sm:$0xff] %vm452, 0.0
          %515 = vst.msk [vmem:[#allocation3 + $0xf0] sm:$0xff] %vm452, 0.0
          %516 = vst.msk [vmem:[#allocation3 + $0xf8] sm:$0xff] %vm452, 0.0
          %vm517 = vcmask 64512
          %518 = vst.msk [vmem:[#allocation4] sm:$0xff] %vm517, 0.0
          %519 = vst.msk [vmem:[#allocation4 + $0x8] sm:$0xff] %vm517, 0.0
          %520 = vst.msk [vmem:[#allocation4 + $0x10] sm:$0xff] %vm517, 0.0
          %521 = vst.msk [vmem:[#allocation4 + $0x18] sm:$0xff] %vm517, 0.0
          %522 = vst.msk [vmem:[#allocation4 + $0x20] sm:$0xff] %vm517, 0.0
          %523 = vst.msk [vmem:[#allocation4 + $0x28] sm:$0xff] %vm517, 0.0
          %524 = vst.msk [vmem:[#allocation4 + $0x30] sm:$0xff] %vm517, 0.0
          %525 = vst.msk [vmem:[#allocation4 + $0x38] sm:$0xff] %vm517, 0.0
          %526 = vst.msk [vmem:[#allocation4 + $0x40] sm:$0xff] %vm517, 0.0
          %527 = vst.msk [vmem:[#allocation4 + $0x48] sm:$0xff] %vm517, 0.0
          %528 = vst.msk [vmem:[#allocation4 + $0x50] sm:$0xff] %vm517, 0.0
          %529 = vst.msk [vmem:[#allocation4 + $0x58] sm:$0xff] %vm517, 0.0
          %530 = vst.msk [vmem:[#allocation4 + $0x60] sm:$0xff] %vm517, 0.0
          %531 = vst.msk [vmem:[#allocation4 + $0x68] sm:$0xff] %vm517, 0.0
          %532 = vst.msk [vmem:[#allocation4 + $0x70] sm:$0xff] %vm517, 0.0
          %533 = vst.msk [vmem:[#allocation4 + $0x78] sm:$0xff] %vm517, 0.0
          %534 = vst.msk [vmem:[#allocation4 + $0x80] sm:$0xff] %vm517, 0.0
          %535 = vst.msk [vmem:[#allocation4 + $0x88] sm:$0xff] %vm517, 0.0
          %536 = vst.msk [vmem:[#allocation4 + $0x90] sm:$0xff] %vm517, 0.0
          %537 = vst.msk [vmem:[#allocation4 + $0x98] sm:$0xff] %vm517, 0.0
          %538 = vst.msk [vmem:[#allocation4 + $0xa0] sm:$0xff] %vm517, 0.0
          %539 = vst.msk [vmem:[#allocation4 + $0xa8] sm:$0xff] %vm517, 0.0
          %540 = vst.msk [vmem:[#allocation4 + $0xb0] sm:$0xff] %vm517, 0.0
          %541 = vst.msk [vmem:[#allocation4 + $0xb8] sm:$0xff] %vm517, 0.0
          %542 = vst.msk [vmem:[#allocation4 + $0xc0] sm:$0xff] %vm517, 0.0
          %543 = vst.msk [vmem:[#allocation4 + $0xc8] sm:$0xff] %vm517, 0.0
          %544 = vst.msk [vmem:[#allocation4 + $0xd0] sm:$0xff] %vm517, 0.0
          %545 = vst.msk [vmem:[#allocation4 + $0xd8] sm:$0xff] %vm517, 0.0
          %546 = vst.msk [vmem:[#allocation4 + $0xe0] sm:$0xff] %vm517, 0.0
          %547 = vst.msk [vmem:[#allocation4 + $0xe8] sm:$0xff] %vm517, 0.0
          %548 = vst.msk [vmem:[#allocation4 + $0xf0] sm:$0xff] %vm517, 0.0
          %549 = vst.msk [vmem:[#allocation4 + $0xf8] sm:$0xff] %vm517, 0.0
        $region81: #{grit_layer.4} parent=72 // pred_fallthru
          _
        %v550 = vld [vmem:[%s426] sm:$0xf]
        %v551 = vld [vmem:[%s426 + $0x4] sm:$0xf]
        %v552 = vld [vmem:[%s426 + $0x8] sm:$0xf]
        %v553 = vld [vmem:[%s426 + $0xc] sm:$0xf]
        %v554 = vld [vmem:[%s426 + $0x10] sm:$0xf]
        %v555 = vld [vmem:[%s426 + $0x14] sm:$0xf]
        %v556 = vld [vmem:[%s426 + $0x18] sm:$0xf]
        %v557 = vld [vmem:[%s426 + $0x1c] sm:$0xf]
        %v558 = vld [vmem:[%s432] sm:$0xf]
        %v559 = vld [vmem:[%s432 + $0x4] sm:$0xf]
        %v560 = vld [vmem:[%s432 + $0x8] sm:$0xf]
        %v561 = vld [vmem:[%s432 + $0xc] sm:$0xf]
        %v562 = vld [vmem:[%s432 + $0x10] sm:$0xf]
        %v563 = vld [vmem:[%s432 + $0x14] sm:$0xf]
        %v564 = vld [vmem:[%s432 + $0x18] sm:$0xf]
        %v565 = vld [vmem:[%s432 + $0x1c] sm:$0xf]
        %v566 = vld [vmem:[%s432 + $0x20] sm:$0xf]
        %v567 = vld [vmem:[%s432 + $0x24] sm:$0xf]
        %v568 = vld [vmem:[%s432 + $0x28] sm:$0xf]
        %v569 = vld [vmem:[%s432 + $0x2c] sm:$0xf]
        %v570 = vld [vmem:[%s432 + $0x30] sm:$0xf]
        %v571 = vld [vmem:[%s432 + $0x34] sm:$0xf]
        %v572 = vld [vmem:[%s432 + $0x38] sm:$0xf]
        %v573 = vld [vmem:[%s432 + $0x3c] sm:$0xf]
        %v574 = vld [vmem:[%s438] sm:$0xf]
        %v575 = vld [vmem:[%s438 + $0x4] sm:$0xf]
        %v576 = vld [vmem:[%s438 + $0x8] sm:$0xf]
        %v577 = vld [vmem:[%s438 + $0xc] sm:$0xf]
        %v578 = vld [vmem:[%s438 + $0x10] sm:$0xf]
        %v579 = vld [vmem:[%s438 + $0x14] sm:$0xf]
        %v580 = vld [vmem:[%s438 + $0x18] sm:$0xf]
        %v581 = vld [vmem:[%s438 + $0x1c] sm:$0xf]
        %v582 = vld [vmem:[%s438 + $0x20] sm:$0xf]
        %v583 = vld [vmem:[%s438 + $0x24] sm:$0xf]
        %v584 = vld [vmem:[%s438 + $0x28] sm:$0xf]
        %v585 = vld [vmem:[%s438 + $0x2c] sm:$0xf]
        %v586 = vld [vmem:[%s438 + $0x30] sm:$0xf]
        %v587 = vld [vmem:[%s438 + $0x34] sm:$0xf]
        %v588 = vld [vmem:[%s438 + $0x38] sm:$0xf]
        %v589 = vld [vmem:[%s438 + $0x3c] sm:$0xf]
        %v590 = vld [vmem:[%s384] sm:$0xf]
        %v591 = vld [vmem:[%s384 + $0x4] sm:$0xf]
        %v592 = vld [vmem:[%s384 + $0x8] sm:$0xf]
        %v593 = vld [vmem:[%s384 + $0xc] sm:$0xf]
        %v594 = vld [vmem:[%s384 + $0x10] sm:$0xf]
        %v595 = vld [vmem:[%s384 + $0x14] sm:$0xf]
        %v596 = vld [vmem:[%s384 + $0x18] sm:$0xf]
        %v597 = vld [vmem:[%s384 + $0x1c] sm:$0xf]
        %v598 = vunpack.c.l.bf16 %v590
        %v599 = vunpack.c.l.bf16 %v591
        %v600 = vunpack.c.l.bf16 %v592
        %v601 = vunpack.c.l.bf16 %v593
        %v602 = vunpack.c.l.bf16 %v594
        %v603 = vunpack.c.l.bf16 %v595
        %v604 = vunpack.c.l.bf16 %v596
        %v605 = vunpack.c.l.bf16 %v597
        %v614 = vunpack.c.l.b16 %v550
        %v615 = vunpack.c.l.b16 %v551
        %v616 = vunpack.c.l.b16 %v552
        %v617 = vunpack.c.l.b16 %v553
        %v618 = vunpack.c.l.b16 %v554
        %v619 = vunpack.c.l.b16 %v555
        %v620 = vunpack.c.l.b16 %v556
        %v621 = vunpack.c.l.b16 %v557
        %v622 = vpack.c.b16 %v615, %v614
        %v623 = vpack.c.b16 %v617, %v616
        %v624 = vpack.c.b16 %v619, %v618
        %v625 = vpack.c.b16 %v621, %v620
        %v642 = vunpack.c.l.b16 %v558
        %v643 = vunpack.c.l.b16 %v559
        %v644 = vunpack.c.l.b16 %v560
        %v645 = vunpack.c.l.b16 %v561
        %v646 = vunpack.c.l.b16 %v562
        %v647 = vunpack.c.l.b16 %v563
        %v648 = vunpack.c.l.b16 %v564
        %v649 = vunpack.c.l.b16 %v565
        %v650 = vunpack.c.l.b16 %v566
        %v651 = vunpack.c.l.b16 %v567
        %v652 = vunpack.c.l.b16 %v568
        %v653 = vunpack.c.l.b16 %v569
        %v654 = vunpack.c.l.b16 %v570
        %v655 = vunpack.c.l.b16 %v571
        %v656 = vunpack.c.l.b16 %v572
        %v657 = vunpack.c.l.b16 %v573
        %v658 = vpack.c.b16 %v643, %v642
        %v659 = vpack.c.b16 %v645, %v644
        %v660 = vpack.c.b16 %v647, %v646
        %v661 = vpack.c.b16 %v649, %v648
        %v662 = vpack.c.b16 %v651, %v650
        %v663 = vpack.c.b16 %v653, %v652
        %v664 = vpack.c.b16 %v655, %v654
        %v665 = vpack.c.b16 %v657, %v656
        %vm666 = vcmask 64512
        %v668 = vsel %vm666, %v622, 0
        %v671 = vsel %vm666, %v623, 0
        %v674 = vsel %vm666, %v624, 0
        %v677 = vsel %vm666, %v625, 0
        %v680 = vsel %vm666, %v658, 0
        %v683 = vsel %vm666, %v659, 0
        %v686 = vsel %vm666, %v660, 0
        %v689 = vsel %vm666, %v661, 0
        %v692 = vsel %vm666, %v662, 0
        %v695 = vsel %vm666, %v663, 0
        %v698 = vsel %vm666, %v664, 0
        %v701 = vsel %vm666, %v665, 0
        %703 = vmatprep.subr.bf16.mxu0 0
        %704 = vmatpush1.bf16.xpose.msra.mxu0 %v680
        %705 = vmatprep.subr.bf16.mxu0 0
        %706 = vmatpush1.bf16.xpose.msra.mxu0 %v683
        %707 = vmatprep.subr.bf16.mxu0 0
        %708 = vmatpush1.bf16.xpose.msra.mxu0 %v686
        %709 = vmatprep.subr.bf16.mxu0 0
        %710 = vmatpush1.bf16.xpose.msra.mxu0 %v689
        %711 = vmatprep.subr.bf16.mxu0 0
        %712 = vmatpush1.bf16.xpose.msra.mxu0 %v692
        %713 = vmatprep.subr.bf16.mxu0 0
        %714 = vmatpush1.bf16.xpose.msra.mxu0 %v695
        %715 = vmatprep.subr.bf16.mxu0 0
        %716 = vmatpush1.bf16.xpose.msra.mxu0 %v698
        %717 = vmatprep.subr.bf16.mxu0 0
        %718 = vmatpush1.bf16.xpose.msra.mxu0 %v701
        %719 = vmatprep.subr.bf16.mxu0 0
        %720 = vmatpush1.bf16.xpose.msra.mxu0 0
        %721 = vmatprep.subr.bf16.mxu0 0
        %722 = vmatpush1.bf16.xpose.msra.mxu0 0
        %723 = vmatprep.subr.bf16.mxu0 0
        %724 = vmatpush1.bf16.xpose.msra.mxu0 0
        %725 = vmatprep.subr.bf16.mxu0 0
        %726 = vmatpush1.bf16.xpose.msra.mxu0 0
        %727 = vmatprep.subr.bf16.mxu0 0
        %728 = vmatpush1.bf16.xpose.msra.mxu0 0
        %729 = vmatprep.subr.bf16.mxu0 0
        %730 = vmatpush1.bf16.xpose.msra.mxu0 0
        %731 = vmatprep.subr.bf16.mxu0 0
        %732 = vmatpush1.bf16.xpose.msra.mxu0 0
        %733 = vmatprep.subr.bf16.mxu0 0
        %734 = vmatpush1.bf16.xpose.msra.mxu0 0
        %735 = vmatprep.mubr.bf16.mxu0 0
        %736 = vmatmul.mubr.bf16.gmra.mrb[0].mxu0 %v668
        %v737 = vpop.f32.mrb[0].mxu0
        %v738 = vadd.f32 %v598, %v737
        %v739 = vpop.f32.mrb[0].mxu0
        %v740 = vpop.f32.mrb[0].mxu0
        %v741 = vadd.f32 %v599, %v740
        %v742 = vpop.f32.mrb[0].mxu0
        %743 = vmatprep.mubr.bf16.mxu0 0
        %744 = vmatmul.mubr.bf16.gmra.mrb[0].mxu0 %v671
        %v745 = vpop.f32.mrb[0].mxu0
        %v746 = vadd.f32 %v600, %v745
        %v747 = vpop.f32.mrb[0].mxu0
        %v748 = vpop.f32.mrb[0].mxu0
        %v749 = vadd.f32 %v601, %v748
        %v750 = vpop.f32.mrb[0].mxu0
        %751 = vmatprep.mubr.bf16.mxu0 0
        %752 = vmatmul.mubr.bf16.gmra.mrb[0].mxu0 %v674
        %v753 = vpop.f32.mrb[0].mxu0
        %v754 = vadd.f32 %v602, %v753
        %v755 = vpop.f32.mrb[0].mxu0
        %v756 = vpop.f32.mrb[0].mxu0
        %v757 = vadd.f32 %v603, %v756
        %v758 = vpop.f32.mrb[0].mxu0
        %759 = vmatprep.mubr.bf16.mxu0 0
        %760 = vmatmul.mubr.bf16.gmra.mrb[0].mxu0 %v677
        %v761 = vpop.f32.mrb[0].mxu0
        %v762 = vadd.f32 %v604, %v761
        %v763 = vpop.f32.mrb[0].mxu0
        %v764 = vpop.f32.mrb[0].mxu0
        %v765 = vadd.f32 %v605, %v764
        %v766 = vpop.f32.mrb[0].mxu0
        %767 = vdwg.mxu0
        %v768 = vld [vmem:[#allocation2] sm:$0xff]
        %v769 = vld [vmem:[#allocation2 + $0x8] sm:$0xff]
        %v770 = vld [vmem:[#allocation2 + $0x10] sm:$0xff]
        %v771 = vld [vmem:[#allocation2 + $0x18] sm:$0xff]
        %v772 = vld [vmem:[#allocation2 + $0x20] sm:$0xff]
        %v773 = vld [vmem:[#allocation2 + $0x28] sm:$0xff]
        %v774 = vld [vmem:[#allocation2 + $0x30] sm:$0xff]
        %v775 = vld [vmem:[#allocation2 + $0x38] sm:$0xff]
        %776 = vmax.xlane.f32.xlu0 %v738
        %v777 = vpop.xlane.xlu0 %776
        %778 = vmax.xlane.f32.xlu0 %v741
        %v779 = vpop.xlane.xlu0 %778
        %780 = vmax.xlane.f32.xlu0 %v746
        %v781 = vpop.xlane.xlu0 %780
        %782 = vmax.xlane.f32.xlu0 %v749
        %v783 = vpop.xlane.xlu0 %782
        %784 = vmax.xlane.f32.xlu0 %v754
        %v785 = vpop.xlane.xlu0 %784
        %786 = vmax.xlane.f32.xlu0 %v757
        %v787 = vpop.xlane.xlu0 %786
        %788 = vmax.xlane.f32.xlu0 %v762
        %v789 = vpop.xlane.xlu0 %788
        %790 = vmax.xlane.f32.xlu0 %v765
        %v791 = vpop.xlane.xlu0 %790
        %v792 = vmax.f32 %v768, %v777
        %v793 = vmax.f32 %v769, %v779
        %v794 = vmax.f32 %v770, %v781
        %v795 = vmax.f32 %v771, %v783
        %v796 = vmax.f32 %v772, %v785
        %v797 = vmax.f32 %v773, %v787
        %v798 = vmax.f32 %v774, %v789
        %v799 = vmax.f32 %v775, %v791
        %v800 = vsub.f32 %v768, %v792
        %v801 = vsub.f32 %v769, %v793
        %v802 = vsub.f32 %v770, %v794
        %v803 = vsub.f32 %v771, %v795
        %v804 = vsub.f32 %v772, %v796
        %v805 = vsub.f32 %v773, %v797
        %v806 = vsub.f32 %v774, %v798
        %v807 = vsub.f32 %v775, %v799
        %v808 = vmul.f32 %v800, 1.442695
        %v809 = vpow.pop %v808
        %v810 = vmul.f32 %v801, 1.442695
        %v811 = vpow.pop %v810
        %v812 = vmul.f32 %v802, 1.442695
        %v813 = vpow.pop %v812
        %v814 = vmul.f32 %v803, 1.442695
        %v815 = vpow.pop %v814
        %v816 = vmul.f32 %v804, 1.442695
        %v817 = vpow.pop %v816
        %v818 = vmul.f32 %v805, 1.442695
        %v819 = vpow.pop %v818
        %v820 = vmul.f32 %v806, 1.442695
        %v821 = vpow.pop %v820
        %v822 = vmul.f32 %v807, 1.442695
        %v823 = vpow.pop %v822
        %825 = vset.pattern.permute.xlu0 0
        %826 = vperm.xlu0 %825, %v792
        %v827 = vpop.permute.xlu0 %826
        %830 = vset.pattern.permute.xlu0 0
        %831 = vperm.xlu0 %830, %v793
        %v832 = vpop.permute.xlu0 %831
        %835 = vset.pattern.permute.xlu0 0
        %836 = vperm.xlu0 %835, %v794
        %v837 = vpop.permute.xlu0 %836
        %840 = vset.pattern.permute.xlu0 0
        %841 = vperm.xlu0 %840, %v795
        %v842 = vpop.permute.xlu0 %841
        %845 = vset.pattern.permute.xlu0 0
        %846 = vperm.xlu0 %845, %v796
        %v847 = vpop.permute.xlu0 %846
        %850 = vset.pattern.permute.xlu0 0
        %851 = vperm.xlu0 %850, %v797
        %v852 = vpop.permute.xlu0 %851
        %855 = vset.pattern.permute.xlu0 0
        %856 = vperm.xlu0 %855, %v798
        %v857 = vpop.permute.xlu0 %856
        %860 = vset.pattern.permute.xlu0 0
        %861 = vperm.xlu0 %860, %v799
        %v862 = vpop.permute.xlu0 %861
        %v864 = vsub.f32 %v738, %v827
        %v865 = vsub.f32 %v741, %v832
        %v866 = vsub.f32 %v746, %v837
        %v867 = vsub.f32 %v749, %v842
        %v868 = vsub.f32 %v754, %v847
        %v869 = vsub.f32 %v757, %v852
        %v870 = vsub.f32 %v762, %v857
        %v871 = vsub.f32 %v765, %v862
        %v872 = vmul.f32 %v864, 1.442695
        %v873 = vpow.pop %v872
        %v874 = vmul.f32 %v865, 1.442695
        %v875 = vpow.pop %v874
        %v876 = vmul.f32 %v866, 1.442695
        %v877 = vpow.pop %v876
        %v878 = vmul.f32 %v867, 1.442695
        %v879 = vpow.pop %v878
        %v880 = vmul.f32 %v868, 1.442695
        %v881 = vpow.pop %v880
        %v882 = vmul.f32 %v869, 1.442695
        %v883 = vpow.pop %v882
        %v884 = vmul.f32 %v870, 1.442695
        %v885 = vpow.pop %v884
        %v886 = vmul.f32 %v871, 1.442695
        %v887 = vpow.pop %v886
        %v888 = vld [vmem:[#allocation3] sm:$0xff]
        %v889 = vld [vmem:[#allocation3 + $0x8] sm:$0xff]
        %v890 = vld [vmem:[#allocation3 + $0x10] sm:$0xff]
        %v891 = vld [vmem:[#allocation3 + $0x18] sm:$0xff]
        %v892 = vld [vmem:[#allocation3 + $0x20] sm:$0xff]
        %v893 = vld [vmem:[#allocation3 + $0x28] sm:$0xff]
        %v894 = vld [vmem:[#allocation3 + $0x30] sm:$0xff]
        %v895 = vld [vmem:[#allocation3 + $0x38] sm:$0xff]
        %v896 = vmul.f32 %v809, %v888
        %v897 = vmul.f32 %v811, %v889
        %v898 = vmul.f32 %v813, %v890
        %v899 = vmul.f32 %v815, %v891
        %v900 = vmul.f32 %v817, %v892
        %v901 = vmul.f32 %v819, %v893
        %v902 = vmul.f32 %v821, %v894
        %v903 = vmul.f32 %v823, %v895
        %904 = vadd.xlane.f32.xlu0 %v873
        %v905 = vpop.xlane.xlu0 %904
        %906 = vadd.xlane.f32.xlu0 %v875
        %v907 = vpop.xlane.xlu0 %906
        %908 = vadd.xlane.f32.xlu0 %v877
        %v909 = vpop.xlane.xlu0 %908
        %910 = vadd.xlane.f32.xlu0 %v879
        %v911 = vpop.xlane.xlu0 %910
        %912 = vadd.xlane.f32.xlu0 %v881
        %v913 = vpop.xlane.xlu0 %912
        %914 = vadd.xlane.f32.xlu0 %v883
        %v915 = vpop.xlane.xlu0 %914
        %916 = vadd.xlane.f32.xlu0 %v885
        %v917 = vpop.xlane.xlu0 %916
        %918 = vadd.xlane.f32.xlu0 %v887
        %v919 = vpop.xlane.xlu0 %918
        %v920 = vadd.f32 %v896, %v905
        %v921 = vadd.f32 %v897, %v907
        %v922 = vadd.f32 %v898, %v909
        %v923 = vadd.f32 %v899, %v911
        %v924 = vadd.f32 %v900, %v913
        %v925 = vadd.f32 %v901, %v915
        %v926 = vadd.f32 %v902, %v917
        %v927 = vadd.f32 %v903, %v919
        %vm928 = vcmask 7168
        %929 = vst.msk [vmem:[#allocation3] sm:$0xff] %vm928, %v920
        %930 = vst.msk [vmem:[#allocation3 + $0x8] sm:$0xff] %vm928, %v921
        %931 = vst.msk [vmem:[#allocation3 + $0x10] sm:$0xff] %vm928, %v922
        %932 = vst.msk [vmem:[#allocation3 + $0x18] sm:$0xff] %vm928, %v923
        %933 = vst.msk [vmem:[#allocation3 + $0x20] sm:$0xff] %vm928, %v924
        %934 = vst.msk [vmem:[#allocation3 + $0x28] sm:$0xff] %vm928, %v925
        %935 = vst.msk [vmem:[#allocation3 + $0x30] sm:$0xff] %vm928, %v926
        %936 = vst.msk [vmem:[#allocation3 + $0x38] sm:$0xff] %vm928, %v927
        %v937 = vld [vmem:[#allocation4] sm:$0xff]
        %v938 = vld [vmem:[#allocation4 + $0x8] sm:$0xff]
        %v939 = vld [vmem:[#allocation4 + $0x10] sm:$0xff]
        %v940 = vld [vmem:[#allocation4 + $0x18] sm:$0xff]
        %v941 = vld [vmem:[#allocation4 + $0x20] sm:$0xff]
        %v942 = vld [vmem:[#allocation4 + $0x28] sm:$0xff]
        %v943 = vld [vmem:[#allocation4 + $0x30] sm:$0xff]
        %v944 = vld [vmem:[#allocation4 + $0x38] sm:$0xff]
        %946 = vset.pattern.permute.xlu0 0
        %947 = vperm.xlu0 %946, %v809
        %v948 = vpop.permute.xlu0 %947
        %951 = vset.pattern.permute.xlu0 0
        %952 = vperm.xlu0 %951, %v811
        %v953 = vpop.permute.xlu0 %952
        %956 = vset.pattern.permute.xlu0 0
        %957 = vperm.xlu0 %956, %v813
        %v958 = vpop.permute.xlu0 %957
        %961 = vset.pattern.permute.xlu0 0
        %962 = vperm.xlu0 %961, %v815
        %v963 = vpop.permute.xlu0 %962
        %966 = vset.pattern.permute.xlu0 0
        %967 = vperm.xlu0 %966, %v817
        %v968 = vpop.permute.xlu0 %967
        %971 = vset.pattern.permute.xlu0 0
        %972 = vperm.xlu0 %971, %v819
        %v973 = vpop.permute.xlu0 %972
        %976 = vset.pattern.permute.xlu0 0
        %977 = vperm.xlu0 %976, %v821
        %v978 = vpop.permute.xlu0 %977
        %981 = vset.pattern.permute.xlu0 0
        %982 = vperm.xlu0 %981, %v823
        %v983 = vpop.permute.xlu0 %982
        %v985 = vmul.f32 %v948, %v937
        %v986 = vmul.f32 %v953, %v938
        %v987 = vmul.f32 %v958, %v939
        %v988 = vmul.f32 %v963, %v940
        %v989 = vmul.f32 %v968, %v941
        %v990 = vmul.f32 %v973, %v942
        %v991 = vmul.f32 %v978, %v943
        %v992 = vmul.f32 %v983, %v944
        %v993 = vpack.c.bf16 %v875, %v873
        %v994 = vpack.c.bf16 %v879, %v877
        %v995 = vpack.c.bf16 %v883, %v881
        %v996 = vpack.c.bf16 %v887, %v885
        %v1013 = vunpack.c.l.b16 %v574
        %v1014 = vunpack.c.l.b16 %v575
        %v1015 = vunpack.c.l.b16 %v576
        %v1016 = vunpack.c.l.b16 %v577
        %v1017 = vunpack.c.l.b16 %v578
        %v1018 = vunpack.c.l.b16 %v579
        %v1019 = vunpack.c.l.b16 %v580
        %v1020 = vunpack.c.l.b16 %v581
        %v1021 = vunpack.c.l.b16 %v582
        %v1022 = vunpack.c.l.b16 %v583
        %v1023 = vunpack.c.l.b16 %v584
        %v1024 = vunpack.c.l.b16 %v585
        %v1025 = vunpack.c.l.b16 %v586
        %v1026 = vunpack.c.l.b16 %v587
        %v1027 = vunpack.c.l.b16 %v588
        %v1028 = vunpack.c.l.b16 %v589
        %v1029 = vpack.c.b16 %v1014, %v1013
        %v1030 = vpack.c.b16 %v1016, %v1015
        %v1031 = vpack.c.b16 %v1018, %v1017
        %v1032 = vpack.c.b16 %v1020, %v1019
        %v1033 = vpack.c.b16 %v1022, %v1021
        %v1034 = vpack.c.b16 %v1024, %v1023
        %v1035 = vpack.c.b16 %v1026, %v1025
        %v1036 = vpack.c.b16 %v1028, %v1027
        %1045 = vmatprep.subr.bf16.mxu0 0
        %1046 = vmatpush1.bf16.msra.mxu0 %v1029
        %1047 = vmatprep.subr.bf16.mxu0 0
        %1048 = vmatpush1.bf16.msra.mxu0 %v1030
        %1049 = vmatprep.subr.bf16.mxu0 0
        %1050 = vmatpush1.bf16.msra.mxu0 %v1031
        %1051 = vmatprep.subr.bf16.mxu0 0
        %1052 = vmatpush1.bf16.msra.mxu0 %v1032
        %1053 = vmatprep.subr.bf16.mxu0 0
        %1054 = vmatpush1.bf16.msra.mxu0 %v1033
        %1055 = vmatprep.subr.bf16.mxu0 0
        %1056 = vmatpush1.bf16.msra.mxu0 %v1034
        %1057 = vmatprep.subr.bf16.mxu0 0
        %1058 = vmatpush1.bf16.msra.mxu0 %v1035
        %1059 = vmatprep.subr.bf16.mxu0 0
        %1060 = vmatpush1.bf16.msra.mxu0 %v1036
        %1061 = vmatprep.subr.bf16.mxu0 0
        %1062 = vmatpush1.bf16.msra.mxu0 0
        %1063 = vmatprep.subr.bf16.mxu0 0
        %1064 = vmatpush1.bf16.msra.mxu0 0
        %1065 = vmatprep.subr.bf16.mxu0 0
        %1066 = vmatpush1.bf16.msra.mxu0 0
        %1067 = vmatprep.subr.bf16.mxu0 0
        %1068 = vmatpush1.bf16.msra.mxu0 0
        %1069 = vmatprep.subr.bf16.mxu0 0
        %1070 = vmatpush1.bf16.msra.mxu0 0
        %1071 = vmatprep.subr.bf16.mxu0 0
        %1072 = vmatpush1.bf16.msra.mxu0 0
        %1073 = vmatprep.subr.bf16.mxu0 0
        %1074 = vmatpush1.bf16.msra.mxu0 0
        %1075 = vmatprep.subr.bf16.mxu0 0
        %1076 = vmatpush1.bf16.msra.mxu0 0
        %1077 = vmatprep.mubr.bf16.mxu0 0
        %1078 = vmatmul.mubr.bf16.gmra.mrb[0].mxu0 %v993
        %v1079 = vpop.f32.mrb[0].mxu0
        %v1080 = vadd.f32 0.0, %v1079
        %v1081 = vpop.f32.mrb[0].mxu0
        %v1082 = vpop.f32.mrb[0].mxu0
        %v1083 = vadd.f32 0.0, %v1082
        %v1084 = vpop.f32.mrb[0].mxu0
        %1085 = vmatprep.mubr.bf16.mxu0 0
        %1086 = vmatmul.mubr.bf16.gmra.mrb[0].mxu0 %v994
        %v1087 = vpop.f32.mrb[0].mxu0
        %v1088 = vadd.f32 0.0, %v1087
        %v1089 = vpop.f32.mrb[0].mxu0
        %v1090 = vpop.f32.mrb[0].mxu0
        %v1091 = vadd.f32 0.0, %v1090
        %v1092 = vpop.f32.mrb[0].mxu0
        %1093 = vmatprep.mubr.bf16.mxu0 0
        %1094 = vmatmul.mubr.bf16.gmra.mrb[0].mxu0 %v995
        %v1095 = vpop.f32.mrb[0].mxu0
        %v1096 = vadd.f32 0.0, %v1095
        %v1097 = vpop.f32.mrb[0].mxu0
        %v1098 = vpop.f32.mrb[0].mxu0
        %v1099 = vadd.f32 0.0, %v1098
        %v1100 = vpop.f32.mrb[0].mxu0
        %1101 = vmatprep.mubr.bf16.mxu0 0
        %1102 = vmatmul.mubr.bf16.gmra.mrb[0].mxu0 %v996
        %v1103 = vpop.f32.mrb[0].mxu0
        %v1104 = vadd.f32 0.0, %v1103
        %v1105 = vpop.f32.mrb[0].mxu0
        %v1106 = vpop.f32.mrb[0].mxu0
        %v1107 = vadd.f32 0.0, %v1106
        %v1108 = vpop.f32.mrb[0].mxu0
        %1109 = vdwg.mxu0
        %v1110 = vadd.f32 %v985, %v1080
        %v1111 = vadd.f32 %v986, %v1083
        %v1112 = vadd.f32 %v987, %v1088
        %v1113 = vadd.f32 %v988, %v1091
        %v1114 = vadd.f32 %v989, %v1096
        %v1115 = vadd.f32 %v990, %v1099
        %v1116 = vadd.f32 %v991, %v1104
        %v1117 = vadd.f32 %v992, %v1107
        %1118 = vst.msk [vmem:[#allocation4] sm:$0xff] %vm666, %v1110
        %1119 = vst.msk [vmem:[#allocation4 + $0x8] sm:$0xff] %vm666, %v1111
        %1120 = vst.msk [vmem:[#allocation4 + $0x10] sm:$0xff] %vm666, %v1112
        %1121 = vst.msk [vmem:[#allocation4 + $0x18] sm:$0xff] %vm666, %v1113
        %1122 = vst.msk [vmem:[#allocation4 + $0x20] sm:$0xff] %vm666, %v1114
        %1123 = vst.msk [vmem:[#allocation4 + $0x28] sm:$0xff] %vm666, %v1115
        %1124 = vst.msk [vmem:[#allocation4 + $0x30] sm:$0xff] %vm666, %v1116
        %1125 = vst.msk [vmem:[#allocation4 + $0x38] sm:$0xff] %vm666, %v1117
        %1126 = vst.msk [vmem:[#allocation2] sm:$0xff] %vm928, %v792
        %1127 = vst.msk [vmem:[#allocation2 + $0x8] sm:$0xff] %vm928, %v793
        %1128 = vst.msk [vmem:[#allocation2 + $0x10] sm:$0xff] %vm928, %v794
        %1129 = vst.msk [vmem:[#allocation2 + $0x18] sm:$0xff] %vm928, %v795
        %1130 = vst.msk [vmem:[#allocation2 + $0x20] sm:$0xff] %vm928, %v796
        %1131 = vst.msk [vmem:[#allocation2 + $0x28] sm:$0xff] %vm928, %v797
        %1132 = vst.msk [vmem:[#allocation2 + $0x30] sm:$0xff] %vm928, %v798
        %1133 = vst.msk [vmem:[#allocation2 + $0x38] sm:$0xff] %vm928, %v799
        %s1134 = scalar_lea.vmem %s384, 32 [#allocation5]
        %v1135 = vld [vmem:[%s1134] sm:$0xf]
        %v1136 = vld [vmem:[%s1134 + $0x4] sm:$0xf]
        %v1137 = vld [vmem:[%s1134 + $0x8] sm:$0xf]
        %v1138 = vld [vmem:[%s1134 + $0xc] sm:$0xf]
        %v1139 = vld [vmem:[%s1134 + $0x10] sm:$0xf]
        %v1140 = vld [vmem:[%s1134 + $0x14] sm:$0xf]
        %v1141 = vld [vmem:[%s1134 + $0x18] sm:$0xf]
        %v1142 = vld [vmem:[%s1134 + $0x1c] sm:$0xf]
        %v1143 = vunpack.c.l.bf16 %v1135
        %v1144 = vunpack.c.l.bf16 %v1136
        %v1145 = vunpack.c.l.bf16 %v1137
        %v1146 = vunpack.c.l.bf16 %v1138
        %v1147 = vunpack.c.l.bf16 %v1139
        %v1148 = vunpack.c.l.bf16 %v1140
        %v1149 = vunpack.c.l.bf16 %v1141
        %v1150 = vunpack.c.l.bf16 %v1142
        %1151 = vrot.lane.b32.xlu0 %v622, 120
        %v1152 = vpop.permute.xlu0 %1151
        %1153 = vrot.lane.b32.xlu0 %v623, 120
        %v1154 = vpop.permute.xlu0 %1153
        %1155 = vrot.lane.b32.xlu0 %v624, 120
        %v1156 = vpop.permute.xlu0 %1155
        %1157 = vrot.lane.b32.xlu0 %v625, 120
        %v1158 = vpop.permute.xlu0 %1157
        %1159 = vrot.lane.b32.xlu0 %v658, 120
        %v1160 = vpop.permute.xlu0 %1159
        %1161 = vrot.lane.b32.xlu0 %v659, 120
        %v1162 = vpop.permute.xlu0 %1161
        %1163 = vrot.lane.b32.xlu0 %v660, 120
        %v1164 = vpop.permute.xlu0 %1163
        %1165 = vrot.lane.b32.xlu0 %v661, 120
        %v1166 = vpop.permute.xlu0 %1165
        %1167 = vrot.lane.b32.xlu0 %v662, 120
        %v1168 = vpop.permute.xlu0 %1167
        %1169 = vrot.lane.b32.xlu0 %v663, 120
        %v1170 = vpop.permute.xlu0 %1169
        %1171 = vrot.lane.b32.xlu0 %v664, 120
        %v1172 = vpop.permute.xlu0 %1171
        %1173 = vrot.lane.b32.xlu0 %v665, 120
        %v1174 = vpop.permute.xlu0 %1173
        %v1176 = vsel %vm666, %v1152, 0
        %v1179 = vsel %vm666, %v1154, 0
        %v1182 = vsel %vm666, %v1156, 0
        %v1185 = vsel %vm666, %v1158, 0
        %v1188 = vsel %vm666, %v1160, 0
        %v1191 = vsel %vm666, %v1162, 0
        %v1194 = vsel %vm666, %v1164, 0
        %v1197 = vsel %vm666, %v1166, 0
        %v1200 = vsel %vm666, %v1168, 0
        %v1203 = vsel %vm666, %v1170, 0
        %v1206 = vsel %vm666, %v1172, 0
        %v1209 = vsel %vm666, %v1174, 0
        %1211 = vmatprep.subr.bf16.mxu0 0
        %1212 = vmatpush1.bf16.xpose.msra.mxu0 %v1188
        %1213 = vmatprep.subr.bf16.mxu0 0
        %1214 = vmatpush1.bf16.xpose.msra.mxu0 %v1191
        %1215 = vmatprep.subr.bf16.mxu0 0
        %1216 = vmatpush1.bf16.xpose.msra.mxu0 %v1194
        %1217 = vmatprep.subr.bf16.mxu0 0
        %1218 = vmatpush1.bf16.xpose.msra.mxu0 %v1197
        %1219 = vmatprep.subr.bf16.mxu0 0
        %1220 = vmatpush1.bf16.xpose.msra.mxu0 %v1200
        %1221 = vmatprep.subr.bf16.mxu0 0
        %1222 = vmatpush1.bf16.xpose.msra.mxu0 %v1203
        %1223 = vmatprep.subr.bf16.mxu0 0
        %1224 = vmatpush1.bf16.xpose.msra.mxu0 %v1206
        %1225 = vmatprep.subr.bf16.mxu0 0
        %1226 = vmatpush1.bf16.xpose.msra.mxu0 %v1209
        %1227 = vmatprep.subr.bf16.mxu0 0
        %1228 = vmatpush1.bf16.xpose.msra.mxu0 0
        %1229 = vmatprep.subr.bf16.mxu0 0
        %1230 = vmatpush1.bf16.xpose.msra.mxu0 0
        %1231 = vmatprep.subr.bf16.mxu0 0
        %1232 = vmatpush1.bf16.xpose.msra.mxu0 0
        %1233 = vmatprep.subr.bf16.mxu0 0
        %1234 = vmatpush1.bf16.xpose.msra.mxu0 0
        %1235 = vmatprep.subr.bf16.mxu0 0
        %1236 = vmatpush1.bf16.xpose.msra.mxu0 0
        %1237 = vmatprep.subr.bf16.mxu0 0
        %1238 = vmatpush1.bf16.xpose.msra.mxu0 0
        %1239 = vmatprep.subr.bf16.mxu0 0
        %1240 = vmatpush1.bf16.xpose.msra.mxu0 0
        %1241 = vmatprep.subr.bf16.mxu0 0
        %1242 = vmatpush1.bf16.xpose.msra.mxu0 0
        %1243 = vmatprep.mubr.bf16.mxu0 0
        %1244 = vmatmul.mubr.bf16.gmra.mrb[0].mxu0 %v1176
        %v1245 = vpop.f32.mrb[0].mxu0
        %v1246 = vadd.f32 %v1143, %v1245
        %v1247 = vpop.f32.mrb[0].mxu0
        %v1248 = vpop.f32.mrb[0].mxu0
        %v1249 = vadd.f32 %v1144, %v1248
        %v1250 = vpop.f32.mrb[0].mxu0
        %1251 = vmatprep.mubr.bf16.mxu0 0
        %1252 = vmatmul.mubr.bf16.gmra.mrb[0].mxu0 %v1179
        %v1253 = vpop.f32.mrb[0].mxu0
        %v1254 = vadd.f32 %v1145, %v1253
        %v1255 = vpop.f32.mrb[0].mxu0
        %v1256 = vpop.f32.mrb[0].mxu0
        %v1257 = vadd.f32 %v1146, %v1256
        %v1258 = vpop.f32.mrb[0].mxu0
        %1259 = vmatprep.mubr.bf16.mxu0 0
        %1260 = vmatmul.mubr.bf16.gmra.mrb[0].mxu0 %v1182
        %v1261 = vpop.f32.mrb[0].mxu0
        %v1262 = vadd.f32 %v1147, %v1261
        %v1263 = vpop.f32.mrb[0].mxu0
        %v1264 = vpop.f32.mrb[0].mxu0
        %v1265 = vadd.f32 %v1148, %v1264
        %v1266 = vpop.f32.mrb[0].mxu0
        %1267 = vmatprep.mubr.bf16.mxu0 0
        %1268 = vmatmul.mubr.bf16.gmra.mrb[0].mxu0 %v1185
        %v1269 = vpop.f32.mrb[0].mxu0
        %v1270 = vadd.f32 %v1149, %v1269
        %v1271 = vpop.f32.mrb[0].mxu0
        %v1272 = vpop.f32.mrb[0].mxu0
        %v1273 = vadd.f32 %v1150, %v1272
        %v1274 = vpop.f32.mrb[0].mxu0
        %1275 = vdwg.mxu0
        %s1276 = scalar_lea.vmem [#allocation2], 64
        %v1277 = vld [vmem:[%s1276] sm:$0xff]
        %v1278 = vld [vmem:[%s1276 + $0x8] sm:$0xff]
        %v1279 = vld [vmem:[%s1276 + $0x10] sm:$0xff]
        %v1280 = vld [vmem:[%s1276 + $0x18] sm:$0xff]
        %v1281 = vld [vmem:[%s1276 + $0x20] sm:$0xff]
        %v1282 = vld [vmem:[%s1276 + $0x28] sm:$0xff]
        %v1283 = vld [vmem:[%s1276 + $0x30] sm:$0xff]
        %v1284 = vld [vmem:[%s1276 + $0x38] sm:$0xff]
        %1285 = vmax.xlane.f32.xlu0 %v1246
        %v1286 = vpop.xlane.xlu0 %1285
        %1287 = vmax.xlane.f32.xlu0 %v1249
        %v1288 = vpop.xlane.xlu0 %1287
        %1289 = vmax.xlane.f32.xlu0 %v1254
        %v1290 = vpop.xlane.xlu0 %1289
        %1291 = vmax.xlane.f32.xlu0 %v1257
        %v1292 = vpop.xlane.xlu0 %1291
        %1293 = vmax.xlane.f32.xlu0 %v1262
        %v1294 = vpop.xlane.xlu0 %1293
        %1295 = vmax.xlane.f32.xlu0 %v1265
        %v1296 = vpop.xlane.xlu0 %1295
        %1297 = vmax.xlane.f32.xlu0 %v1270
        %v1298 = vpop.xlane.xlu0 %1297
        %1299 = vmax.xlane.f32.xlu0 %v1273
        %v1300 = vpop.xlane.xlu0 %1299
        %v1301 = vmax.f32 %v1277, %v1286
        %v1302 = vmax.f32 %v1278, %v1288
        %v1303 = vmax.f32 %v1279, %v1290
        %v1304 = vmax.f32 %v1280, %v1292
        %v1305 = vmax.f32 %v1281, %v1294
        %v1306 = vmax.f32 %v1282, %v1296
        %v1307 = vmax.f32 %v1283, %v1298
        %v1308 = vmax.f32 %v1284, %v1300
        %v1309 = vsub.f32 %v1277, %v1301
        %v1310 = vsub.f32 %v1278, %v1302
        %v1311 = vsub.f32 %v1279, %v1303
        %v1312 = vsub.f32 %v1280, %v1304
        %v1313 = vsub.f32 %v1281, %v1305
        %v1314 = vsub.f32 %v1282, %v1306
        %v1315 = vsub.f32 %v1283, %v1307
        %v1316 = vsub.f32 %v1284, %v1308
        %v1317 = vmul.f32 %v1309, 1.442695
        %v1318 = vpow.pop %v1317
        %v1319 = vmul.f32 %v1310, 1.442695
        %v1320 = vpow.pop %v1319
        %v1321 = vmul.f32 %v1311, 1.442695
        %v1322 = vpow.pop %v1321
        %v1323 = vmul.f32 %v1312, 1.442695
        %v1324 = vpow.pop %v1323
        %v1325 = vmul.f32 %v1313, 1.442695
        %v1326 = vpow.pop %v1325
        %v1327 = vmul.f32 %v1314, 1.442695
        %v1328 = vpow.pop %v1327
        %v1329 = vmul.f32 %v1315, 1.442695
        %v1330 = vpow.pop %v1329
        %v1331 = vmul.f32 %v1316, 1.442695
        %v1332 = vpow.pop %v1331
        %1334 = vset.pattern.permute.xlu0 0
        %1335 = vperm.xlu0 %1334, %v1301
        %v1336 = vpop.permute.xlu0 %1335
        %1339 = vset.pattern.permute.xlu0 0
        %1340 = vperm.xlu0 %1339, %v1302
        %v1341 = vpop.permute.xlu0 %1340
        %1344 = vset.pattern.permute.xlu0 0
        %1345 = vperm.xlu0 %1344, %v1303
        %v1346 = vpop.permute.xlu0 %1345
        %1349 = vset.pattern.permute.xlu0 0
        %1350 = vperm.xlu0 %1349, %v1304
        %v1351 = vpop.permute.xlu0 %1350
        %1354 = vset.pattern.permute.xlu0 0
        %1355 = vperm.xlu0 %1354, %v1305
        %v1356 = vpop.permute.xlu0 %1355
        %1359 = vset.pattern.permute.xlu0 0
        %1360 = vperm.xlu0 %1359, %v1306
        %v1361 = vpop.permute.xlu0 %1360
        %1364 = vset.pattern.permute.xlu0 0
        %1365 = vperm.xlu0 %1364, %v1307
        %v1366 = vpop.permute.xlu0 %1365
        %1369 = vset.pattern.permute.xlu0 0
        %1370 = vperm.xlu0 %1369, %v1308
        %v1371 = vpop.permute.xlu0 %1370
        %v1373 = vsub.f32 %v1246, %v1336
        %v1374 = vsub.f32 %v1249, %v1341
        %v1375 = vsub.f32 %v1254, %v1346
        %v1376 = vsub.f32 %v1257, %v1351
        %v1377 = vsub.f32 %v1262, %v1356
        %v1378 = vsub.f32 %v1265, %v1361
        %v1379 = vsub.f32 %v1270, %v1366
        %v1380 = vsub.f32 %v1273, %v1371
        %v1381 = vmul.f32 %v1373, 1.442695
        %v1382 = vpow.pop %v1381
        %v1383 = vmul.f32 %v1374, 1.442695
        %v1384 = vpow.pop %v1383
        %v1385 = vmul.f32 %v1375, 1.442695
        %v1386 = vpow.pop %v1385
        %v1387 = vmul.f32 %v1376, 1.442695
        %v1388 = vpow.pop %v1387
        %v1389 = vmul.f32 %v1377, 1.442695
        %v1390 = vpow.pop %v1389
        %v1391 = vmul.f32 %v1378, 1.442695
        %v1392 = vpow.pop %v1391
        %v1393 = vmul.f32 %v1379, 1.442695
        %v1394 = vpow.pop %v1393
        %v1395 = vmul.f32 %v1380, 1.442695
        %v1396 = vpow.pop %v1395
        %s1397 = scalar_lea.vmem [#allocation3], 64
        %v1398 = vld [vmem:[%s1397] sm:$0xff]
        %v1399 = vld [vmem:[%s1397 + $0x8] sm:$0xff]
        %v1400 = vld [vmem:[%s1397 + $0x10] sm:$0xff]
        %v1401 = vld [vmem:[%s1397 + $0x18] sm:$0xff]
        %v1402 = vld [vmem:[%s1397 + $0x20] sm:$0xff]
        %v1403 = vld [vmem:[%s1397 + $0x28] sm:$0xff]
        %v1404 = vld [vmem:[%s1397 + $0x30] sm:$0xff]
        %v1405 = vld [vmem:[%s1397 + $0x38] sm:$0xff]
        %v1406 = vmul.f32 %v1318, %v1398
        %v1407 = vmul.f32 %v1320, %v1399
        %v1408 = vmul.f32 %v1322, %v1400
        %v1409 = vmul.f32 %v1324, %v1401
        %v1410 = vmul.f32 %v1326, %v1402
        %v1411 = vmul.f32 %v1328, %v1403
        %v1412 = vmul.f32 %v1330, %v1404
        %v1413 = vmul.f32 %v1332, %v1405
        %1414 = vadd.xlane.f32.xlu0 %v1382
        %v1415 = vpop.xlane.xlu0 %1414
        %1416 = vadd.xlane.f32.xlu0 %v1384
        %v1417 = vpop.xlane.xlu0 %1416
        %1418 = vadd.xlane.f32.xlu0 %v1386
        %v1419 = vpop.xlane.xlu0 %1418
        %1420 = vadd.xlane.f32.xlu0 %v1388
        %v1421 = vpop.xlane.xlu0 %1420
        %1422 = vadd.xlane.f32.xlu0 %v1390
        %v1423 = vpop.xlane.xlu0 %1422
        %1424 = vadd.xlane.f32.xlu0 %v1392
        %v1425 = vpop.xlane.xlu0 %1424
        %1426 = vadd.xlane.f32.xlu0 %v1394
        %v1427 = vpop.xlane.xlu0 %1426
        %1428 = vadd.xlane.f32.xlu0 %v1396
        %v1429 = vpop.xlane.xlu0 %1428
        %v1430 = vadd.f32 %v1406, %v1415
        %v1431 = vadd.f32 %v1407, %v1417
        %v1432 = vadd.f32 %v1408, %v1419
        %v1433 = vadd.f32 %v1409, %v1421
        %v1434 = vadd.f32 %v1410, %v1423
        %v1435 = vadd.f32 %v1411, %v1425
        %v1436 = vadd.f32 %v1412, %v1427
        %v1437 = vadd.f32 %v1413, %v1429
        %1438 = vst.msk [vmem:[%s1397] sm:$0xff] %vm928, %v1430
        %1439 = vst.msk [vmem:[%s1397 + $0x8] sm:$0xff] %vm928, %v1431
        %1440 = vst.msk [vmem:[%s1397 + $0x10] sm:$0xff] %vm928, %v1432
        %1441 = vst.msk [vmem:[%s1397 + $0x18] sm:$0xff] %vm928, %v1433
        %1442 = vst.msk [vmem:[%s1397 + $0x20] sm:$0xff] %vm928, %v1434
        %1443 = vst.msk [vmem:[%s1397 + $0x28] sm:$0xff] %vm928, %v1435
        %1444 = vst.msk [vmem:[%s1397 + $0x30] sm:$0xff] %vm928, %v1436
        %1445 = vst.msk [vmem:[%s1397 + $0x38] sm:$0xff] %vm928, %v1437
        %s1446 = scalar_lea.vmem [#allocation4], 64
        %v1447 = vld [vmem:[%s1446] sm:$0xff]
        %v1448 = vld [vmem:[%s1446 + $0x8] sm:$0xff]
        %v1449 = vld [vmem:[%s1446 + $0x10] sm:$0xff]
        %v1450 = vld [vmem:[%s1446 + $0x18] sm:$0xff]
        %v1451 = vld [vmem:[%s1446 + $0x20] sm:$0xff]
        %v1452 = vld [vmem:[%s1446 + $0x28] sm:$0xff]
        %v1453 = vld [vmem:[%s1446 + $0x30] sm:$0xff]
        %v1454 = vld [vmem:[%s1446 + $0x38] sm:$0xff]
        %1456 = vset.pattern.permute.xlu0 0
        %1457 = vperm.xlu0 %1456, %v1318
        %v1458 = vpop.permute.xlu0 %1457
        %1461 = vset.pattern.permute.xlu0 0
        %1462 = vperm.xlu0 %1461, %v1320
        %v1463 = vpop.permute.xlu0 %1462
        %1466 = vset.pattern.permute.xlu0 0
        %1467 = vperm.xlu0 %1466, %v1322
        %v1468 = vpop.permute.xlu0 %1467
        %1471 = vset.pattern.permute.xlu0 0
        %1472 = vperm.xlu0 %1471, %v1324
        %v1473 = vpop.permute.xlu0 %1472
        %1476 = vset.pattern.permute.xlu0 0
        %1477 = vperm.xlu0 %1476, %v1326
        %v1478 = vpop.permute.xlu0 %1477
        %1481 = vset.pattern.permute.xlu0 0
        %1482 = vperm.xlu0 %1481, %v1328
        %v1483 = vpop.permute.xlu0 %1482
        %1486 = vset.pattern.permute.xlu0 0
        %1487 = vperm.xlu0 %1486, %v1330
        %v1488 = vpop.permute.xlu0 %1487
        %1491 = vset.pattern.permute.xlu0 0
        %1492 = vperm.xlu0 %1491, %v1332
        %v1493 = vpop.permute.xlu0 %1492
        %v1495 = vmul.f32 %v1458, %v1447
        %v1496 = vmul.f32 %v1463, %v1448
        %v1497 = vmul.f32 %v1468, %v1449
        %v1498 = vmul.f32 %v1473, %v1450
        %v1499 = vmul.f32 %v1478, %v1451
        %v1500 = vmul.f32 %v1483, %v1452
        %v1501 = vmul.f32 %v1488, %v1453
        %v1502 = vmul.f32 %v1493, %v1454
        %v1503 = vpack.c.bf16 %v1384, %v1382
        %v1504 = vpack.c.bf16 %v1388, %v1386
        %v1505 = vpack.c.bf16 %v1392, %v1390
        %v1506 = vpack.c.bf16 %v1396, %v1394
        %1507 = vrot.lane.b32.xlu0 %v1029, 120
        %v1508 = vpop.permute.xlu0 %1507
        %1509 = vrot.lane.b32.xlu0 %v1030, 120
        %v1510 = vpop.permute.xlu0 %1509
        %1511 = vrot.lane.b32.xlu0 %v1031, 120
        %v1512 = vpop.permute.xlu0 %1511
        %1513 = vrot.lane.b32.xlu0 %v1032, 120
        %v1514 = vpop.permute.xlu0 %1513
        %1515 = vrot.lane.b32.xlu0 %v1033, 120
        %v1516 = vpop.permute.xlu0 %1515
        %1517 = vrot.lane.b32.xlu0 %v1034, 120
        %v1518 = vpop.permute.xlu0 %1517
        %1519 = vrot.lane.b32.xlu0 %v1035, 120
        %v1520 = vpop.permute.xlu0 %1519
        %1521 = vrot.lane.b32.xlu0 %v1036, 120
        %v1522 = vpop.permute.xlu0 %1521
        %1531 = vmatprep.subr.bf16.mxu0 0
        %1532 = vmatpush1.bf16.msra.mxu0 %v1508
        %1533 = vmatprep.subr.bf16.mxu0 0
        %1534 = vmatpush1.bf16.msra.mxu0 %v1510
        %1535 = vmatprep.subr.bf16.mxu0 0
        %1536 = vmatpush1.bf16.msra.mxu0 %v1512
        %1537 = vmatprep.subr.bf16.mxu0 0
        %1538 = vmatpush1.bf16.msra.mxu0 %v1514
        %1539 = vmatprep.subr.bf16.mxu0 0
        %1540 = vmatpush1.bf16.msra.mxu0 %v1516
        %1541 = vmatprep.subr.bf16.mxu0 0
        %1542 = vmatpush1.bf16.msra.mxu0 %v1518
        %1543 = vmatprep.subr.bf16.mxu0 0
        %1544 = vmatpush1.bf16.msra.mxu0 %v1520
        %1545 = vmatprep.subr.bf16.mxu0 0
        %1546 = vmatpush1.bf16.msra.mxu0 %v1522
        %1547 = vmatprep.subr.bf16.mxu0 0
        %1548 = vmatpush1.bf16.msra.mxu0 0
        %1549 = vmatprep.subr.bf16.mxu0 0
        %1550 = vmatpush1.bf16.msra.mxu0 0
        %1551 = vmatprep.subr.bf16.mxu0 0
        %1552 = vmatpush1.bf16.msra.mxu0 0
        %1553 = vmatprep.subr.bf16.mxu0 0
        %1554 = vmatpush1.bf16.msra.mxu0 0
        %1555 = vmatprep.subr.bf16.mxu0 0
        %1556 = vmatpush1.bf16.msra.mxu0 0
        %1557 = vmatprep.subr.bf16.mxu0 0
        %1558 = vmatpush1.bf16.msra.mxu0 0
        %1559 = vmatprep.subr.bf16.mxu0 0
        %1560 = vmatpush1.bf16.msra.mxu0 0
        %1561 = vmatprep.subr.bf16.mxu0 0
        %1562 = vmatpush1.bf16.msra.mxu0 0
        %1563 = vmatprep.mubr.bf16.mxu0 0
        %1564 = vmatmul.mubr.bf16.gmra.mrb[0].mxu0 %v1503
        %v1565 = vpop.f32.mrb[0].mxu0
        %v1566 = vadd.f32 0.0, %v1565
        %v1567 = vpop.f32.mrb[0].mxu0
        %v1568 = vpop.f32.mrb[0].mxu0
        %v1569 = vadd.f32 0.0, %v1568
        %v1570 = vpop.f32.mrb[0].mxu0
        %1571 = vmatprep.mubr.bf16.mxu0 0
        %1572 = vmatmul.mubr.bf16.gmra.mrb[0].mxu0 %v1504
        %v1573 = vpop.f32.mrb[0].mxu0
        %v1574 = vadd.f32 0.0, %v1573
        %v1575 = vpop.f32.mrb[0].mxu0
        %v1576 = vpop.f32.mrb[0].mxu0
        %v1577 = vadd.f32 0.0, %v1576
        %v1578 = vpop.f32.mrb[0].mxu0
        %1579 = vmatprep.mubr.bf16.mxu0 0
        %1580 = vmatmul.mubr.bf16.gmra.mrb[0].mxu0 %v1505
        %v1581 = vpop.f32.mrb[0].mxu0
        %v1582 = vadd.f32 0.0, %v1581
        %v1583 = vpop.f32.mrb[0].mxu0
        %v1584 = vpop.f32.mrb[0].mxu0
        %v1585 = vadd.f32 0.0, %v1584
        %v1586 = vpop.f32.mrb[0].mxu0
        %1587 = vmatprep.mubr.bf16.mxu0 0
        %1588 = vmatmul.mubr.bf16.gmra.mrb[0].mxu0 %v1506
        %v1589 = vpop.f32.mrb[0].mxu0
        %v1590 = vadd.f32 0.0, %v1589
        %v1591 = vpop.f32.mrb[0].mxu0
        %v1592 = vpop.f32.mrb[0].mxu0
        %v1593 = vadd.f32 0.0, %v1592
        %v1594 = vpop.f32.mrb[0].mxu0
        %1595 = vdwg.mxu0
        %v1596 = vadd.f32 %v1495, %v1566
        %v1597 = vadd.f32 %v1496, %v1569
        %v1598 = vadd.f32 %v1497, %v1574
        %v1599 = vadd.f32 %v1498, %v1577
        %v1600 = vadd.f32 %v1499, %v1582
        %v1601 = vadd.f32 %v1500, %v1585
        %v1602 = vadd.f32 %v1501, %v1590
        %v1603 = vadd.f32 %v1502, %v1593
        %1604 = vst.msk [vmem:[%s1446] sm:$0xff] %vm666, %v1596
        %1605 = vst.msk [vmem:[%s1446 + $0x8] sm:$0xff] %vm666, %v1597
        %1606 = vst.msk [vmem:[%s1446 + $0x10] sm:$0xff] %vm666, %v1598
        %1607 = vst.msk [vmem:[%s1446 + $0x18] sm:$0xff] %vm666, %v1599
        %1608 = vst.msk [vmem:[%s1446 + $0x20] sm:$0xff] %vm666, %v1600
        %1609 = vst.msk [vmem:[%s1446 + $0x28] sm:$0xff] %vm666, %v1601
        %1610 = vst.msk [vmem:[%s1446 + $0x30] sm:$0xff] %vm666, %v1602
        %1611 = vst.msk [vmem:[%s1446 + $0x38] sm:$0xff] %vm666, %v1603
        %1612 = vst.msk [vmem:[%s1276] sm:$0xff] %vm928, %v1301
        %1613 = vst.msk [vmem:[%s1276 + $0x8] sm:$0xff] %vm928, %v1302
        %1614 = vst.msk [vmem:[%s1276 + $0x10] sm:$0xff] %vm928, %v1303
        %1615 = vst.msk [vmem:[%s1276 + $0x18] sm:$0xff] %vm928, %v1304
        %1616 = vst.msk [vmem:[%s1276 + $0x20] sm:$0xff] %vm928, %v1305
        %1617 = vst.msk [vmem:[%s1276 + $0x28] sm:$0xff] %vm928, %v1306
        %1618 = vst.msk [vmem:[%s1276 + $0x30] sm:$0xff] %vm928, %v1307
        %1619 = vst.msk [vmem:[%s1276 + $0x38] sm:$0xff] %vm928, %v1308
        %s1620 = scalar_lea.vmem %s384, 64 [#allocation5]
        %v1621 = vld [vmem:[%s1620] sm:$0xf]
        %v1622 = vld [vmem:[%s1620 + $0x4] sm:$0xf]
        %v1623 = vld [vmem:[%s1620 + $0x8] sm:$0xf]
        %v1624 = vld [vmem:[%s1620 + $0xc] sm:$0xf]
        %v1625 = vld [vmem:[%s1620 + $0x10] sm:$0xf]
        %v1626 = vld [vmem:[%s1620 + $0x14] sm:$0xf]
        %v1627 = vld [vmem:[%s1620 + $0x18] sm:$0xf]
        %v1628 = vld [vmem:[%s1620 + $0x1c] sm:$0xf]
        %v1629 = vunpack.c.l.bf16 %v1621
        %v1630 = vunpack.c.l.bf16 %v1622
        %v1631 = vunpack.c.l.bf16 %v1623
        %v1632 = vunpack.c.l.bf16 %v1624
        %v1633 = vunpack.c.l.bf16 %v1625
        %v1634 = vunpack.c.l.bf16 %v1626
        %v1635 = vunpack.c.l.bf16 %v1627
        %v1636 = vunpack.c.l.bf16 %v1628
        %1637 = vrot.lane.b32.xlu0 %v622, 112
        %v1638 = vpop.permute.xlu0 %1637
        %1639 = vrot.lane.b32.xlu0 %v623, 112
        %v1640 = vpop.permute.xlu0 %1639
        %1641 = vrot.lane.b32.xlu0 %v624, 112
        %v1642 = vpop.permute.xlu0 %1641
        %1643 = vrot.lane.b32.xlu0 %v625, 112
        %v1644 = vpop.permute.xlu0 %1643
        %1645 = vrot.lane.b32.xlu0 %v658, 112
        %v1646 = vpop.permute.xlu0 %1645
        %1647 = vrot.lane.b32.xlu0 %v659, 112
        %v1648 = vpop.permute.xlu0 %1647
        %1649 = vrot.lane.b32.xlu0 %v660, 112
        %v1650 = vpop.permute.xlu0 %1649
        %1651 = vrot.lane.b32.xlu0 %v661, 112
        %v1652 = vpop.permute.xlu0 %1651
        %1653 = vrot.lane.b32.xlu0 %v662, 112
        %v1654 = vpop.permute.xlu0 %1653
        %1655 = vrot.lane.b32.xlu0 %v663, 112
        %v1656 = vpop.permute.xlu0 %1655
        %1657 = vrot.lane.b32.xlu0 %v664, 112
        %v1658 = vpop.permute.xlu0 %1657
        %1659 = vrot.lane.b32.xlu0 %v665, 112
        %v1660 = vpop.permute.xlu0 %1659
        %v1662 = vsel %vm666, %v1638, 0
        %v1665 = vsel %vm666, %v1640, 0
        %v1668 = vsel %vm666, %v1642, 0
        %v1671 = vsel %vm666, %v1644, 0
        %v1674 = vsel %vm666, %v1646, 0
        %v1677 = vsel %vm666, %v1648, 0
        %v1680 = vsel %vm666, %v1650, 0
        %v1683 = vsel %vm666, %v1652, 0
        %v1686 = vsel %vm666, %v1654, 0
        %v1689 = vsel %vm666, %v1656, 0
        %v1692 = vsel %vm666, %v1658, 0
        %v1695 = vsel %vm666, %v1660, 0
        %1697 = vmatprep.subr.bf16.mxu0 0
        %1698 = vmatpush1.bf16.xpose.msra.mxu0 %v1674
        %1699 = vmatprep.subr.bf16.mxu0 0
        %1700 = vmatpush1.bf16.xpose.msra.mxu0 %v1677
        %1701 = vmatprep.subr.bf16.mxu0 0
        %1702 = vmatpush1.bf16.xpose.msra.mxu0 %v1680
        %1703 = vmatprep.subr.bf16.mxu0 0
        %1704 = vmatpush1.bf16.xpose.msra.mxu0 %v1683
        %1705 = vmatprep.subr.bf16.mxu0 0
        %1706 = vmatpush1.bf16.xpose.msra.mxu0 %v1686
        %1707 = vmatprep.subr.bf16.mxu0 0
        %1708 = vmatpush1.bf16.xpose.msra.mxu0 %v1689
        %1709 = vmatprep.subr.bf16.mxu0 0
        %1710 = vmatpush1.bf16.xpose.msra.mxu0 %v1692
        %1711 = vmatprep.subr.bf16.mxu0 0
        %1712 = vmatpush1.bf16.xpose.msra.mxu0 %v1695
        %1713 = vmatprep.subr.bf16.mxu0 0
        %1714 = vmatpush1.bf16.xpose.msra.mxu0 0
        %1715 = vmatprep.subr.bf16.mxu0 0
        %1716 = vmatpush1.bf16.xpose.msra.mxu0 0
        %1717 = vmatprep.subr.bf16.mxu0 0
        %1718 = vmatpush1.bf16.xpose.msra.mxu0 0
        %1719 = vmatprep.subr.bf16.mxu0 0
        %1720 = vmatpush1.bf16.xpose.msra.mxu0 0
        %1721 = vmatprep.subr.bf16.mxu0 0
        %1722 = vmatpush1.bf16.xpose.msra.mxu0 0
        %1723 = vmatprep.subr.bf16.mxu0 0
        %1724 = vmatpush1.bf16.xpose.msra.mxu0 0
        %1725 = vmatprep.subr.bf16.mxu0 0
        %1726 = vmatpush1.bf16.xpose.msra.mxu0 0
        %1727 = vmatprep.subr.bf16.mxu0 0
        %1728 = vmatpush1.bf16.xpose.msra.mxu0 0
        %1729 = vmatprep.mubr.bf16.mxu0 0
        %1730 = vmatmul.mubr.bf16.gmra.mrb[0].mxu0 %v1662
        %v1731 = vpop.f32.mrb[0].mxu0
        %v1732 = vadd.f32 %v1629, %v1731
        %v1733 = vpop.f32.mrb[0].mxu0
        %v1734 = vpop.f32.mrb[0].mxu0
        %v1735 = vadd.f32 %v1630, %v1734
        %v1736 = vpop.f32.mrb[0].mxu0
        %1737 = vmatprep.mubr.bf16.mxu0 0
        %1738 = vmatmul.mubr.bf16.gmra.mrb[0].mxu0 %v1665
        %v1739 = vpop.f32.mrb[0].mxu0
        %v1740 = vadd.f32 %v1631, %v1739
        %v1741 = vpop.f32.mrb[0].mxu0
        %v1742 = vpop.f32.mrb[0].mxu0
        %v1743 = vadd.f32 %v1632, %v1742
        %v1744 = vpop.f32.mrb[0].mxu0
        %1745 = vmatprep.mubr.bf16.mxu0 0
        %1746 = vmatmul.mubr.bf16.gmra.mrb[0].mxu0 %v1668
        %v1747 = vpop.f32.mrb[0].mxu0
        %v1748 = vadd.f32 %v1633, %v1747
        %v1749 = vpop.f32.mrb[0].mxu0
        %v1750 = vpop.f32.mrb[0].mxu0
        %v1751 = vadd.f32 %v1634, %v1750
        %v1752 = vpop.f32.mrb[0].mxu0
        %1753 = vmatprep.mubr.bf16.mxu0 0
        %1754 = vmatmul.mubr.bf16.gmra.mrb[0].mxu0 %v1671
        %v1755 = vpop.f32.mrb[0].mxu0
        %v1756 = vadd.f32 %v1635, %v1755
        %v1757 = vpop.f32.mrb[0].mxu0
        %v1758 = vpop.f32.mrb[0].mxu0
        %v1759 = vadd.f32 %v1636, %v1758
        %v1760 = vpop.f32.mrb[0].mxu0
        %1761 = vdwg.mxu0
        %s1762 = scalar_lea.vmem [#allocation2], 128
        %v1763 = vld [vmem:[%s1762] sm:$0xff]
        %v1764 = vld [vmem:[%s1762 + $0x8] sm:$0xff]
        %v1765 = vld [vmem:[%s1762 + $0x10] sm:$0xff]
        %v1766 = vld [vmem:[%s1762 + $0x18] sm:$0xff]
        %v1767 = vld [vmem:[%s1762 + $0x20] sm:$0xff]
        %v1768 = vld [vmem:[%s1762 + $0x28] sm:$0xff]
        %v1769 = vld [vmem:[%s1762 + $0x30] sm:$0xff]
        %v1770 = vld [vmem:[%s1762 + $0x38] sm:$0xff]
        %1771 = vmax.xlane.f32.xlu0 %v1732
        %v1772 = vpop.xlane.xlu0 %1771
        %1773 = vmax.xlane.f32.xlu0 %v1735
        %v1774 = vpop.xlane.xlu0 %1773
        %1775 = vmax.xlane.f32.xlu0 %v1740
        %v1776 = vpop.xlane.xlu0 %1775
        %1777 = vmax.xlane.f32.xlu0 %v1743
        %v1778 = vpop.xlane.xlu0 %1777
        %1779 = vmax.xlane.f32.xlu0 %v1748
        %v1780 = vpop.xlane.xlu0 %1779
        %1781 = vmax.xlane.f32.xlu0 %v1751
        %v1782 = vpop.xlane.xlu0 %1781
        %1783 = vmax.xlane.f32.xlu0 %v1756
        %v1784 = vpop.xlane.xlu0 %1783
        %1785 = vmax.xlane.f32.xlu0 %v1759
        %v1786 = vpop.xlane.xlu0 %1785
        %v1787 = vmax.f32 %v1763, %v1772
        %v1788 = vmax.f32 %v1764, %v1774
        %v1789 = vmax.f32 %v1765, %v1776
        %v1790 = vmax.f32 %v1766, %v1778
        %v1791 = vmax.f32 %v1767, %v1780
        %v1792 = vmax.f32 %v1768, %v1782
        %v1793 = vmax.f32 %v1769, %v1784
        %v1794 = vmax.f32 %v1770, %v1786
        %v1795 = vsub.f32 %v1763, %v1787
        %v1796 = vsub.f32 %v1764, %v1788
        %v1797 = vsub.f32 %v1765, %v1789
        %v1798 = vsub.f32 %v1766, %v1790
        %v1799 = vsub.f32 %v1767, %v1791
        %v1800 = vsub.f32 %v1768, %v1792
        %v1801 = vsub.f32 %v1769, %v1793
        %v1802 = vsub.f32 %v1770, %v1794
        %v1803 = vmul.f32 %v1795, 1.442695
        %v1804 = vpow.pop %v1803
        %v1805 = vmul.f32 %v1796, 1.442695
        %v1806 = vpow.pop %v1805
        %v1807 = vmul.f32 %v1797, 1.442695
        %v1808 = vpow.pop %v1807
        %v1809 = vmul.f32 %v1798, 1.442695
        %v1810 = vpow.pop %v1809
        %v1811 = vmul.f32 %v1799, 1.442695
        %v1812 = vpow.pop %v1811
        %v1813 = vmul.f32 %v1800, 1.442695
        %v1814 = vpow.pop %v1813
        %v1815 = vmul.f32 %v1801, 1.442695
        %v1816 = vpow.pop %v1815
        %v1817 = vmul.f32 %v1802, 1.442695
        %v1818 = vpow.pop %v1817
        %1820 = vset.pattern.permute.xlu0 0
        %1821 = vperm.xlu0 %1820, %v1787
        %v1822 = vpop.permute.xlu0 %1821
        %1825 = vset.pattern.permute.xlu0 0
        %1826 = vperm.xlu0 %1825, %v1788
        %v1827 = vpop.permute.xlu0 %1826
        %1830 = vset.pattern.permute.xlu0 0
        %1831 = vperm.xlu0 %1830, %v1789
        %v1832 = vpop.permute.xlu0 %1831
        %1835 = vset.pattern.permute.xlu0 0
        %1836 = vperm.xlu0 %1835, %v1790
        %v1837 = vpop.permute.xlu0 %1836
        %1840 = vset.pattern.permute.xlu0 0
        %1841 = vperm.xlu0 %1840, %v1791
        %v1842 = vpop.permute.xlu0 %1841
        %1845 = vset.pattern.permute.xlu0 0
        %1846 = vperm.xlu0 %1845, %v1792
        %v1847 = vpop.permute.xlu0 %1846
        %1850 = vset.pattern.permute.xlu0 0
        %1851 = vperm.xlu0 %1850, %v1793
        %v1852 = vpop.permute.xlu0 %1851
        %1855 = vset.pattern.permute.xlu0 0
        %1856 = vperm.xlu0 %1855, %v1794
        %v1857 = vpop.permute.xlu0 %1856
        %v1859 = vsub.f32 %v1732, %v1822
        %v1860 = vsub.f32 %v1735, %v1827
        %v1861 = vsub.f32 %v1740, %v1832
        %v1862 = vsub.f32 %v1743, %v1837
        %v1863 = vsub.f32 %v1748, %v1842
        %v1864 = vsub.f32 %v1751, %v1847
        %v1865 = vsub.f32 %v1756, %v1852
        %v1866 = vsub.f32 %v1759, %v1857
        %v1867 = vmul.f32 %v1859, 1.442695
        %v1868 = vpow.pop %v1867
        %v1869 = vmul.f32 %v1860, 1.442695
        %v1870 = vpow.pop %v1869
        %v1871 = vmul.f32 %v1861, 1.442695
        %v1872 = vpow.pop %v1871
        %v1873 = vmul.f32 %v1862, 1.442695
        %v1874 = vpow.pop %v1873
        %v1875 = vmul.f32 %v1863, 1.442695
        %v1876 = vpow.pop %v1875
        %v1877 = vmul.f32 %v1864, 1.442695
        %v1878 = vpow.pop %v1877
        %v1879 = vmul.f32 %v1865, 1.442695
        %v1880 = vpow.pop %v1879
        %v1881 = vmul.f32 %v1866, 1.442695
        %v1882 = vpow.pop %v1881
        %s1883 = scalar_lea.vmem [#allocation3], 128
        %v1884 = vld [vmem:[%s1883] sm:$0xff]
        %v1885 = vld [vmem:[%s1883 + $0x8] sm:$0xff]
        %v1886 = vld [vmem:[%s1883 + $0x10] sm:$0xff]
        %v1887 = vld [vmem:[%s1883 + $0x18] sm:$0xff]
        %v1888 = vld [vmem:[%s1883 + $0x20] sm:$0xff]
        %v1889 = vld [vmem:[%s1883 + $0x28] sm:$0xff]
        %v1890 = vld [vmem:[%s1883 + $0x30] sm:$0xff]
        %v1891 = vld [vmem:[%s1883 + $0x38] sm:$0xff]
        %v1892 = vmul.f32 %v1804, %v1884
        %v1893 = vmul.f32 %v1806, %v1885
        %v1894 = vmul.f32 %v1808, %v1886
        %v1895 = vmul.f32 %v1810, %v1887
        %v1896 = vmul.f32 %v1812, %v1888
        %v1897 = vmul.f32 %v1814, %v1889
        %v1898 = vmul.f32 %v1816, %v1890
        %v1899 = vmul.f32 %v1818, %v1891
        %1900 = vadd.xlane.f32.xlu0 %v1868
        %v1901 = vpop.xlane.xlu0 %1900
        %1902 = vadd.xlane.f32.xlu0 %v1870
        %v1903 = vpop.xlane.xlu0 %1902
        %1904 = vadd.xlane.f32.xlu0 %v1872
        %v1905 = vpop.xlane.xlu0 %1904
        %1906 = vadd.xlane.f32.xlu0 %v1874
        %v1907 = vpop.xlane.xlu0 %1906
        %1908 = vadd.xlane.f32.xlu0 %v1876
        %v1909 = vpop.xlane.xlu0 %1908
        %1910 = vadd.xlane.f32.xlu0 %v1878
        %v1911 = vpop.xlane.xlu0 %1910
        %1912 = vadd.xlane.f32.xlu0 %v1880
        %v1913 = vpop.xlane.xlu0 %1912
        %1914 = vadd.xlane.f32.xlu0 %v1882
        %v1915 = vpop.xlane.xlu0 %1914
        %v1916 = vadd.f32 %v1892, %v1901
        %v1917 = vadd.f32 %v1893, %v1903
        %v1918 = vadd.f32 %v1894, %v1905
        %v1919 = vadd.f32 %v1895, %v1907
        %v1920 = vadd.f32 %v1896, %v1909
        %v1921 = vadd.f32 %v1897, %v1911
        %v1922 = vadd.f32 %v1898, %v1913
        %v1923 = vadd.f32 %v1899, %v1915
        %1924 = vst.msk [vmem:[%s1883] sm:$0xff] %vm928, %v1916
        %1925 = vst.msk [vmem:[%s1883 + $0x8] sm:$0xff] %vm928, %v1917
        %1926 = vst.msk [vmem:[%s1883 + $0x10] sm:$0xff] %vm928, %v1918
        %1927 = vst.msk [vmem:[%s1883 + $0x18] sm:$0xff] %vm928, %v1919
        %1928 = vst.msk [vmem:[%s1883 + $0x20] sm:$0xff] %vm928, %v1920
        %1929 = vst.msk [vmem:[%s1883 + $0x28] sm:$0xff] %vm928, %v1921
        %1930 = vst.msk [vmem:[%s1883 + $0x30] sm:$0xff] %vm928, %v1922
        %1931 = vst.msk [vmem:[%s1883 + $0x38] sm:$0xff] %vm928, %v1923
        %s1932 = scalar_lea.vmem [#allocation4], 128
        %v1933 = vld [vmem:[%s1932] sm:$0xff]
        %v1934 = vld [vmem:[%s1932 + $0x8] sm:$0xff]
        %v1935 = vld [vmem:[%s1932 + $0x10] sm:$0xff]
        %v1936 = vld [vmem:[%s1932 + $0x18] sm:$0xff]
        %v1937 = vld [vmem:[%s1932 + $0x20] sm:$0xff]
        %v1938 = vld [vmem:[%s1932 + $0x28] sm:$0xff]
        %v1939 = vld [vmem:[%s1932 + $0x30] sm:$0xff]
        %v1940 = vld [vmem:[%s1932 + $0x38] sm:$0xff]
        %1942 = vset.pattern.permute.xlu0 0
        %1943 = vperm.xlu0 %1942, %v1804
        %v1944 = vpop.permute.xlu0 %1943
        %1947 = vset.pattern.permute.xlu0 0
        %1948 = vperm.xlu0 %1947, %v1806
        %v1949 = vpop.permute.xlu0 %1948
        %1952 = vset.pattern.permute.xlu0 0
        %1953 = vperm.xlu0 %1952, %v1808
        %v1954 = vpop.permute.xlu0 %1953
        %1957 = vset.pattern.permute.xlu0 0
        %1958 = vperm.xlu0 %1957, %v1810
        %v1959 = vpop.permute.xlu0 %1958
        %1962 = vset.pattern.permute.xlu0 0
        %1963 = vperm.xlu0 %1962, %v1812
        %v1964 = vpop.permute.xlu0 %1963
        %1967 = vset.pattern.permute.xlu0 0
        %1968 = vperm.xlu0 %1967, %v1814
        %v1969 = vpop.permute.xlu0 %1968
        %1972 = vset.pattern.permute.xlu0 0
        %1973 = vperm.xlu0 %1972, %v1816
        %v1974 = vpop.permute.xlu0 %1973
        %1977 = vset.pattern.permute.xlu0 0
        %1978 = vperm.xlu0 %1977, %v1818
        %v1979 = vpop.permute.xlu0 %1978
        %v1981 = vmul.f32 %v1944, %v1933
        %v1982 = vmul.f32 %v1949, %v1934
        %v1983 = vmul.f32 %v1954, %v1935
        %v1984 = vmul.f32 %v1959, %v1936
        %v1985 = vmul.f32 %v1964, %v1937
        %v1986 = vmul.f32 %v1969, %v1938
        %v1987 = vmul.f32 %v1974, %v1939
        %v1988 = vmul.f32 %v1979, %v1940
        %v1989 = vpack.c.bf16 %v1870, %v1868
        %v1990 = vpack.c.bf16 %v1874, %v1872
        %v1991 = vpack.c.bf16 %v1878, %v1876
        %v1992 = vpack.c.bf16 %v1882, %v1880
        %1993 = vrot.lane.b32.xlu0 %v1029, 112
        %v1994 = vpop.permute.xlu0 %1993
        %1995 = vrot.lane.b32.xlu0 %v1030, 112
        %v1996 = vpop.permute.xlu0 %1995
        %1997 = vrot.lane.b32.xlu0 %v1031, 112
        %v1998 = vpop.permute.xlu0 %1997
        %1999 = vrot.lane.b32.xlu0 %v1032, 112
        %v2000 = vpop.permute.xlu0 %1999
        %2001 = vrot.lane.b32.xlu0 %v1033, 112
        %v2002 = vpop.permute.xlu0 %2001
        %2003 = vrot.lane.b32.xlu0 %v1034, 112
        %v2004 = vpop.permute.xlu0 %2003
        %2005 = vrot.lane.b32.xlu0 %v1035, 112
        %v2006 = vpop.permute.xlu0 %2005
        %2007 = vrot.lane.b32.xlu0 %v1036, 112
        %v2008 = vpop.permute.xlu0 %2007
        %2017 = vmatprep.subr.bf16.mxu0 0
        %2018 = vmatpush1.bf16.msra.mxu0 %v1994
        %2019 = vmatprep.subr.bf16.mxu0 0
        %2020 = vmatpush1.bf16.msra.mxu0 %v1996
        %2021 = vmatprep.subr.bf16.mxu0 0
        %2022 = vmatpush1.bf16.msra.mxu0 %v1998
        %2023 = vmatprep.subr.bf16.mxu0 0
        %2024 = vmatpush1.bf16.msra.mxu0 %v2000
        %2025 = vmatprep.subr.bf16.mxu0 0
        %2026 = vmatpush1.bf16.msra.mxu0 %v2002
        %2027 = vmatprep.subr.bf16.mxu0 0
        %2028 = vmatpush1.bf16.msra.mxu0 %v2004
        %2029 = vmatprep.subr.bf16.mxu0 0
        %2030 = vmatpush1.bf16.msra.mxu0 %v2006
        %2031 = vmatprep.subr.bf16.mxu0 0
        %2032 = vmatpush1.bf16.msra.mxu0 %v2008
        %2033 = vmatprep.subr.bf16.mxu0 0
        %2034 = vmatpush1.bf16.msra.mxu0 0
        %2035 = vmatprep.subr.bf16.mxu0 0
        %2036 = vmatpush1.bf16.msra.mxu0 0
        %2037 = vmatprep.subr.bf16.mxu0 0
        %2038 = vmatpush1.bf16.msra.mxu0 0
        %2039 = vmatprep.subr.bf16.mxu0 0
        %2040 = vmatpush1.bf16.msra.mxu0 0
        %2041 = vmatprep.subr.bf16.mxu0 0
        %2042 = vmatpush1.bf16.msra.mxu0 0
        %2043 = vmatprep.subr.bf16.mxu0 0
        %2044 = vmatpush1.bf16.msra.mxu0 0
        %2045 = vmatprep.subr.bf16.mxu0 0
        %2046 = vmatpush1.bf16.msra.mxu0 0
        %2047 = vmatprep.subr.bf16.mxu0 0
        %2048 = vmatpush1.bf16.msra.mxu0 0
        %2049 = vmatprep.mubr.bf16.mxu0 0
        %2050 = vmatmul.mubr.bf16.gmra.mrb[0].mxu0 %v1989
        %v2051 = vpop.f32.mrb[0].mxu0
        %v2052 = vadd.f32 0.0, %v2051
        %v2053 = vpop.f32.mrb[0].mxu0
        %v2054 = vpop.f32.mrb[0].mxu0
        %v2055 = vadd.f32 0.0, %v2054
        %v2056 = vpop.f32.mrb[0].mxu0
        %2057 = vmatprep.mubr.bf16.mxu0 0
        %2058 = vmatmul.mubr.bf16.gmra.mrb[0].mxu0 %v1990
        %v2059 = vpop.f32.mrb[0].mxu0
        %v2060 = vadd.f32 0.0, %v2059
        %v2061 = vpop.f32.mrb[0].mxu0
        %v2062 = vpop.f32.mrb[0].mxu0
        %v2063 = vadd.f32 0.0, %v2062
        %v2064 = vpop.f32.mrb[0].mxu0
        %2065 = vmatprep.mubr.bf16.mxu0 0
        %2066 = vmatmul.mubr.bf16.gmra.mrb[0].mxu0 %v1991
        %v2067 = vpop.f32.mrb[0].mxu0
        %v2068 = vadd.f32 0.0, %v2067
        %v2069 = vpop.f32.mrb[0].mxu0
        %v2070 = vpop.f32.mrb[0].mxu0
        %v2071 = vadd.f32 0.0, %v2070
        %v2072 = vpop.f32.mrb[0].mxu0
        %2073 = vmatprep.mubr.bf16.mxu0 0
        %2074 = vmatmul.mubr.bf16.gmra.mrb[0].mxu0 %v1992
        %v2075 = vpop.f32.mrb[0].mxu0
        %v2076 = vadd.f32 0.0, %v2075
        %v2077 = vpop.f32.mrb[0].mxu0
        %v2078 = vpop.f32.mrb[0].mxu0
        %v2079 = vadd.f32 0.0, %v2078
        %v2080 = vpop.f32.mrb[0].mxu0
        %2081 = vdwg.mxu0
        %v2082 = vadd.f32 %v1981, %v2052
        %v2083 = vadd.f32 %v1982, %v2055
        %v2084 = vadd.f32 %v1983, %v2060
        %v2085 = vadd.f32 %v1984, %v2063
        %v2086 = vadd.f32 %v1985, %v2068
        %v2087 = vadd.f32 %v1986, %v2071
        %v2088 = vadd.f32 %v1987, %v2076
        %v2089 = vadd.f32 %v1988, %v2079
        %2090 = vst.msk [vmem:[%s1932] sm:$0xff] %vm666, %v2082
        %2091 = vst.msk [vmem:[%s1932 + $0x8] sm:$0xff] %vm666, %v2083
        %2092 = vst.msk [vmem:[%s1932 + $0x10] sm:$0xff] %vm666, %v2084
        %2093 = vst.msk [vmem:[%s1932 + $0x18] sm:$0xff] %vm666, %v2085
        %2094 = vst.msk [vmem:[%s1932 + $0x20] sm:$0xff] %vm666, %v2086
        %2095 = vst.msk [vmem:[%s1932 + $0x28] sm:$0xff] %vm666, %v2087
        %2096 = vst.msk [vmem:[%s1932 + $0x30] sm:$0xff] %vm666, %v2088
        %2097 = vst.msk [vmem:[%s1932 + $0x38] sm:$0xff] %vm666, %v2089
        %2098 = vst.msk [vmem:[%s1762] sm:$0xff] %vm928, %v1787
        %2099 = vst.msk [vmem:[%s1762 + $0x8] sm:$0xff] %vm928, %v1788
        %2100 = vst.msk [vmem:[%s1762 + $0x10] sm:$0xff] %vm928, %v1789
        %2101 = vst.msk [vmem:[%s1762 + $0x18] sm:$0xff] %vm928, %v1790
        %2102 = vst.msk [vmem:[%s1762 + $0x20] sm:$0xff] %vm928, %v1791
        %2103 = vst.msk [vmem:[%s1762 + $0x28] sm:$0xff] %vm928, %v1792
        %2104 = vst.msk [vmem:[%s1762 + $0x30] sm:$0xff] %vm928, %v1793
        %2105 = vst.msk [vmem:[%s1762 + $0x38] sm:$0xff] %vm928, %v1794
        %s2106 = scalar_lea.vmem %s384, 96 [#allocation5]
        %v2107 = vld [vmem:[%s2106] sm:$0xf]
        %v2108 = vld [vmem:[%s2106 + $0x4] sm:$0xf]
        %v2109 = vld [vmem:[%s2106 + $0x8] sm:$0xf]
        %v2110 = vld [vmem:[%s2106 + $0xc] sm:$0xf]
        %v2111 = vld [vmem:[%s2106 + $0x10] sm:$0xf]
        %v2112 = vld [vmem:[%s2106 + $0x14] sm:$0xf]
        %v2113 = vld [vmem:[%s2106 + $0x18] sm:$0xf]
        %v2114 = vld [vmem:[%s2106 + $0x1c] sm:$0xf]
        %v2115 = vunpack.c.l.bf16 %v2107
        %v2116 = vunpack.c.l.bf16 %v2108
        %v2117 = vunpack.c.l.bf16 %v2109
        %v2118 = vunpack.c.l.bf16 %v2110
        %v2119 = vunpack.c.l.bf16 %v2111
        %v2120 = vunpack.c.l.bf16 %v2112
        %v2121 = vunpack.c.l.bf16 %v2113
        %v2122 = vunpack.c.l.bf16 %v2114
        %2123 = vrot.lane.b32.xlu0 %v622, 104
        %v2124 = vpop.permute.xlu0 %2123
        %2125 = vrot.lane.b32.xlu0 %v623, 104
        %v2126 = vpop.permute.xlu0 %2125
        %2127 = vrot.lane.b32.xlu0 %v624, 104
        %v2128 = vpop.permute.xlu0 %2127
        %2129 = vrot.lane.b32.xlu0 %v625, 104
        %v2130 = vpop.permute.xlu0 %2129
        %2131 = vrot.lane.b32.xlu0 %v658, 104
        %v2132 = vpop.permute.xlu0 %2131
        %2133 = vrot.lane.b32.xlu0 %v659, 104
        %v2134 = vpop.permute.xlu0 %2133
        %2135 = vrot.lane.b32.xlu0 %v660, 104
        %v2136 = vpop.permute.xlu0 %2135
        %2137 = vrot.lane.b32.xlu0 %v661, 104
        %v2138 = vpop.permute.xlu0 %2137
        %2139 = vrot.lane.b32.xlu0 %v662, 104
        %v2140 = vpop.permute.xlu0 %2139
        %2141 = vrot.lane.b32.xlu0 %v663, 104
        %v2142 = vpop.permute.xlu0 %2141
        %2143 = vrot.lane.b32.xlu0 %v664, 104
        %v2144 = vpop.permute.xlu0 %2143
        %2145 = vrot.lane.b32.xlu0 %v665, 104
        %v2146 = vpop.permute.xlu0 %2145
        %v2148 = vsel %vm666, %v2124, 0
        %v2151 = vsel %vm666, %v2126, 0
        %v2154 = vsel %vm666, %v2128, 0
        %v2157 = vsel %vm666, %v2130, 0
        %v2160 = vsel %vm666, %v2132, 0
        %v2163 = vsel %vm666, %v2134, 0
        %v2166 = vsel %vm666, %v2136, 0
        %v2169 = vsel %vm666, %v2138, 0
        %v2172 = vsel %vm666, %v2140, 0
        %v2175 = vsel %vm666, %v2142, 0
        %v2178 = vsel %vm666, %v2144, 0
        %v2181 = vsel %vm666, %v2146, 0
        %2183 = vmatprep.subr.bf16.mxu0 0
        %2184 = vmatpush1.bf16.xpose.msra.mxu0 %v2160
        %2185 = vmatprep.subr.bf16.mxu0 0
        %2186 = vmatpush1.bf16.xpose.msra.mxu0 %v2163
        %2187 = vmatprep.subr.bf16.mxu0 0
        %2188 = vmatpush1.bf16.xpose.msra.mxu0 %v2166
        %2189 = vmatprep.subr.bf16.mxu0 0
        %2190 = vmatpush1.bf16.xpose.msra.mxu0 %v2169
        %2191 = vmatprep.subr.bf16.mxu0 0
        %2192 = vmatpush1.bf16.xpose.msra.mxu0 %v2172
        %2193 = vmatprep.subr.bf16.mxu0 0
        %2194 = vmatpush1.bf16.xpose.msra.mxu0 %v2175
        %2195 = vmatprep.subr.bf16.mxu0 0
        %2196 = vmatpush1.bf16.xpose.msra.mxu0 %v2178
        %2197 = vmatprep.subr.bf16.mxu0 0
        %2198 = vmatpush1.bf16.xpose.msra.mxu0 %v2181
        %2199 = vmatprep.subr.bf16.mxu0 0
        %2200 = vmatpush1.bf16.xpose.msra.mxu0 0
        %2201 = vmatprep.subr.bf16.mxu0 0
        %2202 = vmatpush1.bf16.xpose.msra.mxu0 0
        %2203 = vmatprep.subr.bf16.mxu0 0
        %2204 = vmatpush1.bf16.xpose.msra.mxu0 0
        %2205 = vmatprep.subr.bf16.mxu0 0
        %2206 = vmatpush1.bf16.xpose.msra.mxu0 0
        %2207 = vmatprep.subr.bf16.mxu0 0
        %2208 = vmatpush1.bf16.xpose.msra.mxu0 0
        %2209 = vmatprep.subr.bf16.mxu0 0
        %2210 = vmatpush1.bf16.xpose.msra.mxu0 0
        %2211 = vmatprep.subr.bf16.mxu0 0
        %2212 = vmatpush1.bf16.xpose.msra.mxu0 0
        %2213 = vmatprep.subr.bf16.mxu0 0
        %2214 = vmatpush1.bf16.xpose.msra.mxu0 0
        %2215 = vmatprep.mubr.bf16.mxu0 0
        %2216 = vmatmul.mubr.bf16.gmra.mrb[0].mxu0 %v2148
        %v2217 = vpop.f32.mrb[0].mxu0
        %v2218 = vadd.f32 %v2115, %v2217
        %v2219 = vpop.f32.mrb[0].mxu0
        %v2220 = vpop.f32.mrb[0].mxu0
        %v2221 = vadd.f32 %v2116, %v2220
        %v2222 = vpop.f32.mrb[0].mxu0
        %2223 = vmatprep.mubr.bf16.mxu0 0
        %2224 = vmatmul.mubr.bf16.gmra.mrb[0].mxu0 %v2151
        %v2225 = vpop.f32.mrb[0].mxu0
        %v2226 = vadd.f32 %v2117, %v2225
        %v2227 = vpop.f32.mrb[0].mxu0
        %v2228 = vpop.f32.mrb[0].mxu0
        %v2229 = vadd.f32 %v2118, %v2228
        %v2230 = vpop.f32.mrb[0].mxu0
        %2231 = vmatprep.mubr.bf16.mxu0 0
        %2232 = vmatmul.mubr.bf16.gmra.mrb[0].mxu0 %v2154
        %v2233 = vpop.f32.mrb[0].mxu0
        %v2234 = vadd.f32 %v2119, %v2233
        %v2235 = vpop.f32.mrb[0].mxu0
        %v2236 = vpop.f32.mrb[0].mxu0
        %v2237 = vadd.f32 %v2120, %v2236
        %v2238 = vpop.f32.mrb[0].mxu0
        %2239 = vmatprep.mubr.bf16.mxu0 0
        %2240 = vmatmul.mubr.bf16.gmra.mrb[0].mxu0 %v2157
        %v2241 = vpop.f32.mrb[0].mxu0
        %v2242 = vadd.f32 %v2121, %v2241
        %v2243 = vpop.f32.mrb[0].mxu0
        %v2244 = vpop.f32.mrb[0].mxu0
        %v2245 = vadd.f32 %v2122, %v2244
        %v2246 = vpop.f32.mrb[0].mxu0
        %2247 = vdwg.mxu0
        %s2248 = scalar_lea.vmem [#allocation2], 192
        %v2249 = vld [vmem:[%s2248] sm:$0xff]
        %v2250 = vld [vmem:[%s2248 + $0x8] sm:$0xff]
        %v2251 = vld [vmem:[%s2248 + $0x10] sm:$0xff]
        %v2252 = vld [vmem:[%s2248 + $0x18] sm:$0xff]
        %v2253 = vld [vmem:[%s2248 + $0x20] sm:$0xff]
        %v2254 = vld [vmem:[%s2248 + $0x28] sm:$0xff]
        %v2255 = vld [vmem:[%s2248 + $0x30] sm:$0xff]
        %v2256 = vld [vmem:[%s2248 + $0x38] sm:$0xff]
        %2257 = vmax.xlane.f32.xlu0 %v2218
        %v2258 = vpop.xlane.xlu0 %2257
        %2259 = vmax.xlane.f32.xlu0 %v2221
        %v2260 = vpop.xlane.xlu0 %2259
        %2261 = vmax.xlane.f32.xlu0 %v2226
        %v2262 = vpop.xlane.xlu0 %2261
        %2263 = vmax.xlane.f32.xlu0 %v2229
        %v2264 = vpop.xlane.xlu0 %2263
        %2265 = vmax.xlane.f32.xlu0 %v2234
        %v2266 = vpop.xlane.xlu0 %2265
        %2267 = vmax.xlane.f32.xlu0 %v2237
        %v2268 = vpop.xlane.xlu0 %2267
        %2269 = vmax.xlane.f32.xlu0 %v2242
        %v2270 = vpop.xlane.xlu0 %2269
        %2271 = vmax.xlane.f32.xlu0 %v2245
        %v2272 = vpop.xlane.xlu0 %2271
        %v2273 = vmax.f32 %v2249, %v2258
        %v2274 = vmax.f32 %v2250, %v2260
        %v2275 = vmax.f32 %v2251, %v2262
        %v2276 = vmax.f32 %v2252, %v2264
        %v2277 = vmax.f32 %v2253, %v2266
        %v2278 = vmax.f32 %v2254, %v2268
        %v2279 = vmax.f32 %v2255, %v2270
        %v2280 = vmax.f32 %v2256, %v2272
        %v2281 = vsub.f32 %v2249, %v2273
        %v2282 = vsub.f32 %v2250, %v2274
        %v2283 = vsub.f32 %v2251, %v2275
        %v2284 = vsub.f32 %v2252, %v2276
        %v2285 = vsub.f32 %v2253, %v2277
        %v2286 = vsub.f32 %v2254, %v2278
        %v2287 = vsub.f32 %v2255, %v2279
        %v2288 = vsub.f32 %v2256, %v2280
        %v2289 = vmul.f32 %v2281, 1.442695
        %v2290 = vpow.pop %v2289
        %v2291 = vmul.f32 %v2282, 1.442695
        %v2292 = vpow.pop %v2291
        %v2293 = vmul.f32 %v2283, 1.442695
        %v2294 = vpow.pop %v2293
        %v2295 = vmul.f32 %v2284, 1.442695
        %v2296 = vpow.pop %v2295
        %v2297 = vmul.f32 %v2285, 1.442695
        %v2298 = vpow.pop %v2297
        %v2299 = vmul.f32 %v2286, 1.442695
        %v2300 = vpow.pop %v2299
        %v2301 = vmul.f32 %v2287, 1.442695
        %v2302 = vpow.pop %v2301
        %v2303 = vmul.f32 %v2288, 1.442695
        %v2304 = vpow.pop %v2303
        %2306 = vset.pattern.permute.xlu0 0
        %2307 = vperm.xlu0 %2306, %v2273
        %v2308 = vpop.permute.xlu0 %2307
        %2311 = vset.pattern.permute.xlu0 0
        %2312 = vperm.xlu0 %2311, %v2274
        %v2313 = vpop.permute.xlu0 %2312
        %2316 = vset.pattern.permute.xlu0 0
        %2317 = vperm.xlu0 %2316, %v2275
        %v2318 = vpop.permute.xlu0 %2317
        %2321 = vset.pattern.permute.xlu0 0
        %2322 = vperm.xlu0 %2321, %v2276
        %v2323 = vpop.permute.xlu0 %2322
        %2326 = vset.pattern.permute.xlu0 0
        %2327 = vperm.xlu0 %2326, %v2277
        %v2328 = vpop.permute.xlu0 %2327
        %2331 = vset.pattern.permute.xlu0 0
        %2332 = vperm.xlu0 %2331, %v2278
        %v2333 = vpop.permute.xlu0 %2332
        %2336 = vset.pattern.permute.xlu0 0
        %2337 = vperm.xlu0 %2336, %v2279
        %v2338 = vpop.permute.xlu0 %2337
        %2341 = vset.pattern.permute.xlu0 0
        %2342 = vperm.xlu0 %2341, %v2280
        %v2343 = vpop.permute.xlu0 %2342
        %v2345 = vsub.f32 %v2218, %v2308
        %v2346 = vsub.f32 %v2221, %v2313
        %v2347 = vsub.f32 %v2226, %v2318
        %v2348 = vsub.f32 %v2229, %v2323
        %v2349 = vsub.f32 %v2234, %v2328
        %v2350 = vsub.f32 %v2237, %v2333
        %v2351 = vsub.f32 %v2242, %v2338
        %v2352 = vsub.f32 %v2245, %v2343
        %v2353 = vmul.f32 %v2345, 1.442695
        %v2354 = vpow.pop %v2353
        %v2355 = vmul.f32 %v2346, 1.442695
        %v2356 = vpow.pop %v2355
        %v2357 = vmul.f32 %v2347, 1.442695
        %v2358 = vpow.pop %v2357
        %v2359 = vmul.f32 %v2348, 1.442695
        %v2360 = vpow.pop %v2359
        %v2361 = vmul.f32 %v2349, 1.442695
        %v2362 = vpow.pop %v2361
        %v2363 = vmul.f32 %v2350, 1.442695
        %v2364 = vpow.pop %v2363
        %v2365 = vmul.f32 %v2351, 1.442695
        %v2366 = vpow.pop %v2365
        %v2367 = vmul.f32 %v2352, 1.442695
        %v2368 = vpow.pop %v2367
        %s2369 = scalar_lea.vmem [#allocation3], 192
        %v2370 = vld [vmem:[%s2369] sm:$0xff]
        %v2371 = vld [vmem:[%s2369 + $0x8] sm:$0xff]
        %v2372 = vld [vmem:[%s2369 + $0x10] sm:$0xff]
        %v2373 = vld [vmem:[%s2369 + $0x18] sm:$0xff]
        %v2374 = vld [vmem:[%s2369 + $0x20] sm:$0xff]
        %v2375 = vld [vmem:[%s2369 + $0x28] sm:$0xff]
        %v2376 = vld [vmem:[%s2369 + $0x30] sm:$0xff]
        %v2377 = vld [vmem:[%s2369 + $0x38] sm:$0xff]
        %v2378 = vmul.f32 %v2290, %v2370
        %v2379 = vmul.f32 %v2292, %v2371
        %v2380 = vmul.f32 %v2294, %v2372
        %v2381 = vmul.f32 %v2296, %v2373
        %v2382 = vmul.f32 %v2298, %v2374
        %v2383 = vmul.f32 %v2300, %v2375
        %v2384 = vmul.f32 %v2302, %v2376
        %v2385 = vmul.f32 %v2304, %v2377
        %2386 = vadd.xlane.f32.xlu0 %v2354
        %v2387 = vpop.xlane.xlu0 %2386
        %2388 = vadd.xlane.f32.xlu0 %v2356
        %v2389 = vpop.xlane.xlu0 %2388
        %2390 = vadd.xlane.f32.xlu0 %v2358
        %v2391 = vpop.xlane.xlu0 %2390
        %2392 = vadd.xlane.f32.xlu0 %v2360
        %v2393 = vpop.xlane.xlu0 %2392
        %2394 = vadd.xlane.f32.xlu0 %v2362
        %v2395 = vpop.xlane.xlu0 %2394
        %2396 = vadd.xlane.f32.xlu0 %v2364
        %v2397 = vpop.xlane.xlu0 %2396
        %2398 = vadd.xlane.f32.xlu0 %v2366
        %v2399 = vpop.xlane.xlu0 %2398
        %2400 = vadd.xlane.f32.xlu0 %v2368
        %v2401 = vpop.xlane.xlu0 %2400
        %v2402 = vadd.f32 %v2378, %v2387
        %v2403 = vadd.f32 %v2379, %v2389
        %v2404 = vadd.f32 %v2380, %v2391
        %v2405 = vadd.f32 %v2381, %v2393
        %v2406 = vadd.f32 %v2382, %v2395
        %v2407 = vadd.f32 %v2383, %v2397
        %v2408 = vadd.f32 %v2384, %v2399
        %v2409 = vadd.f32 %v2385, %v2401
        %2410 = vst.msk [vmem:[%s2369] sm:$0xff] %vm928, %v2402
        %2411 = vst.msk [vmem:[%s2369 + $0x8] sm:$0xff] %vm928, %v2403
        %2412 = vst.msk [vmem:[%s2369 + $0x10] sm:$0xff] %vm928, %v2404
        %2413 = vst.msk [vmem:[%s2369 + $0x18] sm:$0xff] %vm928, %v2405
        %2414 = vst.msk [vmem:[%s2369 + $0x20] sm:$0xff] %vm928, %v2406
        %2415 = vst.msk [vmem:[%s2369 + $0x28] sm:$0xff] %vm928, %v2407
        %2416 = vst.msk [vmem:[%s2369 + $0x30] sm:$0xff] %vm928, %v2408
        %2417 = vst.msk [vmem:[%s2369 + $0x38] sm:$0xff] %vm928, %v2409
        %s2418 = scalar_lea.vmem [#allocation4], 192
        %v2419 = vld [vmem:[%s2418] sm:$0xff]
        %v2420 = vld [vmem:[%s2418 + $0x8] sm:$0xff]
        %v2421 = vld [vmem:[%s2418 + $0x10] sm:$0xff]
        %v2422 = vld [vmem:[%s2418 + $0x18] sm:$0xff]
        %v2423 = vld [vmem:[%s2418 + $0x20] sm:$0xff]
        %v2424 = vld [vmem:[%s2418 + $0x28] sm:$0xff]
        %v2425 = vld [vmem:[%s2418 + $0x30] sm:$0xff]
        %v2426 = vld [vmem:[%s2418 + $0x38] sm:$0xff]
        %2428 = vset.pattern.permute.xlu0 0
        %2429 = vperm.xlu0 %2428, %v2290
        %v2430 = vpop.permute.xlu0 %2429
        %2433 = vset.pattern.permute.xlu0 0
        %2434 = vperm.xlu0 %2433, %v2292
        %v2435 = vpop.permute.xlu0 %2434
        %2438 = vset.pattern.permute.xlu0 0
        %2439 = vperm.xlu0 %2438, %v2294
        %v2440 = vpop.permute.xlu0 %2439
        %2443 = vset.pattern.permute.xlu0 0
        %2444 = vperm.xlu0 %2443, %v2296
        %v2445 = vpop.permute.xlu0 %2444
        %2448 = vset.pattern.permute.xlu0 0
        %2449 = vperm.xlu0 %2448, %v2298
        %v2450 = vpop.permute.xlu0 %2449
        %2453 = vset.pattern.permute.xlu0 0
        %2454 = vperm.xlu0 %2453, %v2300
        %v2455 = vpop.permute.xlu0 %2454
        %2458 = vset.pattern.permute.xlu0 0
        %2459 = vperm.xlu0 %2458, %v2302
        %v2460 = vpop.permute.xlu0 %2459
        %2463 = vset.pattern.permute.xlu0 0
        %2464 = vperm.xlu0 %2463, %v2304
        %v2465 = vpop.permute.xlu0 %2464
        %v2467 = vmul.f32 %v2430, %v2419
        %v2468 = vmul.f32 %v2435, %v2420
        %v2469 = vmul.f32 %v2440, %v2421
        %v2470 = vmul.f32 %v2445, %v2422
        %v2471 = vmul.f32 %v2450, %v2423
        %v2472 = vmul.f32 %v2455, %v2424
        %v2473 = vmul.f32 %v2460, %v2425
        %v2474 = vmul.f32 %v2465, %v2426
        %v2475 = vpack.c.bf16 %v2356, %v2354
        %v2476 = vpack.c.bf16 %v2360, %v2358
        %v2477 = vpack.c.bf16 %v2364, %v2362
        %v2478 = vpack.c.bf16 %v2368, %v2366
        %2479 = vrot.lane.b32.xlu0 %v1029, 104
        %v2480 = vpop.permute.xlu0 %2479
        %2481 = vrot.lane.b32.xlu0 %v1030, 104
        %v2482 = vpop.permute.xlu0 %2481
        %2483 = vrot.lane.b32.xlu0 %v1031, 104
        %v2484 = vpop.permute.xlu0 %2483
        %2485 = vrot.lane.b32.xlu0 %v1032, 104
        %v2486 = vpop.permute.xlu0 %2485
        %2487 = vrot.lane.b32.xlu0 %v1033, 104
        %v2488 = vpop.permute.xlu0 %2487
        %2489 = vrot.lane.b32.xlu0 %v1034, 104
        %v2490 = vpop.permute.xlu0 %2489
        %2491 = vrot.lane.b32.xlu0 %v1035, 104
        %v2492 = vpop.permute.xlu0 %2491
        %2493 = vrot.lane.b32.xlu0 %v1036, 104
        %v2494 = vpop.permute.xlu0 %2493
        %2503 = vmatprep.subr.bf16.mxu0 0
        %2504 = vmatpush1.bf16.msra.mxu0 %v2480
        %2505 = vmatprep.subr.bf16.mxu0 0
        %2506 = vmatpush1.bf16.msra.mxu0 %v2482
        %2507 = vmatprep.subr.bf16.mxu0 0
        %2508 = vmatpush1.bf16.msra.mxu0 %v2484
        %2509 = vmatprep.subr.bf16.mxu0 0
        %2510 = vmatpush1.bf16.msra.mxu0 %v2486
        %2511 = vmatprep.subr.bf16.mxu0 0
        %2512 = vmatpush1.bf16.msra.mxu0 %v2488
        %2513 = vmatprep.subr.bf16.mxu0 0
        %2514 = vmatpush1.bf16.msra.mxu0 %v2490
        %2515 = vmatprep.subr.bf16.mxu0 0
        %2516 = vmatpush1.bf16.msra.mxu0 %v2492
        %2517 = vmatprep.subr.bf16.mxu0 0
        %2518 = vmatpush1.bf16.msra.mxu0 %v2494
        %2519 = vmatprep.subr.bf16.mxu0 0
        %2520 = vmatpush1.bf16.msra.mxu0 0
        %2521 = vmatprep.subr.bf16.mxu0 0
        %2522 = vmatpush1.bf16.msra.mxu0 0
        %2523 = vmatprep.subr.bf16.mxu0 0
        %2524 = vmatpush1.bf16.msra.mxu0 0
        %2525 = vmatprep.subr.bf16.mxu0 0
        %2526 = vmatpush1.bf16.msra.mxu0 0
        %2527 = vmatprep.subr.bf16.mxu0 0
        %2528 = vmatpush1.bf16.msra.mxu0 0
        %2529 = vmatprep.subr.bf16.mxu0 0
        %2530 = vmatpush1.bf16.msra.mxu0 0
        %2531 = vmatprep.subr.bf16.mxu0 0
        %2532 = vmatpush1.bf16.msra.mxu0 0
        %2533 = vmatprep.subr.bf16.mxu0 0
        %2534 = vmatpush1.bf16.msra.mxu0 0
        %2535 = vmatprep.mubr.bf16.mxu0 0
        %2536 = vmatmul.mubr.bf16.gmra.mrb[0].mxu0 %v2475
        %v2537 = vpop.f32.mrb[0].mxu0
        %v2538 = vadd.f32 0.0, %v2537
        %v2539 = vpop.f32.mrb[0].mxu0
        %v2540 = vpop.f32.mrb[0].mxu0
        %v2541 = vadd.f32 0.0, %v2540
        %v2542 = vpop.f32.mrb[0].mxu0
        %2543 = vmatprep.mubr.bf16.mxu0 0
        %2544 = vmatmul.mubr.bf16.gmra.mrb[0].mxu0 %v2476
        %v2545 = vpop.f32.mrb[0].mxu0
        %v2546 = vadd.f32 0.0, %v2545
        %v2547 = vpop.f32.mrb[0].mxu0
        %v2548 = vpop.f32.mrb[0].mxu0
        %v2549 = vadd.f32 0.0, %v2548
        %v2550 = vpop.f32.mrb[0].mxu0
        %2551 = vmatprep.mubr.bf16.mxu0 0
        %2552 = vmatmul.mubr.bf16.gmra.mrb[0].mxu0 %v2477
        %v2553 = vpop.f32.mrb[0].mxu0
        %v2554 = vadd.f32 0.0, %v2553
        %v2555 = vpop.f32.mrb[0].mxu0
        %v2556 = vpop.f32.mrb[0].mxu0
        %v2557 = vadd.f32 0.0, %v2556
        %v2558 = vpop.f32.mrb[0].mxu0
        %2559 = vmatprep.mubr.bf16.mxu0 0
        %2560 = vmatmul.mubr.bf16.gmra.mrb[0].mxu0 %v2478
        %v2561 = vpop.f32.mrb[0].mxu0
        %v2562 = vadd.f32 0.0, %v2561
        %v2563 = vpop.f32.mrb[0].mxu0
        %v2564 = vpop.f32.mrb[0].mxu0
        %v2565 = vadd.f32 0.0, %v2564
        %v2566 = vpop.f32.mrb[0].mxu0
        %2567 = vdwg.mxu0
        %v2568 = vadd.f32 %v2467, %v2538
        %v2569 = vadd.f32 %v2468, %v2541
        %v2570 = vadd.f32 %v2469, %v2546
        %v2571 = vadd.f32 %v2470, %v2549
        %v2572 = vadd.f32 %v2471, %v2554
        %v2573 = vadd.f32 %v2472, %v2557
        %v2574 = vadd.f32 %v2473, %v2562
        %v2575 = vadd.f32 %v2474, %v2565
        %2576 = vst.msk [vmem:[%s2418] sm:$0xff] %vm666, %v2568
        %2577 = vst.msk [vmem:[%s2418 + $0x8] sm:$0xff] %vm666, %v2569
        %2578 = vst.msk [vmem:[%s2418 + $0x10] sm:$0xff] %vm666, %v2570
        %2579 = vst.msk [vmem:[%s2418 + $0x18] sm:$0xff] %vm666, %v2571
        %2580 = vst.msk [vmem:[%s2418 + $0x20] sm:$0xff] %vm666, %v2572
        %2581 = vst.msk [vmem:[%s2418 + $0x28] sm:$0xff] %vm666, %v2573
        %2582 = vst.msk [vmem:[%s2418 + $0x30] sm:$0xff] %vm666, %v2574
        %2583 = vst.msk [vmem:[%s2418 + $0x38] sm:$0xff] %vm666, %v2575
        %2584 = vst.msk [vmem:[%s2248] sm:$0xff] %vm928, %v2273
        %2585 = vst.msk [vmem:[%s2248 + $0x8] sm:$0xff] %vm928, %v2274
        %2586 = vst.msk [vmem:[%s2248 + $0x10] sm:$0xff] %vm928, %v2275
        %2587 = vst.msk [vmem:[%s2248 + $0x18] sm:$0xff] %vm928, %v2276
        %2588 = vst.msk [vmem:[%s2248 + $0x20] sm:$0xff] %vm928, %v2277
        %2589 = vst.msk [vmem:[%s2248 + $0x28] sm:$0xff] %vm928, %v2278
        %2590 = vst.msk [vmem:[%s2248 + $0x30] sm:$0xff] %vm928, %v2279
        %2591 = vst.msk [vmem:[%s2248 + $0x38] sm:$0xff] %vm928, %v2280
        // Predicated region
        $region82: #{grit_layer.4} parent=72 // pred_check
          %p2592 = pneg %p448
        $region83: #{grit_layer.4} parent=72 // pred_check_branch
          %2594 = sbr.rel (%p2592) target = $region85
        $region84: #{grit_layer.4} parent=72 // pred_region
          %v2595 = vld [vmem:[#allocation3] sm:$0xff]
          %v2596 = vld [vmem:[#allocation3 + $0x8] sm:$0xff]
          %v2597 = vld [vmem:[#allocation3 + $0x10] sm:$0xff]
          %v2598 = vld [vmem:[#allocation3 + $0x18] sm:$0xff]
          %v2599 = vld [vmem:[#allocation3 + $0x20] sm:$0xff]
          %v2600 = vld [vmem:[#allocation3 + $0x28] sm:$0xff]
          %v2601 = vld [vmem:[#allocation3 + $0x30] sm:$0xff]
          %v2602 = vld [vmem:[#allocation3 + $0x38] sm:$0xff]
          %vm2603 = vcmp.eq.f32.partialorder %v2595, 0.0
          %vm2604 = vcmp.eq.f32.partialorder %v2596, 0.0
          %vm2605 = vcmp.eq.f32.partialorder %v2597, 0.0
          %vm2606 = vcmp.eq.f32.partialorder %v2598, 0.0
          %vm2607 = vcmp.eq.f32.partialorder %v2599, 0.0
          %vm2608 = vcmp.eq.f32.partialorder %v2600, 0.0
          %vm2609 = vcmp.eq.f32.partialorder %v2601, 0.0
          %vm2610 = vcmp.eq.f32.partialorder %v2602, 0.0
          %v2611 = vsel %vm2603, 1.0, %v2595
          %v2612 = vsel %vm2604, 1.0, %v2596
          %v2613 = vsel %vm2605, 1.0, %v2597
          %v2614 = vsel %vm2606, 1.0, %v2598
          %v2615 = vsel %vm2607, 1.0, %v2599
          %v2616 = vsel %vm2608, 1.0, %v2600
          %v2617 = vsel %vm2609, 1.0, %v2601
          %v2618 = vsel %vm2610, 1.0, %v2602
          %v2619 = vld [vmem:[#allocation4] sm:$0xff]
          %v2620 = vld [vmem:[#allocation4 + $0x8] sm:$0xff]
          %v2621 = vld [vmem:[#allocation4 + $0x10] sm:$0xff]
          %v2622 = vld [vmem:[#allocation4 + $0x18] sm:$0xff]
          %v2623 = vld [vmem:[#allocation4 + $0x20] sm:$0xff]
          %v2624 = vld [vmem:[#allocation4 + $0x28] sm:$0xff]
          %v2625 = vld [vmem:[#allocation4 + $0x30] sm:$0xff]
          %v2626 = vld [vmem:[#allocation4 + $0x38] sm:$0xff]
          %2628 = vset.pattern.permute.xlu0 0
          %2629 = vperm.xlu0 %2628, %v2611
          %v2630 = vpop.permute.xlu0 %2629
          %2633 = vset.pattern.permute.xlu0 0
          %2634 = vperm.xlu0 %2633, %v2612
          %v2635 = vpop.permute.xlu0 %2634
          %2638 = vset.pattern.permute.xlu0 0
          %2639 = vperm.xlu0 %2638, %v2613
          %v2640 = vpop.permute.xlu0 %2639
          %2643 = vset.pattern.permute.xlu0 0
          %2644 = vperm.xlu0 %2643, %v2614
          %v2645 = vpop.permute.xlu0 %2644
          %2648 = vset.pattern.permute.xlu0 0
          %2649 = vperm.xlu0 %2648, %v2615
          %v2650 = vpop.permute.xlu0 %2649
          %2653 = vset.pattern.permute.xlu0 0
          %2654 = vperm.xlu0 %2653, %v2616
          %v2655 = vpop.permute.xlu0 %2654
          %2658 = vset.pattern.permute.xlu0 0
          %2659 = vperm.xlu0 %2658, %v2617
          %v2660 = vpop.permute.xlu0 %2659
          %2663 = vset.pattern.permute.xlu0 0
          %2664 = vperm.xlu0 %2663, %v2618
          %v2665 = vpop.permute.xlu0 %2664
          %v2667 = vrcp.pop %v2630
          %v2668 = vmul.f32 %v2619, %v2667
          %v2669 = vrcp.pop %v2635
          %v2670 = vmul.f32 %v2620, %v2669
          %v2671 = vrcp.pop %v2640
          %v2672 = vmul.f32 %v2621, %v2671
          %v2673 = vrcp.pop %v2645
          %v2674 = vmul.f32 %v2622, %v2673
          %v2675 = vrcp.pop %v2650
          %v2676 = vmul.f32 %v2623, %v2675
          %v2677 = vrcp.pop %v2655
          %v2678 = vmul.f32 %v2624, %v2677
          %v2679 = vrcp.pop %v2660
          %v2680 = vmul.f32 %v2625, %v2679
          %v2681 = vrcp.pop %v2665
          %v2682 = vmul.f32 %v2626, %v2681
          %v2683 = vld [vmem:[%s1397] sm:$0xff]
          %v2684 = vld [vmem:[%s1397 + $0x8] sm:$0xff]
          %v2685 = vld [vmem:[%s1397 + $0x10] sm:$0xff]
          %v2686 = vld [vmem:[%s1397 + $0x18] sm:$0xff]
          %v2687 = vld [vmem:[%s1397 + $0x20] sm:$0xff]
          %v2688 = vld [vmem:[%s1397 + $0x28] sm:$0xff]
          %v2689 = vld [vmem:[%s1397 + $0x30] sm:$0xff]
          %v2690 = vld [vmem:[%s1397 + $0x38] sm:$0xff]
          %vm2691 = vcmp.eq.f32.partialorder %v2683, 0.0
          %vm2692 = vcmp.eq.f32.partialorder %v2684, 0.0
          %vm2693 = vcmp.eq.f32.partialorder %v2685, 0.0
          %vm2694 = vcmp.eq.f32.partialorder %v2686, 0.0
          %vm2695 = vcmp.eq.f32.partialorder %v2687, 0.0
          %vm2696 = vcmp.eq.f32.partialorder %v2688, 0.0
          %vm2697 = vcmp.eq.f32.partialorder %v2689, 0.0
          %vm2698 = vcmp.eq.f32.partialorder %v2690, 0.0
          %v2699 = vsel %vm2691, 1.0, %v2683
          %v2700 = vsel %vm2692, 1.0, %v2684
          %v2701 = vsel %vm2693, 1.0, %v2685
          %v2702 = vsel %vm2694, 1.0, %v2686
          %v2703 = vsel %vm2695, 1.0, %v2687
          %v2704 = vsel %vm2696, 1.0, %v2688
          %v2705 = vsel %vm2697, 1.0, %v2689
          %v2706 = vsel %vm2698, 1.0, %v2690
          %v2707 = vld [vmem:[%s1446] sm:$0xff]
          %v2708 = vld [vmem:[%s1446 + $0x8] sm:$0xff]
          %v2709 = vld [vmem:[%s1446 + $0x10] sm:$0xff]
          %v2710 = vld [vmem:[%s1446 + $0x18] sm:$0xff]
          %v2711 = vld [vmem:[%s1446 + $0x20] sm:$0xff]
          %v2712 = vld [vmem:[%s1446 + $0x28] sm:$0xff]
          %v2713 = vld [vmem:[%s1446 + $0x30] sm:$0xff]
          %v2714 = vld [vmem:[%s1446 + $0x38] sm:$0xff]
          %2716 = vset.pattern.permute.xlu0 0
          %2717 = vperm.xlu0 %2716, %v2699
          %v2718 = vpop.permute.xlu0 %2717
          %2721 = vset.pattern.permute.xlu0 0
          %2722 = vperm.xlu0 %2721, %v2700
          %v2723 = vpop.permute.xlu0 %2722
          %2726 = vset.pattern.permute.xlu0 0
          %2727 = vperm.xlu0 %2726, %v2701
          %v2728 = vpop.permute.xlu0 %2727
          %2731 = vset.pattern.permute.xlu0 0
          %2732 = vperm.xlu0 %2731, %v2702
          %v2733 = vpop.permute.xlu0 %2732
          %2736 = vset.pattern.permute.xlu0 0
          %2737 = vperm.xlu0 %2736, %v2703
          %v2738 = vpop.permute.xlu0 %2737
          %2741 = vset.pattern.permute.xlu0 0
          %2742 = vperm.xlu0 %2741, %v2704
          %v2743 = vpop.permute.xlu0 %2742
          %2746 = vset.pattern.permute.xlu0 0
          %2747 = vperm.xlu0 %2746, %v2705
          %v2748 = vpop.permute.xlu0 %2747
          %2751 = vset.pattern.permute.xlu0 0
          %2752 = vperm.xlu0 %2751, %v2706
          %v2753 = vpop.permute.xlu0 %2752
          %v2755 = vrcp.pop %v2718
          %v2756 = vmul.f32 %v2707, %v2755
          %v2757 = vrcp.pop %v2723
          %v2758 = vmul.f32 %v2708, %v2757
          %v2759 = vrcp.pop %v2728
          %v2760 = vmul.f32 %v2709, %v2759
          %v2761 = vrcp.pop %v2733
          %v2762 = vmul.f32 %v2710, %v2761
          %v2763 = vrcp.pop %v2738
          %v2764 = vmul.f32 %v2711, %v2763
          %v2765 = vrcp.pop %v2743
          %v2766 = vmul.f32 %v2712, %v2765
          %v2767 = vrcp.pop %v2748
          %v2768 = vmul.f32 %v2713, %v2767
          %v2769 = vrcp.pop %v2753
          %v2770 = vmul.f32 %v2714, %v2769
          %v2771 = vld [vmem:[%s1883] sm:$0xff]
          %v2772 = vld [vmem:[%s1883 + $0x8] sm:$0xff]
          %v2773 = vld [vmem:[%s1883 + $0x10] sm:$0xff]
          %v2774 = vld [vmem:[%s1883 + $0x18] sm:$0xff]
          %v2775 = vld [vmem:[%s1883 + $0x20] sm:$0xff]
          %v2776 = vld [vmem:[%s1883 + $0x28] sm:$0xff]
          %v2777 = vld [vmem:[%s1883 + $0x30] sm:$0xff]
          %v2778 = vld [vmem:[%s1883 + $0x38] sm:$0xff]
          %vm2779 = vcmp.eq.f32.partialorder %v2771, 0.0
          %vm2780 = vcmp.eq.f32.partialorder %v2772, 0.0
          %vm2781 = vcmp.eq.f32.partialorder %v2773, 0.0
          %vm2782 = vcmp.eq.f32.partialorder %v2774, 0.0
          %vm2783 = vcmp.eq.f32.partialorder %v2775, 0.0
          %vm2784 = vcmp.eq.f32.partialorder %v2776, 0.0
          %vm2785 = vcmp.eq.f32.partialorder %v2777, 0.0
          %vm2786 = vcmp.eq.f32.partialorder %v2778, 0.0
          %v2787 = vsel %vm2779, 1.0, %v2771
          %v2788 = vsel %vm2780, 1.0, %v2772
          %v2789 = vsel %vm2781, 1.0, %v2773
          %v2790 = vsel %vm2782, 1.0, %v2774
          %v2791 = vsel %vm2783, 1.0, %v2775
          %v2792 = vsel %vm2784, 1.0, %v2776
          %v2793 = vsel %vm2785, 1.0, %v2777
          %v2794 = vsel %vm2786, 1.0, %v2778
          %v2795 = vld [vmem:[%s1932] sm:$0xff]
          %v2796 = vld [vmem:[%s1932 + $0x8] sm:$0xff]
          %v2797 = vld [vmem:[%s1932 + $0x10] sm:$0xff]
          %v2798 = vld [vmem:[%s1932 + $0x18] sm:$0xff]
          %v2799 = vld [vmem:[%s1932 + $0x20] sm:$0xff]
          %v2800 = vld [vmem:[%s1932 + $0x28] sm:$0xff]
          %v2801 = vld [vmem:[%s1932 + $0x30] sm:$0xff]
          %v2802 = vld [vmem:[%s1932 + $0x38] sm:$0xff]
          %2804 = vset.pattern.permute.xlu0 0
          %2805 = vperm.xlu0 %2804, %v2787
          %v2806 = vpop.permute.xlu0 %2805
          %2809 = vset.pattern.permute.xlu0 0
          %2810 = vperm.xlu0 %2809, %v2788
          %v2811 = vpop.permute.xlu0 %2810
          %2814 = vset.pattern.permute.xlu0 0
          %2815 = vperm.xlu0 %2814, %v2789
          %v2816 = vpop.permute.xlu0 %2815
          %2819 = vset.pattern.permute.xlu0 0
          %2820 = vperm.xlu0 %2819, %v2790
          %v2821 = vpop.permute.xlu0 %2820
          %2824 = vset.pattern.permute.xlu0 0
          %2825 = vperm.xlu0 %2824, %v2791
          %v2826 = vpop.permute.xlu0 %2825
          %2829 = vset.pattern.permute.xlu0 0
          %2830 = vperm.xlu0 %2829, %v2792
          %v2831 = vpop.permute.xlu0 %2830
          %2834 = vset.pattern.permute.xlu0 0
          %2835 = vperm.xlu0 %2834, %v2793
          %v2836 = vpop.permute.xlu0 %2835
          %2839 = vset.pattern.permute.xlu0 0
          %2840 = vperm.xlu0 %2839, %v2794
          %v2841 = vpop.permute.xlu0 %2840
          %v2843 = vrcp.pop %v2806
          %v2844 = vmul.f32 %v2795, %v2843
          %v2845 = vrcp.pop %v2811
          %v2846 = vmul.f32 %v2796, %v2845
          %v2847 = vrcp.pop %v2816
          %v2848 = vmul.f32 %v2797, %v2847
          %v2849 = vrcp.pop %v2821
          %v2850 = vmul.f32 %v2798, %v2849
          %v2851 = vrcp.pop %v2826
          %v2852 = vmul.f32 %v2799, %v2851
          %v2853 = vrcp.pop %v2831
          %v2854 = vmul.f32 %v2800, %v2853
          %v2855 = vrcp.pop %v2836
          %v2856 = vmul.f32 %v2801, %v2855
          %v2857 = vrcp.pop %v2841
          %v2858 = vmul.f32 %v2802, %v2857
          %v2859 = vld [vmem:[%s2369] sm:$0xff]
          %v2860 = vld [vmem:[%s2369 + $0x8] sm:$0xff]
          %v2861 = vld [vmem:[%s2369 + $0x10] sm:$0xff]
          %v2862 = vld [vmem:[%s2369 + $0x18] sm:$0xff]
          %v2863 = vld [vmem:[%s2369 + $0x20] sm:$0xff]
          %v2864 = vld [vmem:[%s2369 + $0x28] sm:$0xff]
          %v2865 = vld [vmem:[%s2369 + $0x30] sm:$0xff]
          %v2866 = vld [vmem:[%s2369 + $0x38] sm:$0xff]
          %vm2867 = vcmp.eq.f32.partialorder %v2859, 0.0
          %vm2868 = vcmp.eq.f32.partialorder %v2860, 0.0
          %vm2869 = vcmp.eq.f32.partialorder %v2861, 0.0
          %vm2870 = vcmp.eq.f32.partialorder %v2862, 0.0
          %vm2871 = vcmp.eq.f32.partialorder %v2863, 0.0
          %vm2872 = vcmp.eq.f32.partialorder %v2864, 0.0
          %vm2873 = vcmp.eq.f32.partialorder %v2865, 0.0
          %vm2874 = vcmp.eq.f32.partialorder %v2866, 0.0
          %v2875 = vsel %vm2867, 1.0, %v2859
          %v2876 = vsel %vm2868, 1.0, %v2860
          %v2877 = vsel %vm2869, 1.0, %v2861
          %v2878 = vsel %vm2870, 1.0, %v2862
          %v2879 = vsel %vm2871, 1.0, %v2863
          %v2880 = vsel %vm2872, 1.0, %v2864
          %v2881 = vsel %vm2873, 1.0, %v2865
          %v2882 = vsel %vm2874, 1.0, %v2866
          %v2883 = vld [vmem:[%s2418] sm:$0xff]
          %v2884 = vld [vmem:[%s2418 + $0x8] sm:$0xff]
          %v2885 = vld [vmem:[%s2418 + $0x10] sm:$0xff]
          %v2886 = vld [vmem:[%s2418 + $0x18] sm:$0xff]
          %v2887 = vld [vmem:[%s2418 + $0x20] sm:$0xff]
          %v2888 = vld [vmem:[%s2418 + $0x28] sm:$0xff]
          %v2889 = vld [vmem:[%s2418 + $0x30] sm:$0xff]
          %v2890 = vld [vmem:[%s2418 + $0x38] sm:$0xff]
          %2892 = vset.pattern.permute.xlu0 0
          %2893 = vperm.xlu0 %2892, %v2875
          %v2894 = vpop.permute.xlu0 %2893
          %2897 = vset.pattern.permute.xlu0 0
          %2898 = vperm.xlu0 %2897, %v2876
          %v2899 = vpop.permute.xlu0 %2898
          %2902 = vset.pattern.permute.xlu0 0
          %2903 = vperm.xlu0 %2902, %v2877
          %v2904 = vpop.permute.xlu0 %2903
          %2907 = vset.pattern.permute.xlu0 0
          %2908 = vperm.xlu0 %2907, %v2878
          %v2909 = vpop.permute.xlu0 %2908
          %2912 = vset.pattern.permute.xlu0 0
          %2913 = vperm.xlu0 %2912, %v2879
          %v2914 = vpop.permute.xlu0 %2913
          %2917 = vset.pattern.permute.xlu0 0
          %2918 = vperm.xlu0 %2917, %v2880
          %v2919 = vpop.permute.xlu0 %2918
          %2922 = vset.pattern.permute.xlu0 0
          %2923 = vperm.xlu0 %2922, %v2881
          %v2924 = vpop.permute.xlu0 %2923
          %2927 = vset.pattern.permute.xlu0 0
          %2928 = vperm.xlu0 %2927, %v2882
          %v2929 = vpop.permute.xlu0 %2928
          %v2931 = vrcp.pop %v2894
          %v2932 = vmul.f32 %v2883, %v2931
          %v2933 = vrcp.pop %v2899
          %v2934 = vmul.f32 %v2884, %v2933
          %v2935 = vrcp.pop %v2904
          %v2936 = vmul.f32 %v2885, %v2935
          %v2937 = vrcp.pop %v2909
          %v2938 = vmul.f32 %v2886, %v2937
          %v2939 = vrcp.pop %v2914
          %v2940 = vmul.f32 %v2887, %v2939
          %v2941 = vrcp.pop %v2919
          %v2942 = vmul.f32 %v2888, %v2941
          %v2943 = vrcp.pop %v2924
          %v2944 = vmul.f32 %v2889, %v2943
          %v2945 = vrcp.pop %v2929
          %v2946 = vmul.f32 %v2890, %v2945
          %2955 = vrot.lane.b32.xlu0 %v2756, 8
          %v2956 = vpop.permute.xlu0 %2955
          %2957 = vrot.lane.b32.xlu0 %v2758, 8
          %v2958 = vpop.permute.xlu0 %2957
          %2959 = vrot.lane.b32.xlu0 %v2760, 8
          %v2960 = vpop.permute.xlu0 %2959
          %2961 = vrot.lane.b32.xlu0 %v2762, 8
          %v2962 = vpop.permute.xlu0 %2961
          %2963 = vrot.lane.b32.xlu0 %v2764, 8
          %v2964 = vpop.permute.xlu0 %2963
          %2965 = vrot.lane.b32.xlu0 %v2766, 8
          %v2966 = vpop.permute.xlu0 %2965
          %2967 = vrot.lane.b32.xlu0 %v2768, 8
          %v2968 = vpop.permute.xlu0 %2967
          %2969 = vrot.lane.b32.xlu0 %v2770, 8
          %v2970 = vpop.permute.xlu0 %2969
          %2987 = vrot.lane.b32.xlu0 %v2844, 16
          %v2988 = vpop.permute.xlu0 %2987
          %2989 = vrot.lane.b32.xlu0 %v2846, 16
          %v2990 = vpop.permute.xlu0 %2989
          %2991 = vrot.lane.b32.xlu0 %v2848, 16
          %v2992 = vpop.permute.xlu0 %2991
          %2993 = vrot.lane.b32.xlu0 %v2850, 16
          %v2994 = vpop.permute.xlu0 %2993
          %2995 = vrot.lane.b32.xlu0 %v2852, 16
          %v2996 = vpop.permute.xlu0 %2995
          %2997 = vrot.lane.b32.xlu0 %v2854, 16
          %v2998 = vpop.permute.xlu0 %2997
          %2999 = vrot.lane.b32.xlu0 %v2856, 16
          %v3000 = vpop.permute.xlu0 %2999
          %3001 = vrot.lane.b32.xlu0 %v2858, 16
          %v3002 = vpop.permute.xlu0 %3001
          %3019 = vrot.lane.b32.xlu0 %v2932, 24
          %v3020 = vpop.permute.xlu0 %3019
          %3021 = vrot.lane.b32.xlu0 %v2934, 24
          %v3022 = vpop.permute.xlu0 %3021
          %3023 = vrot.lane.b32.xlu0 %v2936, 24
          %v3024 = vpop.permute.xlu0 %3023
          %3025 = vrot.lane.b32.xlu0 %v2938, 24
          %v3026 = vpop.permute.xlu0 %3025
          %3027 = vrot.lane.b32.xlu0 %v2940, 24
          %v3028 = vpop.permute.xlu0 %3027
          %3029 = vrot.lane.b32.xlu0 %v2942, 24
          %v3030 = vpop.permute.xlu0 %3029
          %3031 = vrot.lane.b32.xlu0 %v2944, 24
          %v3032 = vpop.permute.xlu0 %3031
          %3033 = vrot.lane.b32.xlu0 %v2946, 24
          %v3034 = vpop.permute.xlu0 %3033
          %v3043 = vsel %vm666, %v2668, %v2956
          %v3044 = vsel %vm666, %v2670, %v2958
          %v3045 = vsel %vm666, %v2672, %v2960
          %v3046 = vsel %vm666, %v2674, %v2962
          %v3047 = vsel %vm666, %v2676, %v2964
          %v3048 = vsel %vm666, %v2678, %v2966
          %v3049 = vsel %vm666, %v2680, %v2968
          %v3050 = vsel %vm666, %v2682, %v2970
          %vm3051 = vcmask 130048
          %v3052 = vsel %vm3051, %v3043, %v2988
          %v3053 = vsel %vm3051, %v3044, %v2990
          %v3054 = vsel %vm3051, %v3045, %v2992
          %v3055 = vsel %vm3051, %v3046, %v2994
          %v3056 = vsel %vm3051, %v3047, %v2996
          %v3057 = vsel %vm3051, %v3048, %v2998
          %v3058 = vsel %vm3051, %v3049, %v3000
          %v3059 = vsel %vm3051, %v3050, %v3002
          %vm3060 = vcmask 195584
          %v3061 = vsel %vm3060, %v3052, %v3020
          %v3062 = vsel %vm3060, %v3053, %v3022
          %v3063 = vsel %vm3060, %v3054, %v3024
          %v3064 = vsel %vm3060, %v3055, %v3026
          %v3065 = vsel %vm3060, %v3056, %v3028
          %v3066 = vsel %vm3060, %v3057, %v3030
          %v3067 = vsel %vm3060, %v3058, %v3032
          %v3068 = vsel %vm3060, %v3059, %v3034
          %vm3069 = vcmask 261120
          %3070 = vst.msk [vmem:[%s445] sm:$0xff] %vm3069, %v3061
          %3071 = vst.msk [vmem:[%s445 + $0x8] sm:$0xff] %vm3069, %v3062
          %3072 = vst.msk [vmem:[%s445 + $0x10] sm:$0xff] %vm3069, %v3063
          %3073 = vst.msk [vmem:[%s445 + $0x18] sm:$0xff] %vm3069, %v3064
          %3074 = vst.msk [vmem:[%s445 + $0x20] sm:$0xff] %vm3069, %v3065
          %3075 = vst.msk [vmem:[%s445 + $0x28] sm:$0xff] %vm3069, %v3066
          %3076 = vst.msk [vmem:[%s445 + $0x30] sm:$0xff] %vm3069, %v3067
          %3077 = vst.msk [vmem:[%s445 + $0x38] sm:$0xff] %vm3069, %v3068
        $region85: #{grit_layer.4} parent=72 // pred_fallthru
          _
        %s3078 = smul.u32 8, %s19
        %p3079 = scmp.lt.s32.totalorder %s3078, 15
        %s3080 = scalar_select %p3079, %s3078, 15
        %s3081 = smul.addr %s3080, 8
        %s3082 = scalar_lea.vmem %s4, %s3081
        // Predicated region
        $region86: #{grit_layer.4} parent=72 // pred_check
          %p3083 = pneg %p151
        $region87: #{grit_layer.4} parent=72 // pred_check_branch
          %3085 = sbr.rel (%p3083) target = $region89
        $region88: #{grit_layer.4} parent=72 // pred_region
          %s3086 = smul.u32 8, %s19
        $region89: #{grit_layer.4} parent=72 // pred_fallthru
          _
      $region73: #{grit_layer.4} parent=5 // pred_fallthru
        _
      %p3087 = scmp.le.s32.totalorder 2, %s10
      // Predicated region
      $region90: #{grit_layer.4} parent=5 // pred_check
        %p3088 = pneg %p3087
      $region91: #{grit_layer.4} parent=5 // pred_check_branch
        %3090 = sbr.rel (%p3088) target = $region93
      $region92: #{grit_layer.4} parent=5 // pred_region
        %s3091 = ssub.s32 %s10, 2
        // Predicated region
        $region94: #{grit_layer.4} parent=92 // pred_check
          %p3092 = pneg %p157
        $region95: #{grit_layer.4} parent=92 // pred_check_branch
          %3094 = sbr.rel (%p3092) target = $region97
        $region96: #{grit_layer.4} parent=92 // pred_region
          %s3095 = smul.u32 8, %s21
          %p3096 = scmp.lt.s32.totalorder %s3095, 15
          %s3097 = scalar_select %p3096, %s3095, 15
          %s3098 = smul.addr %s3097, 8
          %s3099 = scalar_lea.vmem %s4, %s3098
        $region97: #{grit_layer.4} parent=92 // pred_fallthru
          _
      $region93: #{grit_layer.4} parent=5 // pred_fallthru
        _
    $region6: #{grit_layer.4} parent=1 // loop_footer
      %s14 = sadd.s32 1, %s10
    $region7: #{grit_layer.4} parent=1 // loop_footer_branch
      %9 = sbr.rel target = $region3
    $region8: #{grit_layer.4} parent=1 // loop_exit
      _

</llo_original>
